<compile_context>
chip_gen: v5e
topology: v5e:2x2
jax: 0.10.0
libtpu: 0.0.40
codegen_flags: <defaults>
</compile_context>

<pallas_src>
import jax
import jax.numpy as jnp
from jax.experimental import pallas as pl
from jax.experimental.pallas import tpu as pltpu

LN_EPS = 1e-5
BN_EPS = 1e-5
DW_K = 32                      # depthwise kernel size
PAD_L = (DW_K - 1) // 2        # 15 (PyTorch 'same', even kernel)
PAD_R = (DW_K - 1) - PAD_L     # 16
PAD_ROWS = 16                  # sublane-aligned zero gap on each side in the slab
SUBLANE = 8

MXU_DTYPE = jnp.bfloat16       # MXU operand dtype (f32 accumulation)


def conv_module_kernel(x_ref, w1v_ref, b1v_ref, w1g_ref, b1g_ref,
                       dw_ref, db_ref, w2_ref, b2_ref,
                       o_ref, xm_scr, g_scr):
    BB, C, T = x_ref.shape          # block: (BB, C, T)
    TP = T + 2 * PAD_ROWS           # padded rows per batch in the depthwise slab

    # ---- (BB, C, T) -> (BB*T, C): per-batch on-chip transpose written straight
    #      into a VMEM slab at sublane-aligned offsets (no concatenate copy).
    for b in range(BB):
        xm_scr[b * T:(b + 1) * T, :] = x_ref[b].T
    xm = xm_scr[...]                                   # (BB*T, C), aligned load

    # ---- LayerNorm over channels, fused single-pass stats; its affine is
    #      folded into pointwise_conv1 host-side.
    mean = jnp.mean(xm, axis=-1, keepdims=True)
    ex2 = jnp.mean(xm * xm, axis=-1, keepdims=True)
    xn = (xm - mean) * jax.lax.rsqrt(ex2 - mean * mean + LN_EPS)

    # ---- pointwise_conv1 split into GLU value/gate halves: two matmuls, no
    #      lane-offset slicing.  bf16 only at the MXU boundary; f32 elsewhere.
    xnm = xn.astype(w1v_ref.dtype)
    yv = jnp.dot(xnm, w1v_ref[...], preferred_element_type=jnp.float32) + b1v_ref[...]
    yg = jnp.dot(xnm, w1g_ref[...], preferred_element_type=jnp.float32) + b1g_ref[...]
    g = yv * jax.nn.sigmoid(yg)                        # (BB*T, C) f32  (GLU)

    # ---- hoisted once per grid step (not per batch / per tap).
    dwv = dw_ref[...]                                  # (DW_K, C), BN folded in
    dw_rows = [jax.lax.slice(dwv, (j, 0), (j + 1, C)) for j in range(DW_K)]
    dbv = db_ref[...]
    w2v = w2_ref[...]
    b2v = b2_ref[...]
    zpad = jnp.zeros((PAD_ROWS, C), jnp.float32)

    # ---- stage each batch's GLU output into the zero-padded depthwise slab.
    #      Pads are re-zeroed every step: scratch is per-core, so a one-time
    #      program_id(0)==0 init would be wrong when the "parallel" grid axis
    #      is split across TensorCores (v7x).
    for b in range(BB):
        base = b * TP
        g_scr[base:base + PAD_ROWS, :] = zpad
        g_scr[base + PAD_ROWS + T:base + TP, :] = zpad
        g_scr[base + PAD_ROWS:base + PAD_ROWS + T, :] = (
            jax.lax.slice(g, (b * T, 0), ((b + 1) * T, C)))

    # ---- per batch: depthwise conv (k=32, 'same' => 15/16 zeros, eval-mode BN
    #      folded into dw/db), SiLU, pointwise_conv2, transposed store.
    #      Taps grouped by sublane residue: 8 slab views (7 unaligned + 1
    #      aligned) per batch instead of 28 unaligned (T,C) loads; the taps of
    #      each class are 8-aligned slices of their view.
    for b in range(BB):
        base = b * TP
        acc = jnp.zeros((T, C), jnp.float32)
        for r in range(SUBLANE):
            offs = [o for o in range(1, DW_K + 1) if o % SUBLANE == r]
            o0 = offs[0]
            span = offs[-1] - o0 + T
            view = g_scr[base + o0:base + o0 + span, :]      # one load/relayout
            for o in offs:                                   # 8-aligned slices
                acc = acc + (jax.lax.slice(view, (o - o0, 0), (o - o0 + T, C))
                             * dw_rows[o - 1])
        z = acc + dbv                                        # BN-folded bias
        z = z * jax.nn.sigmoid(z)                            # SiLU / Swish
        out_b = jnp.dot(z.astype(w2v.dtype), w2v,
                        preferred_element_type=jnp.float32) + b2v
        # Dropout(p=0.1) is identity in eval mode.
        o_ref[b] = out_b.T.astype(o_ref.dtype)               # back to (C, T)


def _vmem_capacity_bytes():
    try:
        return int(pltpu.get_tpu_info().vmem_capacity_bytes)
    except Exception:
        return 64 * 1024 * 1024          # conservative fallback (v7x per-core)


def _step_vmem_bytes(BB, C, T):
    """Honest per-grid-step VMEM footprint model."""
    f = 4
    slab = BB * T * C * f
    io_dbuf = 2 * (2 * BB * C * T * f)                        # x + out, 2 bufs each
    scratch = slab + BB * (T + 2 * PAD_ROWS) * C * f          # xm_scr + g_scr
    interm = 6 * slab                                         # xm, xn, xn_bf16, yv, yg, g
    params = 2 * (3 * C * C * 2 + (DW_K + 5) * C * f)         # double-buffered weights/biases
    return io_dbuf + scratch + interm + params


def _pick_block_b(B, T, C):
    """Largest batch block that fits the generation's VMEM budget, preferring
    >= 4 grid steps (>= 2 per TensorCore on v7x) for DMA double-buffering and
    a matmul M target of BB*T >= 512 (v6e 256-wide MXU)."""
    budget = int(0.7 * _vmem_capacity_bytes())
    divisors = [d for d in range(1, B + 1) if B % d == 0]
    fits = [d for d in divisors if _step_vmem_bytes(d, C, T) <= budget] or [1]
    for min_steps in (4, 2, 1):
        for m_target in (512, 256, 0):
            cand = [d for d in fits if B // d >= min_steps and d * T >= m_target]
            if cand:
                return max(cand)
    return 1


def _fold_params(p, C):
    f32 = jnp.float32
    ln_g = p["ln_g"].reshape(1, C).astype(f32)
    ln_b = p["ln_b"].reshape(1, C).astype(f32)
    w1 = p["w1"].astype(f32)                        # (C, 2C): [:, :C]=value, [:, C:]=gate
    b1 = p["b1"].reshape(1, 2 * C).astype(f32)
    # LayerNorm affine folded into pointwise_conv1:
    #   (xn*g + b) @ W1 + b1 == xn @ (diag(g) W1) + (b @ W1 + b1)
    w1f = ln_g.reshape(C, 1) * w1
    b1f = ln_b @ w1 + b1
    w1v, w1g = w1f[:, :C], w1f[:, C:]
    b1v, b1g = b1f[:, :C], b1f[:, C:]
    # Eval-mode BatchNorm folded into the (per-channel linear) depthwise conv.
    scale = p["bn_g"].reshape(1, C).astype(f32) * jax.lax.rsqrt(
        p["bn_v"].reshape(1, C).astype(f32) + BN_EPS)
    dwf = p["dw_w"].astype(f32) * scale             # (DW_K, C)
    dbf = ((p["dw_b"].reshape(1, C).astype(f32) - p["bn_m"].reshape(1, C).astype(f32))
           * scale + p["bn_b"].reshape(1, C).astype(f32))
    w2 = p["w2"].astype(f32)                        # (C, C)
    b2 = p["b2"].reshape(1, C).astype(f32)
    return (w1v.astype(MXU_DTYPE), b1v, w1g.astype(MXU_DTYPE), b1g,
            dwf, dbf, w2.astype(MXU_DTYPE), b2)


def convolution_module(x_bct, params, *, block_b=None):
    """x_bct: (B, C, T) float32 (the module's native layout).  Returns (B, C, T)."""
    B, C, T = x_bct.shape
    assert T % SUBLANE == 0, "T must be a multiple of 8 (sublane alignment)"
    BB = block_b if block_b is not None else _pick_block_b(B, T, C)
    assert B % BB == 0, (B, BB)

    plist = list(_fold_params(params, C))

    def full_spec(a):
        return pl.BlockSpec(a.shape, lambda i: (0,) * a.ndim)

    cap = _vmem_capacity_bytes()
    need = _step_vmem_bytes(BB, C, T)
    vmem_limit = int(max(32 * 1024 * 1024, min(int(0.8 * cap), int(1.5 * need))))

    cost = pl.CostEstimate(
        flops=int(2 * B * T * C * (2 * C) + 2 * B * T * C * C + 2 * B * T * C * DW_K),
        transcendentals=int(2 * B * T * C),
        bytes_accessed=int(4 * 2 * B * C * T
                           + sum(int(p.size) * p.dtype.itemsize for p in plist)),
    )

    return pl.pallas_call(
        conv_module_kernel,
        out_shape=jax.ShapeDtypeStruct((B, C, T), x_bct.dtype),
        grid=(B // BB,),
        in_specs=[pl.BlockSpec((BB, C, T), lambda i: (i, 0, 0))]
                 + [full_spec(p) for p in plist],
        out_specs=pl.BlockSpec((BB, C, T), lambda i: (i, 0, 0)),
        scratch_shapes=[
            pltpu.VMEM((BB * T, C), jnp.float32),                    # xm slab
            pltpu.VMEM((BB * (T + 2 * PAD_ROWS), C), jnp.float32),   # padded g slab
        ],
        compiler_params=pltpu.CompilerParams(
            dimension_semantics=("parallel",),
            vmem_limit_bytes=vmem_limit),
        cost_estimate=cost,
    )(x_bct, *plist)


def reference(x_bct, p):
    """Plain-JAX f32 reference implementing the PyTorch module (eval mode)."""
    x = jnp.transpose(x_bct, (0, 2, 1))             # (B, T, C)
    B, T, C = x.shape
    mean = jnp.mean(x, axis=-1, keepdims=True)
    var = jnp.mean((x - mean) ** 2, axis=-1, keepdims=True)
    xn = (x - mean) * jax.lax.rsqrt(var + LN_EPS) * p["ln_g"] + p["ln_b"]
    y = xn @ p["w1"] + p["b1"]
    g = y[..., :C] * jax.nn.sigmoid(y[..., C:])
    gp = jnp.pad(g, ((0, 0), (PAD_L, PAD_R), (0, 0)))
    acc = sum(gp[:, j:j + T, :] * p["dw_w"][j] for j in range(DW_K)) + p["dw_b"]
    z = (acc - p["bn_m"]) * jax.lax.rsqrt(p["bn_v"] + BN_EPS) * p["bn_g"] + p["bn_b"]
    z = z * jax.nn.sigmoid(z)
    out = z @ p["w2"] + p["b2"]
    return jnp.transpose(out, (0, 2, 1))


if __name__ == "__main__":
    B, C, T = 4, 32, 128       # batch, inner_dim, sequence length
    key = jax.random.PRNGKey(0)
    keys = jax.random.split(key, 12)

    x = jax.random.normal(keys[0], (B, C, T), jnp.float32)

    # Synthetic params (PyTorch param shapes, re-laid-out):
    #  pointwise_conv1.weight (2C, C, 1) -> w1 (C, 2C);  .bias (2C,) -> b1 (1, 2C)
    #  depthwise_conv.weight  (C, 1, 32) -> dw_w (32, C); .bias (C,) -> dw_b (1, C)
    #  pointwise_conv2.weight (C, C, 1)  -> w2 (C, C);    .bias (C,) -> b2 (1, C)
    params = {
        "ln_g": 1.0 + 0.1 * jax.random.normal(keys[1], (1, C), jnp.float32),
        "ln_b": 0.1 * jax.random.normal(keys[2], (1, C), jnp.float32),
        "w1":   0.1 * jax.random.normal(keys[3], (C, 2 * C), jnp.float32),
        "b1":   0.1 * jax.random.normal(keys[4], (1, 2 * C), jnp.float32),
        "dw_w": 0.1 * jax.random.normal(keys[5], (DW_K, C), jnp.float32),
        "dw_b": 0.1 * jax.random.normal(keys[6], (1, C), jnp.float32),
        "bn_g": 1.0 + 0.1 * jax.random.normal(keys[7], (1, C), jnp.float32),
        "bn_b": 0.1 * jax.random.normal(keys[8], (1, C), jnp.float32),
        "bn_m": 0.1 * jax.random.normal(keys[9], (1, C), jnp.float32),
        "bn_v": 0.5 + jax.random.uniform(keys[10], (1, C), jnp.float32),
        "w2":   0.1 * jax.random.normal(keys[11], (C, C), jnp.float32),
        "b2":   0.05 * jnp.ones((1, C), jnp.float32),
    }

    out = jax.block_until_ready(convolution_module(x, params))
    ref = jax.block_until_ready(reference(x, params))

    assert out.shape == (B, C, T), out.shape
    err = float(jnp.max(jnp.abs(out - ref)))
    # bf16 MXU operands with f32 accumulation -> ~1e-3-level deviation from the
    # pure-f32 reference; 1e-2 tolerance has ample margin.
    assert jnp.allclose(out, ref, rtol=1e-2, atol=1e-2), err
    print("KERNEL_OK")
</pallas_src>

<mosaic_0001>
module attributes {stable_mosaic.version = 11 : i64} {
  func.func @conv_module_kernel(%arg0: i32, %arg1: memref<1x32x128xf32, #tpu.memory_space<vmem>>, %arg2: memref<32x32xbf16, #tpu.memory_space<vmem>>, %arg3: memref<1x32xf32, #tpu.memory_space<vmem>>, %arg4: memref<32x32xbf16, #tpu.memory_space<vmem>>, %arg5: memref<1x32xf32, #tpu.memory_space<vmem>>, %arg6: memref<32x32xf32, #tpu.memory_space<vmem>>, %arg7: memref<1x32xf32, #tpu.memory_space<vmem>>, %arg8: memref<32x32xbf16, #tpu.memory_space<vmem>>, %arg9: memref<1x32xf32, #tpu.memory_space<vmem>>, %arg10: memref<1x32x128xf32, #tpu.memory_space<vmem>>, %arg11: memref<128x32xf32, #tpu.memory_space<vmem>>, %arg12: memref<160x32xf32, #tpu.memory_space<vmem>>) attributes {dimension_semantics = [#tpu.dimension_semantics<parallel>], iteration_bounds = array<i64: 4>, scalar_prefetch = 0 : i64, scratch_operands = 2 : i64, tpu.core_type = #tpu.core_type<tc>, window_params = [{transform_indices = @transform_0, window_bounds = array<i64: 1, 32, 128>}, {pipeline_mode = #tpu.pipeline_mode<synchronous>, transform_indices = @transform_1, window_bounds = array<i64: 32, 32>}, {pipeline_mode = #tpu.pipeline_mode<synchronous>, transform_indices = @transform_2, window_bounds = array<i64: 1, 32>}, {pipeline_mode = #tpu.pipeline_mode<synchronous>, transform_indices = @transform_3, window_bounds = array<i64: 32, 32>}, {pipeline_mode = #tpu.pipeline_mode<synchronous>, transform_indices = @transform_4, window_bounds = array<i64: 1, 32>}, {pipeline_mode = #tpu.pipeline_mode<synchronous>, transform_indices = @transform_5, window_bounds = array<i64: 32, 32>}, {pipeline_mode = #tpu.pipeline_mode<synchronous>, transform_indices = @transform_6, window_bounds = array<i64: 1, 32>}, {pipeline_mode = #tpu.pipeline_mode<synchronous>, transform_indices = @transform_7, window_bounds = array<i64: 32, 32>}, {pipeline_mode = #tpu.pipeline_mode<synchronous>, transform_indices = @transform_8, window_bounds = array<i64: 1, 32>}, {transform_indices = @transform_9, window_bounds = array<i64: 1, 32, 128>}]} {
    %c0 = arith.constant 0 : index
    %c0_0 = arith.constant 0 : index
    %c0_1 = arith.constant 0 : index
    %0 = vector.load %arg1[%c0, %c0_0, %c0_1] : memref<1x32x128xf32, #tpu.memory_space<vmem>>, vector<1x32x128xf32>
    %1 = vector.shape_cast %0 : vector<1x32x128xf32> to vector<32x128xf32>
    %2 = tpu.transpose %1, [1, 0] : vector<32x128xf32> -> vector<128x32xf32>
    %c0_2 = arith.constant 0 : index
    %c0_3 = arith.constant 0 : index
    %3 = vector.load %arg11[%c0_2, %c0_3] : memref<128x32xf32, #tpu.memory_space<vmem>>, vector<128x32xf32>
    tpu.vector_store %arg11[%c0_2, %c0_3], %2 {strides = array<i32>} : memref<128x32xf32, #tpu.memory_space<vmem>>, vector<128x32xf32>,
    %c0_4 = arith.constant 0 : index
    %c0_5 = arith.constant 0 : index
    %4 = vector.load %arg11[%c0_4, %c0_5] : memref<128x32xf32, #tpu.memory_space<vmem>>, vector<128x32xf32>
    %cst = arith.constant dense<0.000000e+00> : vector<128xf32>
    %5 = vector.multi_reduction <add>, %4, %cst [1] : vector<128x32xf32> to vector<128xf32>
    %6 = vector.shape_cast %5 : vector<128xf32> to vector<128x1xf32>
    %cst_6 = arith.constant 3.200000e+01 : f32
    %7 = vector.broadcast %cst_6 : f32 to vector<128x1xf32>
    %8 = arith.divf %6, %7 : vector<128x1xf32>
    %9 = arith.mulf %4, %4 : vector<128x32xf32>
    %cst_7 = arith.constant dense<0.000000e+00> : vector<128xf32>
    %10 = vector.multi_reduction <add>, %9, %cst_7 [1] : vector<128x32xf32> to vector<128xf32>
    %11 = vector.shape_cast %10 : vector<128xf32> to vector<128x1xf32>
    %cst_8 = arith.constant 3.200000e+01 : f32
    %12 = vector.broadcast %cst_8 : f32 to vector<128x1xf32>
    %13 = arith.divf %11, %12 : vector<128x1xf32>
    %14 = vector.broadcast %8 : vector<128x1xf32> to vector<128x32xf32>
    %15 = arith.subf %4, %14 : vector<128x32xf32>
    %16 = arith.mulf %8, %8 : vector<128x1xf32>
    %17 = arith.subf %13, %16 : vector<128x1xf32>
    %cst_9 = arith.constant 9.99999974E-6 : f32
    %18 = vector.broadcast %cst_9 : f32 to vector<128x1xf32>
    %19 = arith.addf %17, %18 : vector<128x1xf32>
    %20 = math.rsqrt %19 : vector<128x1xf32>
    %21 = vector.broadcast %20 : vector<128x1xf32> to vector<128x32xf32>
    %22 = arith.mulf %15, %21 : vector<128x32xf32>
    %23 = arith.truncf %22 : vector<128x32xf32> to vector<128x32xbf16>
    %c0_10 = arith.constant 0 : index
    %c0_11 = arith.constant 0 : index
    %24 = vector.load %arg2[%c0_10, %c0_11] : memref<32x32xbf16, #tpu.memory_space<vmem>>, vector<32x32xbf16>
    %cst_12 = arith.constant dense<0.000000e+00> : vector<128x32xf32>
    %25 = tpu.matmul %23, %24, %cst_12 {dimension_numbers = #tpu.dot_dimension_numbers<[1], [0], [0], [1], [0, 0, 1, 1], [], []>} : vector<128x32xbf16>, vector<32x32xbf16>, vector<128x32xf32> -> vector<128x32xf32>
    %c0_13 = arith.constant 0 : index
    %c0_14 = arith.constant 0 : index
    %26 = vector.load %arg3[%c0_13, %c0_14] : memref<1x32xf32, #tpu.memory_space<vmem>>, vector<1x32xf32>
    %27 = vector.broadcast %26 : vector<1x32xf32> to vector<128x32xf32>
    %28 = arith.addf %25, %27 : vector<128x32xf32>
    %c0_15 = arith.constant 0 : index
    %c0_16 = arith.constant 0 : index
    %29 = vector.load %arg4[%c0_15, %c0_16] : memref<32x32xbf16, #tpu.memory_space<vmem>>, vector<32x32xbf16>
    %cst_17 = arith.constant dense<0.000000e+00> : vector<128x32xf32>
    %30 = tpu.matmul %23, %29, %cst_17 {dimension_numbers = #tpu.dot_dimension_numbers<[1], [0], [0], [1], [0, 0, 1, 1], [], []>} : vector<128x32xbf16>, vector<32x32xbf16>, vector<128x32xf32> -> vector<128x32xf32>
    %c0_18 = arith.constant 0 : index
    %c0_19 = arith.constant 0 : index
    %31 = vector.load %arg5[%c0_18, %c0_19] : memref<1x32xf32, #tpu.memory_space<vmem>>, vector<1x32xf32>
    %32 = vector.broadcast %31 : vector<1x32xf32> to vector<128x32xf32>
    %33 = arith.addf %30, %32 : vector<128x32xf32>
    %34 = arith.negf %33 : vector<128x32xf32>
    %35 = math.exp %34 : vector<128x32xf32>
    %cst_20 = arith.constant 1.000000e+00 : f32
    %36 = vector.broadcast %cst_20 : f32 to vector<128x32xf32>
    %37 = arith.addf %36, %35 : vector<128x32xf32>
    %38 = arith.divf %36, %37 : vector<128x32xf32>
    %39 = arith.mulf %28, %38 : vector<128x32xf32>
    %c0_21 = arith.constant 0 : index
    %c0_22 = arith.constant 0 : index
    %40 = vector.load %arg6[%c0_21, %c0_22] : memref<32x32xf32, #tpu.memory_space<vmem>>, vector<32x32xf32>
    %41 = vector.extract_strided_slice %40 {offsets = [0, 0], sizes = [1, 32], strides = [1, 1]} : vector<32x32xf32> to vector<1x32xf32>
    %42 = vector.extract_strided_slice %40 {offsets = [1, 0], sizes = [1, 32], strides = [1, 1]} : vector<32x32xf32> to vector<1x32xf32>
    %43 = vector.extract_strided_slice %40 {offsets = [2, 0], sizes = [1, 32], strides = [1, 1]} : vector<32x32xf32> to vector<1x32xf32>
    %44 = vector.extract_strided_slice %40 {offsets = [3, 0], sizes = [1, 32], strides = [1, 1]} : vector<32x32xf32> to vector<1x32xf32>
    %45 = vector.extract_strided_slice %40 {offsets = [4, 0], sizes = [1, 32], strides = [1, 1]} : vector<32x32xf32> to vector<1x32xf32>
    %46 = vector.extract_strided_slice %40 {offsets = [5, 0], sizes = [1, 32], strides = [1, 1]} : vector<32x32xf32> to vector<1x32xf32>
    %47 = vector.extract_strided_slice %40 {offsets = [6, 0], sizes = [1, 32], strides = [1, 1]} : vector<32x32xf32> to vector<1x32xf32>
    %48 = vector.extract_strided_slice %40 {offsets = [7, 0], sizes = [1, 32], strides = [1, 1]} : vector<32x32xf32> to vector<1x32xf32>
    %49 = vector.extract_strided_slice %40 {offsets = [8, 0], sizes = [1, 32], strides = [1, 1]} : vector<32x32xf32> to vector<1x32xf32>
    %50 = vector.extract_strided_slice %40 {offsets = [9, 0], sizes = [1, 32], strides = [1, 1]} : vector<32x32xf32> to vector<1x32xf32>
    %51 = vector.extract_strided_slice %40 {offsets = [10, 0], sizes = [1, 32], strides = [1, 1]} : vector<32x32xf32> to vector<1x32xf32>
    %52 = vector.extract_strided_slice %40 {offsets = [11, 0], sizes = [1, 32], strides = [1, 1]} : vector<32x32xf32> to vector<1x32xf32>
    %53 = vector.extract_strided_slice %40 {offsets = [12, 0], sizes = [1, 32], strides = [1, 1]} : vector<32x32xf32> to vector<1x32xf32>
    %54 = vector.extract_strided_slice %40 {offsets = [13, 0], sizes = [1, 32], strides = [1, 1]} : vector<32x32xf32> to vector<1x32xf32>
    %55 = vector.extract_strided_slice %40 {offsets = [14, 0], sizes = [1, 32], strides = [1, 1]} : vector<32x32xf32> to vector<1x32xf32>
    %56 = vector.extract_strided_slice %40 {offsets = [15, 0], sizes = [1, 32], strides = [1, 1]} : vector<32x32xf32> to vector<1x32xf32>
    %57 = vector.extract_strided_slice %40 {offsets = [16, 0], sizes = [1, 32], strides = [1, 1]} : vector<32x32xf32> to vector<1x32xf32>
    %58 = vector.extract_strided_slice %40 {offsets = [17, 0], sizes = [1, 32], strides = [1, 1]} : vector<32x32xf32> to vector<1x32xf32>
    %59 = vector.extract_strided_slice %40 {offsets = [18, 0], sizes = [1, 32], strides = [1, 1]} : vector<32x32xf32> to vector<1x32xf32>
    %60 = vector.extract_strided_slice %40 {offsets = [19, 0], sizes = [1, 32], strides = [1, 1]} : vector<32x32xf32> to vector<1x32xf32>
    %61 = vector.extract_strided_slice %40 {offsets = [20, 0], sizes = [1, 32], strides = [1, 1]} : vector<32x32xf32> to vector<1x32xf32>
    %62 = vector.extract_strided_slice %40 {offsets = [21, 0], sizes = [1, 32], strides = [1, 1]} : vector<32x32xf32> to vector<1x32xf32>
    %63 = vector.extract_strided_slice %40 {offsets = [22, 0], sizes = [1, 32], strides = [1, 1]} : vector<32x32xf32> to vector<1x32xf32>
    %64 = vector.extract_strided_slice %40 {offsets = [23, 0], sizes = [1, 32], strides = [1, 1]} : vector<32x32xf32> to vector<1x32xf32>
    %65 = vector.extract_strided_slice %40 {offsets = [24, 0], sizes = [1, 32], strides = [1, 1]} : vector<32x32xf32> to vector<1x32xf32>
    %66 = vector.extract_strided_slice %40 {offsets = [25, 0], sizes = [1, 32], strides = [1, 1]} : vector<32x32xf32> to vector<1x32xf32>
    %67 = vector.extract_strided_slice %40 {offsets = [26, 0], sizes = [1, 32], strides = [1, 1]} : vector<32x32xf32> to vector<1x32xf32>
    %68 = vector.extract_strided_slice %40 {offsets = [27, 0], sizes = [1, 32], strides = [1, 1]} : vector<32x32xf32> to vector<1x32xf32>
    %69 = vector.extract_strided_slice %40 {offsets = [28, 0], sizes = [1, 32], strides = [1, 1]} : vector<32x32xf32> to vector<1x32xf32>
    %70 = vector.extract_strided_slice %40 {offsets = [29, 0], sizes = [1, 32], strides = [1, 1]} : vector<32x32xf32> to vector<1x32xf32>
    %71 = vector.extract_strided_slice %40 {offsets = [30, 0], sizes = [1, 32], strides = [1, 1]} : vector<32x32xf32> to vector<1x32xf32>
    %72 = vector.extract_strided_slice %40 {offsets = [31, 0], sizes = [1, 32], strides = [1, 1]} : vector<32x32xf32> to vector<1x32xf32>
    %c0_23 = arith.constant 0 : index
    %c0_24 = arith.constant 0 : index
    %73 = vector.load %arg7[%c0_23, %c0_24] : memref<1x32xf32, #tpu.memory_space<vmem>>, vector<1x32xf32>
    %c0_25 = arith.constant 0 : index
    %c0_26 = arith.constant 0 : index
    %74 = vector.load %arg8[%c0_25, %c0_26] : memref<32x32xbf16, #tpu.memory_space<vmem>>, vector<32x32xbf16>
    %c0_27 = arith.constant 0 : index
    %c0_28 = arith.constant 0 : index
    %75 = vector.load %arg9[%c0_27, %c0_28] : memref<1x32xf32, #tpu.memory_space<vmem>>, vector<1x32xf32>
    %cst_29 = arith.constant 0.000000e+00 : f32
    %76 = vector.broadcast %cst_29 : f32 to vector<16x32xf32>
    %c0_30 = arith.constant 0 : index
    %c0_31 = arith.constant 0 : index
    %77 = vector.load %arg12[%c0_30, %c0_31] : memref<160x32xf32, #tpu.memory_space<vmem>>, vector<16x32xf32>
    tpu.vector_store %arg12[%c0_30, %c0_31], %76 {strides = array<i32>} : memref<160x32xf32, #tpu.memory_space<vmem>>, vector<16x32xf32>,
    %c144 = arith.constant 144 : index
    %c0_32 = arith.constant 0 : index
    %78 = vector.load %arg12[%c144, %c0_32] : memref<160x32xf32, #tpu.memory_space<vmem>>, vector<16x32xf32>
    tpu.vector_store %arg12[%c144, %c0_32], %76 {strides = array<i32>} : memref<160x32xf32, #tpu.memory_space<vmem>>, vector<16x32xf32>,
    %79 = vector.extract_strided_slice %39 {offsets = [0, 0], sizes = [128, 32], strides = [1, 1]} : vector<128x32xf32> to vector<128x32xf32>
    %c16 = arith.constant 16 : index
    %c0_33 = arith.constant 0 : index
    %80 = vector.load %arg12[%c16, %c0_33] : memref<160x32xf32, #tpu.memory_space<vmem>>, vector<128x32xf32>
    tpu.vector_store %arg12[%c16, %c0_33], %79 {strides = array<i32>} : memref<160x32xf32, #tpu.memory_space<vmem>>, vector<128x32xf32>,
    %cst_34 = arith.constant 0.000000e+00 : f32
    %81 = vector.broadcast %cst_34 : f32 to vector<128x32xf32>
    %c8 = arith.constant 8 : index
    %c0_35 = arith.constant 0 : index
    %82 = vector.load %arg12[%c8, %c0_35] : memref<160x32xf32, #tpu.memory_space<vmem>>, vector<152x32xf32>
    %83 = vector.extract_strided_slice %82 {offsets = [0, 0], sizes = [128, 32], strides = [1, 1]} : vector<152x32xf32> to vector<128x32xf32>
    %84 = vector.broadcast %48 : vector<1x32xf32> to vector<128x32xf32>
    %85 = arith.mulf %83, %84 : vector<128x32xf32>
    %86 = arith.addf %81, %85 : vector<128x32xf32>
    %87 = vector.extract_strided_slice %82 {offsets = [8, 0], sizes = [128, 32], strides = [1, 1]} : vector<152x32xf32> to vector<128x32xf32>
    %88 = vector.broadcast %56 : vector<1x32xf32> to vector<128x32xf32>
    %89 = arith.mulf %87, %88 : vector<128x32xf32>
    %90 = arith.addf %86, %89 : vector<128x32xf32>
    %91 = vector.extract_strided_slice %82 {offsets = [16, 0], sizes = [128, 32], strides = [1, 1]} : vector<152x32xf32> to vector<128x32xf32>
    %92 = vector.broadcast %64 : vector<1x32xf32> to vector<128x32xf32>
    %93 = arith.mulf %91, %92 : vector<128x32xf32>
    %94 = arith.addf %90, %93 : vector<128x32xf32>
    %95 = vector.extract_strided_slice %82 {offsets = [24, 0], sizes = [128, 32], strides = [1, 1]} : vector<152x32xf32> to vector<128x32xf32>
    %96 = vector.broadcast %72 : vector<1x32xf32> to vector<128x32xf32>
    %97 = arith.mulf %95, %96 : vector<128x32xf32>
    %98 = arith.addf %94, %97 : vector<128x32xf32>
    %c1 = arith.constant 1 : index
    %c0_36 = arith.constant 0 : index
    %99 = vector.load %arg12[%c1, %c0_36] : memref<160x32xf32, #tpu.memory_space<vmem>>, vector<152x32xf32>
    %100 = vector.extract_strided_slice %99 {offsets = [0, 0], sizes = [128, 32], strides = [1, 1]} : vector<152x32xf32> to vector<128x32xf32>
    %101 = vector.broadcast %41 : vector<1x32xf32> to vector<128x32xf32>
    %102 = arith.mulf %100, %101 : vector<128x32xf32>
    %103 = arith.addf %98, %102 : vector<128x32xf32>
    %104 = vector.extract_strided_slice %99 {offsets = [8, 0], sizes = [128, 32], strides = [1, 1]} : vector<152x32xf32> to vector<128x32xf32>
    %105 = vector.broadcast %49 : vector<1x32xf32> to vector<128x32xf32>
    %106 = arith.mulf %104, %105 : vector<128x32xf32>
    %107 = arith.addf %103, %106 : vector<128x32xf32>
    %108 = vector.extract_strided_slice %99 {offsets = [16, 0], sizes = [128, 32], strides = [1, 1]} : vector<152x32xf32> to vector<128x32xf32>
    %109 = vector.broadcast %57 : vector<1x32xf32> to vector<128x32xf32>
    %110 = arith.mulf %108, %109 : vector<128x32xf32>
    %111 = arith.addf %107, %110 : vector<128x32xf32>
    %112 = vector.extract_strided_slice %99 {offsets = [24, 0], sizes = [128, 32], strides = [1, 1]} : vector<152x32xf32> to vector<128x32xf32>
    %113 = vector.broadcast %65 : vector<1x32xf32> to vector<128x32xf32>
    %114 = arith.mulf %112, %113 : vector<128x32xf32>
    %115 = arith.addf %111, %114 : vector<128x32xf32>
    %c2 = arith.constant 2 : index
    %c0_37 = arith.constant 0 : index
    %116 = vector.load %arg12[%c2, %c0_37] : memref<160x32xf32, #tpu.memory_space<vmem>>, vector<152x32xf32>
    %117 = vector.extract_strided_slice %116 {offsets = [0, 0], sizes = [128, 32], strides = [1, 1]} : vector<152x32xf32> to vector<128x32xf32>
    %118 = vector.broadcast %42 : vector<1x32xf32> to vector<128x32xf32>
    %119 = arith.mulf %117, %118 : vector<128x32xf32>
    %120 = arith.addf %115, %119 : vector<128x32xf32>
    %121 = vector.extract_strided_slice %116 {offsets = [8, 0], sizes = [128, 32], strides = [1, 1]} : vector<152x32xf32> to vector<128x32xf32>
    %122 = vector.broadcast %50 : vector<1x32xf32> to vector<128x32xf32>
    %123 = arith.mulf %121, %122 : vector<128x32xf32>
    %124 = arith.addf %120, %123 : vector<128x32xf32>
    %125 = vector.extract_strided_slice %116 {offsets = [16, 0], sizes = [128, 32], strides = [1, 1]} : vector<152x32xf32> to vector<128x32xf32>
    %126 = vector.broadcast %58 : vector<1x32xf32> to vector<128x32xf32>
    %127 = arith.mulf %125, %126 : vector<128x32xf32>
    %128 = arith.addf %124, %127 : vector<128x32xf32>
    %129 = vector.extract_strided_slice %116 {offsets = [24, 0], sizes = [128, 32], strides = [1, 1]} : vector<152x32xf32> to vector<128x32xf32>
    %130 = vector.broadcast %66 : vector<1x32xf32> to vector<128x32xf32>
    %131 = arith.mulf %129, %130 : vector<128x32xf32>
    %132 = arith.addf %128, %131 : vector<128x32xf32>
    %c3 = arith.constant 3 : index
    %c0_38 = arith.constant 0 : index
    %133 = vector.load %arg12[%c3, %c0_38] : memref<160x32xf32, #tpu.memory_space<vmem>>, vector<152x32xf32>
    %134 = vector.extract_strided_slice %133 {offsets = [0, 0], sizes = [128, 32], strides = [1, 1]} : vector<152x32xf32> to vector<128x32xf32>
    %135 = vector.broadcast %43 : vector<1x32xf32> to vector<128x32xf32>
    %136 = arith.mulf %134, %135 : vector<128x32xf32>
    %137 = arith.addf %132, %136 : vector<128x32xf32>
    %138 = vector.extract_strided_slice %133 {offsets = [8, 0], sizes = [128, 32], strides = [1, 1]} : vector<152x32xf32> to vector<128x32xf32>
    %139 = vector.broadcast %51 : vector<1x32xf32> to vector<128x32xf32>
    %140 = arith.mulf %138, %139 : vector<128x32xf32>
    %141 = arith.addf %137, %140 : vector<128x32xf32>
    %142 = vector.extract_strided_slice %133 {offsets = [16, 0], sizes = [128, 32], strides = [1, 1]} : vector<152x32xf32> to vector<128x32xf32>
    %143 = vector.broadcast %59 : vector<1x32xf32> to vector<128x32xf32>
    %144 = arith.mulf %142, %143 : vector<128x32xf32>
    %145 = arith.addf %141, %144 : vector<128x32xf32>
    %146 = vector.extract_strided_slice %133 {offsets = [24, 0], sizes = [128, 32], strides = [1, 1]} : vector<152x32xf32> to vector<128x32xf32>
    %147 = vector.broadcast %67 : vector<1x32xf32> to vector<128x32xf32>
    %148 = arith.mulf %146, %147 : vector<128x32xf32>
    %149 = arith.addf %145, %148 : vector<128x32xf32>
    %c4 = arith.constant 4 : index
    %c0_39 = arith.constant 0 : index
    %150 = vector.load %arg12[%c4, %c0_39] : memref<160x32xf32, #tpu.memory_space<vmem>>, vector<152x32xf32>
    %151 = vector.extract_strided_slice %150 {offsets = [0, 0], sizes = [128, 32], strides = [1, 1]} : vector<152x32xf32> to vector<128x32xf32>
    %152 = vector.broadcast %44 : vector<1x32xf32> to vector<128x32xf32>
    %153 = arith.mulf %151, %152 : vector<128x32xf32>
    %154 = arith.addf %149, %153 : vector<128x32xf32>
    %155 = vector.extract_strided_slice %150 {offsets = [8, 0], sizes = [128, 32], strides = [1, 1]} : vector<152x32xf32> to vector<128x32xf32>
    %156 = vector.broadcast %52 : vector<1x32xf32> to vector<128x32xf32>
    %157 = arith.mulf %155, %156 : vector<128x32xf32>
    %158 = arith.addf %154, %157 : vector<128x32xf32>
    %159 = vector.extract_strided_slice %150 {offsets = [16, 0], sizes = [128, 32], strides = [1, 1]} : vector<152x32xf32> to vector<128x32xf32>
    %160 = vector.broadcast %60 : vector<1x32xf32> to vector<128x32xf32>
    %161 = arith.mulf %159, %160 : vector<128x32xf32>
    %162 = arith.addf %158, %161 : vector<128x32xf32>
    %163 = vector.extract_strided_slice %150 {offsets = [24, 0], sizes = [128, 32], strides = [1, 1]} : vector<152x32xf32> to vector<128x32xf32>
    %164 = vector.broadcast %68 : vector<1x32xf32> to vector<128x32xf32>
    %165 = arith.mulf %163, %164 : vector<128x32xf32>
    %166 = arith.addf %162, %165 : vector<128x32xf32>
    %c5 = arith.constant 5 : index
    %c0_40 = arith.constant 0 : index
    %167 = vector.load %arg12[%c5, %c0_40] : memref<160x32xf32, #tpu.memory_space<vmem>>, vector<152x32xf32>
    %168 = vector.extract_strided_slice %167 {offsets = [0, 0], sizes = [128, 32], strides = [1, 1]} : vector<152x32xf32> to vector<128x32xf32>
    %169 = vector.broadcast %45 : vector<1x32xf32> to vector<128x32xf32>
    %170 = arith.mulf %168, %169 : vector<128x32xf32>
    %171 = arith.addf %166, %170 : vector<128x32xf32>
    %172 = vector.extract_strided_slice %167 {offsets = [8, 0], sizes = [128, 32], strides = [1, 1]} : vector<152x32xf32> to vector<128x32xf32>
    %173 = vector.broadcast %53 : vector<1x32xf32> to vector<128x32xf32>
    %174 = arith.mulf %172, %173 : vector<128x32xf32>
    %175 = arith.addf %171, %174 : vector<128x32xf32>
    %176 = vector.extract_strided_slice %167 {offsets = [16, 0], sizes = [128, 32], strides = [1, 1]} : vector<152x32xf32> to vector<128x32xf32>
    %177 = vector.broadcast %61 : vector<1x32xf32> to vector<128x32xf32>
    %178 = arith.mulf %176, %177 : vector<128x32xf32>
    %179 = arith.addf %175, %178 : vector<128x32xf32>
    %180 = vector.extract_strided_slice %167 {offsets = [24, 0], sizes = [128, 32], strides = [1, 1]} : vector<152x32xf32> to vector<128x32xf32>
    %181 = vector.broadcast %69 : vector<1x32xf32> to vector<128x32xf32>
    %182 = arith.mulf %180, %181 : vector<128x32xf32>
    %183 = arith.addf %179, %182 : vector<128x32xf32>
    %c6 = arith.constant 6 : index
    %c0_41 = arith.constant 0 : index
    %184 = vector.load %arg12[%c6, %c0_41] : memref<160x32xf32, #tpu.memory_space<vmem>>, vector<152x32xf32>
    %185 = vector.extract_strided_slice %184 {offsets = [0, 0], sizes = [128, 32], strides = [1, 1]} : vector<152x32xf32> to vector<128x32xf32>
    %186 = vector.broadcast %46 : vector<1x32xf32> to vector<128x32xf32>
    %187 = arith.mulf %185, %186 : vector<128x32xf32>
    %188 = arith.addf %183, %187 : vector<128x32xf32>
    %189 = vector.extract_strided_slice %184 {offsets = [8, 0], sizes = [128, 32], strides = [1, 1]} : vector<152x32xf32> to vector<128x32xf32>
    %190 = vector.broadcast %54 : vector<1x32xf32> to vector<128x32xf32>
    %191 = arith.mulf %189, %190 : vector<128x32xf32>
    %192 = arith.addf %188, %191 : vector<128x32xf32>
    %193 = vector.extract_strided_slice %184 {offsets = [16, 0], sizes = [128, 32], strides = [1, 1]} : vector<152x32xf32> to vector<128x32xf32>
    %194 = vector.broadcast %62 : vector<1x32xf32> to vector<128x32xf32>
    %195 = arith.mulf %193, %194 : vector<128x32xf32>
    %196 = arith.addf %192, %195 : vector<128x32xf32>
    %197 = vector.extract_strided_slice %184 {offsets = [24, 0], sizes = [128, 32], strides = [1, 1]} : vector<152x32xf32> to vector<128x32xf32>
    %198 = vector.broadcast %70 : vector<1x32xf32> to vector<128x32xf32>
    %199 = arith.mulf %197, %198 : vector<128x32xf32>
    %200 = arith.addf %196, %199 : vector<128x32xf32>
    %c7 = arith.constant 7 : index
    %c0_42 = arith.constant 0 : index
    %201 = vector.load %arg12[%c7, %c0_42] : memref<160x32xf32, #tpu.memory_space<vmem>>, vector<152x32xf32>
    %202 = vector.extract_strided_slice %201 {offsets = [0, 0], sizes = [128, 32], strides = [1, 1]} : vector<152x32xf32> to vector<128x32xf32>
    %203 = vector.broadcast %47 : vector<1x32xf32> to vector<128x32xf32>
    %204 = arith.mulf %202, %203 : vector<128x32xf32>
    %205 = arith.addf %200, %204 : vector<128x32xf32>
    %206 = vector.extract_strided_slice %201 {offsets = [8, 0], sizes = [128, 32], strides = [1, 1]} : vector<152x32xf32> to vector<128x32xf32>
    %207 = vector.broadcast %55 : vector<1x32xf32> to vector<128x32xf32>
    %208 = arith.mulf %206, %207 : vector<128x32xf32>
    %209 = arith.addf %205, %208 : vector<128x32xf32>
    %210 = vector.extract_strided_slice %201 {offsets = [16, 0], sizes = [128, 32], strides = [1, 1]} : vector<152x32xf32> to vector<128x32xf32>
    %211 = vector.broadcast %63 : vector<1x32xf32> to vector<128x32xf32>
    %212 = arith.mulf %210, %211 : vector<128x32xf32>
    %213 = arith.addf %209, %212 : vector<128x32xf32>
    %214 = vector.extract_strided_slice %201 {offsets = [24, 0], sizes = [128, 32], strides = [1, 1]} : vector<152x32xf32> to vector<128x32xf32>
    %215 = vector.broadcast %71 : vector<1x32xf32> to vector<128x32xf32>
    %216 = arith.mulf %214, %215 : vector<128x32xf32>
    %217 = arith.addf %213, %216 : vector<128x32xf32>
    %218 = vector.broadcast %73 : vector<1x32xf32> to vector<128x32xf32>
    %219 = arith.addf %217, %218 : vector<128x32xf32>
    %220 = arith.negf %219 : vector<128x32xf32>
    %221 = math.exp %220 : vector<128x32xf32>
    %cst_43 = arith.constant 1.000000e+00 : f32
    %222 = vector.broadcast %cst_43 : f32 to vector<128x32xf32>
    %223 = arith.addf %222, %221 : vector<128x32xf32>
    %224 = arith.divf %222, %223 : vector<128x32xf32>
    %225 = arith.mulf %219, %224 : vector<128x32xf32>
    %226 = arith.truncf %225 : vector<128x32xf32> to vector<128x32xbf16>
    %cst_44 = arith.constant dense<0.000000e+00> : vector<128x32xf32>
    %227 = tpu.matmul %226, %74, %cst_44 {dimension_numbers = #tpu.dot_dimension_numbers<[1], [0], [0], [1], [0, 0, 1, 1], [], []>} : vector<128x32xbf16>, vector<32x32xbf16>, vector<128x32xf32> -> vector<128x32xf32>
    %228 = vector.broadcast %75 : vector<1x32xf32> to vector<128x32xf32>
    %229 = arith.addf %227, %228 : vector<128x32xf32>
    %230 = tpu.transpose %229, [1, 0] : vector<128x32xf32> -> vector<32x128xf32>
    %c0_45 = arith.constant 0 : index
    %c0_46 = arith.constant 0 : index
    %c0_47 = arith.constant 0 : index
    %231 = vector.load %arg10[%c0_45, %c0_46, %c0_47] : memref<1x32x128xf32, #tpu.memory_space<vmem>>, vector<1x32x128xf32>
    %232 = vector.shape_cast %231 : vector<1x32x128xf32> to vector<32x128xf32>
    %233 = vector.shape_cast %230 : vector<32x128xf32> to vector<1x32x128xf32>
    tpu.vector_store %arg10[%c0_45, %c0_46, %c0_47], %233 {strides = array<i32>} : memref<1x32x128xf32, #tpu.memory_space<vmem>>, vector<1x32x128xf32>,
    return
  }
  func.func @transform_0(%arg0: i32) -> (i32, i32, i32) {
    %c0_i32 = arith.constant 0 : i32
    %c0_i32_0 = arith.constant 0 : i32
    %c0_i32_1 = arith.constant 0 : i32
    return %arg0, %c0_i32, %c0_i32_0 : i32, i32, i32
  }
  func.func @transform_1(%arg0: i32) -> (i32, i32) {
    %c0_i32 = arith.constant 0 : i32
    %c0_i32_0 = arith.constant 0 : i32
    %c0_i32_1 = arith.constant 0 : i32
    return %c0_i32, %c0_i32_0 : i32, i32
  }
  func.func @transform_2(%arg0: i32) -> (i32, i32) {
    %c0_i32 = arith.constant 0 : i32
    %c0_i32_0 = arith.constant 0 : i32
    %c0_i32_1 = arith.constant 0 : i32
    return %c0_i32, %c0_i32_0 : i32, i32
  }
  func.func @transform_3(%arg0: i32) -> (i32, i32) {
    %c0_i32 = arith.constant 0 : i32
    %c0_i32_0 = arith.constant 0 : i32
    %c0_i32_1 = arith.constant 0 : i32
    return %c0_i32, %c0_i32_0 : i32, i32
  }
  func.func @transform_4(%arg0: i32) -> (i32, i32) {
    %c0_i32 = arith.constant 0 : i32
    %c0_i32_0 = arith.constant 0 : i32
    %c0_i32_1 = arith.constant 0 : i32
    return %c0_i32, %c0_i32_0 : i32, i32
  }
  func.func @transform_5(%arg0: i32) -> (i32, i32) {
    %c0_i32 = arith.constant 0 : i32
    %c0_i32_0 = arith.constant 0 : i32
    %c0_i32_1 = arith.constant 0 : i32
    return %c0_i32, %c0_i32_0 : i32, i32
  }
  func.func @transform_6(%arg0: i32) -> (i32, i32) {
    %c0_i32 = arith.constant 0 : i32
    %c0_i32_0 = arith.constant 0 : i32
    %c0_i32_1 = arith.constant 0 : i32
    return %c0_i32, %c0_i32_0 : i32, i32
  }
  func.func @transform_7(%arg0: i32) -> (i32, i32) {
    %c0_i32 = arith.constant 0 : i32
    %c0_i32_0 = arith.constant 0 : i32
    %c0_i32_1 = arith.constant 0 : i32
    return %c0_i32, %c0_i32_0 : i32, i32
  }
  func.func @transform_8(%arg0: i32) -> (i32, i32) {
    %c0_i32 = arith.constant 0 : i32
    %c0_i32_0 = arith.constant 0 : i32
    %c0_i32_1 = arith.constant 0 : i32
    return %c0_i32, %c0_i32_0 : i32, i32
  }
  func.func @transform_9(%arg0: i32) -> (i32, i32, i32) {
    %c0_i32 = arith.constant 0 : i32
    %c0_i32_0 = arith.constant 0 : i32
    %c0_i32_1 = arith.constant 0 : i32
    return %arg0, %c0_i32, %c0_i32_0 : i32, i32, i32
  }
}

</mosaic_0001>

<llo_original>
// kernel: tpu_custom_call.1
$region0: #{tpu_custom_call.1}
  #allocation0 [shape = 'u32[]', space=smem, size = 0x4, offset = 0x4, fixed_abs, tag = 'smem constant byte address 0x4 - core index']
  #allocation1 [shape = 'u32[72,128]{1,0:T(1,128)}', space=vmem, size = 0x9000, scoped, tag = 'internal scratch']
  #allocation2 [shape = 'f32[128,32]{1,0:T(8,128)}', space=vmem, size = 0x10000, scoped, tag = 'scratch operand']
  #allocation3 [shape = 'f32[160,32]{1,0:T(8,128)}', space=vmem, size = 0x14000, scoped, tag = 'scratch operand']
  %s0 = inlined_call_operand.hbm [shape: f32[4,32,128], index: 0, kind: input, shape index: {}]
  %s1 = inlined_call_operand.hbm [shape: bf16[32,32], index: 1, kind: input, shape index: {}]
  %s2 = inlined_call_operand.vmem [shape: f32[1,32], index: 2, kind: input, shape index: {}]
  %s3 = inlined_call_operand.hbm [shape: bf16[32,32], index: 3, kind: input, shape index: {}]
  %s4 = inlined_call_operand.vmem [shape: f32[1,32], index: 4, kind: input, shape index: {}]
  %s5 = inlined_call_operand.hbm [shape: f32[32,32], index: 5, kind: input, shape index: {}]
  %s6 = inlined_call_operand.vmem [shape: f32[1,32], index: 6, kind: input, shape index: {}]
  %s7 = inlined_call_operand.hbm [shape: bf16[32,32], index: 7, kind: input, shape index: {}]
  %s8 = inlined_call_operand.vmem [shape: f32[1,32], index: 8, kind: input, shape index: {}]
  %s9 = inlined_call_operand.hbm [shape: f32[4,32,128], index: 9, kind: output, shape index: {}]
  %s10 = sld [smem:[#allocation0]]
  $region89: #{tpu_custom_call.1} parent=0
    _
  %s12 = ssub.s32 1, %s10
  %s13 = scalar_select 0, %s12, %s10
  $region1: #{tpu_custom_call.1} parent=0
    #allocation4 [shape = 'u8[32768]{0}', space=vmem, size = 0x8000, scoped, tag = 'input window, operand 0']
    #allocation5 [shape = 's32[2]{0}', space=sflag, size = 0x8, scoped, tag = 'scoped memory for tpu_custom_call.1']
    #allocation6 [shape = 's32[2]{0}', space=sflag, size = 0x8, scoped, tag = 'scoped memory for tpu_custom_call.1']
    #allocation7 [shape = 'u8[8192]{0}', space=vmem, size = 0x2000, scoped, tag = 'input window, operand 1, single buffered']
    #allocation8 [shape = 's32[1]{0}', space=sflag, size = 0x4, scoped, tag = 'scoped memory for tpu_custom_call.1']
    #allocation9 [shape = 'u8[8192]{0}', space=vmem, size = 0x2000, scoped, tag = 'input window, operand 3, single buffered']
    #allocation10 [shape = 'u8[16384]{0}', space=vmem, size = 0x4000, scoped, tag = 'input window, operand 5, single buffered']
    #allocation11 [shape = 's32[1]{0}', space=sflag, size = 0x4, scoped, tag = 'scoped memory for tpu_custom_call.1']
    #allocation12 [shape = 'u8[8192]{0}', space=vmem, size = 0x2000, scoped, tag = 'input window, operand 7, single buffered']
    #allocation13 [shape = 'u8[32768]{0}', space=vmem, size = 0x8000, scoped, tag = 'output window, operand 0']
    %14 = vsyncpa [#allocation5], 0
    %s15 = scalar_lea.sflag [#allocation5], 1
    %16 = vsyncpa %s15, 0
    %17 = vsyncpa [#allocation8], 0
    %18 = vsyncpa [#allocation11], 0
    %19 = vsyncpa [#allocation6], 0
    %s20 = scalar_lea.sflag [#allocation6], 1
    %21 = vsyncpa %s20, 0
    loop: start=0, step=1, limit=6
    $region2: #{tpu_custom_call.1} parent=1 // loop_pre_header
      _
    $region3: #{tpu_custom_call.1} parent=1 // loop_header
      %s23 = sphi 0, %s27
      %p24 = scmp.ge.s32.totalorder %s23, 6
      %s33 = sphi 0, %s35
      %s36 = sphi 0, %s33
      %s37 = sphi 0, %s36
      %s53 = sphi 0, %s37
      %s57 = sphi 0, %s57
      %s59 = sphi 0, %s57
      %s60 = sphi 0, %s59
      %s74 = sphi 0, %s60
      %s78 = sphi 0, %s78
      %s80 = sphi 0, %s78
      %s81 = sphi 0, %s80
      %s95 = sphi 0, %s81
      %s99 = sphi 0, %s99
      %s101 = sphi 0, %s99
      %s102 = sphi 0, %s101
      %s116 = sphi 0, %s102
      %s120 = sphi 0, %s120
      %s122 = sphi 0, %s120
      %s123 = sphi 0, %s122
      %s137 = sphi 0, %s123
      %s141 = sphi 0, %s141
      %s143 = sphi 0, %s141
      %s144 = sphi 0, %s143
      %s158 = sphi 0, %s144
      %s162 = sphi 0, %s162
      %s164 = sphi 0, %s162
      %s165 = sphi 0, %s164
      %s179 = sphi 0, %s165
      %s183 = sphi 0, %s183
      %s185 = sphi 0, %s183
      %s186 = sphi 0, %s185
      %s200 = sphi 0, %s186
      %s204 = sphi 0, %s204
      %s206 = sphi 0, %s204
      %s207 = sphi 0, %s206
      %s221 = sphi 0, %s207
      %s227 = sphi 0, %s229
      %s230 = sphi 0, %s227
      %s231 = sphi 0, %s230
      %s247 = sphi 0, %s231
    $region4: #{tpu_custom_call.1} parent=1 // loop_header_branch
      %26 = sbr.rel (%p24) target = $region8
    $region5: #{tpu_custom_call.1} parent=1 // loop_body
      %s28 = ssub.s32 %s23, 1
      %s29 = ssub.s32 %s23, 2
      %s30 = sadd.s32 %s23, 1
      %s31 = ssub.s32 %s23, %s30
      %p32 = scmp.eq.s32.totalorder %s31, 0
      %s34 = sadd.s32 %s33, 1
      %s35 = scalar_select %p32, %s33, %s34
      %p38 = pneg %p32
      %p39 = scmp.eq.s32.totalorder %s23, 3
      %p40 = por %p38, %p39
      %p41 = scmp.ne.s32.totalorder %s33, %s36
      %p42 = scmp.eq.s32.totalorder %s23, 0
      %p43 = por %p41, %p42
      %p44 = scmp.ne.s32.totalorder %s33, %s36
      %p45 = scmp.eq.s32.totalorder %s28, 3
      %p46 = por %p44, %p45
      %p47 = scmp.ne.s32.totalorder %s36, %s37
      %p48 = scmp.eq.s32.totalorder %s28, 0
      %p49 = por %p47, %p48
      %p50 = scmp.ne.s32.totalorder %s36, %s37
      %p51 = scmp.eq.s32.totalorder %s29, 3
      %p52 = por %p50, %p51
      %p54 = scmp.ne.s32.totalorder %s37, %s53
      %p55 = scmp.eq.s32.totalorder %s29, 0
      %p56 = por %p54, %p55
      %s58 = sadd.s32 %s57, 1
      %p61 = scmp.eq.s32.totalorder %s23, 3
      %p62 = scmp.ne.s32.totalorder %s57, %s59
      %p63 = scmp.eq.s32.totalorder %s23, 0
      %p64 = por %p62, %p63
      %p65 = scmp.ne.s32.totalorder %s57, %s59
      %p66 = scmp.eq.s32.totalorder %s28, 3
      %p67 = por %p65, %p66
      %p68 = scmp.ne.s32.totalorder %s59, %s60
      %p69 = scmp.eq.s32.totalorder %s28, 0
      %p70 = por %p68, %p69
      %p71 = scmp.ne.s32.totalorder %s59, %s60
      %p72 = scmp.eq.s32.totalorder %s29, 3
      %p73 = por %p71, %p72
      %p75 = scmp.ne.s32.totalorder %s60, %s74
      %p76 = scmp.eq.s32.totalorder %s29, 0
      %p77 = por %p75, %p76
      %s79 = sadd.s32 %s78, 1
      %p82 = scmp.eq.s32.totalorder %s23, 3
      %p83 = scmp.ne.s32.totalorder %s78, %s80
      %p84 = scmp.eq.s32.totalorder %s23, 0
      %p85 = por %p83, %p84
      %p86 = scmp.ne.s32.totalorder %s78, %s80
      %p87 = scmp.eq.s32.totalorder %s28, 3
      %p88 = por %p86, %p87
      %p89 = scmp.ne.s32.totalorder %s80, %s81
      %p90 = scmp.eq.s32.totalorder %s28, 0
      %p91 = por %p89, %p90
      %p92 = scmp.ne.s32.totalorder %s80, %s81
      %p93 = scmp.eq.s32.totalorder %s29, 3
      %p94 = por %p92, %p93
      %p96 = scmp.ne.s32.totalorder %s81, %s95
      %p97 = scmp.eq.s32.totalorder %s29, 0
      %p98 = por %p96, %p97
      %s100 = sadd.s32 %s99, 1
      %p103 = scmp.eq.s32.totalorder %s23, 3
      %p104 = scmp.ne.s32.totalorder %s99, %s101
      %p105 = scmp.eq.s32.totalorder %s23, 0
      %p106 = por %p104, %p105
      %p107 = scmp.ne.s32.totalorder %s99, %s101
      %p108 = scmp.eq.s32.totalorder %s28, 3
      %p109 = por %p107, %p108
      %p110 = scmp.ne.s32.totalorder %s101, %s102
      %p111 = scmp.eq.s32.totalorder %s28, 0
      %p112 = por %p110, %p111
      %p113 = scmp.ne.s32.totalorder %s101, %s102
      %p114 = scmp.eq.s32.totalorder %s29, 3
      %p115 = por %p113, %p114
      %p117 = scmp.ne.s32.totalorder %s102, %s116
      %p118 = scmp.eq.s32.totalorder %s29, 0
      %p119 = por %p117, %p118
      %s121 = sadd.s32 %s120, 1
      %p124 = scmp.eq.s32.totalorder %s23, 3
      %p125 = scmp.ne.s32.totalorder %s120, %s122
      %p126 = scmp.eq.s32.totalorder %s23, 0
      %p127 = por %p125, %p126
      %p128 = scmp.ne.s32.totalorder %s120, %s122
      %p129 = scmp.eq.s32.totalorder %s28, 3
      %p130 = por %p128, %p129
      %p131 = scmp.ne.s32.totalorder %s122, %s123
      %p132 = scmp.eq.s32.totalorder %s28, 0
      %p133 = por %p131, %p132
      %p134 = scmp.ne.s32.totalorder %s122, %s123
      %p135 = scmp.eq.s32.totalorder %s29, 3
      %p136 = por %p134, %p135
      %p138 = scmp.ne.s32.totalorder %s123, %s137
      %p139 = scmp.eq.s32.totalorder %s29, 0
      %p140 = por %p138, %p139
      %s142 = sadd.s32 %s141, 1
      %p145 = scmp.eq.s32.totalorder %s23, 3
      %p146 = scmp.ne.s32.totalorder %s141, %s143
      %p147 = scmp.eq.s32.totalorder %s23, 0
      %p148 = por %p146, %p147
      %p149 = scmp.ne.s32.totalorder %s141, %s143
      %p150 = scmp.eq.s32.totalorder %s28, 3
      %p151 = por %p149, %p150
      %p152 = scmp.ne.s32.totalorder %s143, %s144
      %p153 = scmp.eq.s32.totalorder %s28, 0
      %p154 = por %p152, %p153
      %p155 = scmp.ne.s32.totalorder %s143, %s144
      %p156 = scmp.eq.s32.totalorder %s29, 3
      %p157 = por %p155, %p156
      %p159 = scmp.ne.s32.totalorder %s144, %s158
      %p160 = scmp.eq.s32.totalorder %s29, 0
      %p161 = por %p159, %p160
      %s163 = sadd.s32 %s162, 1
      %p166 = scmp.eq.s32.totalorder %s23, 3
      %p167 = scmp.ne.s32.totalorder %s162, %s164
      %p168 = scmp.eq.s32.totalorder %s23, 0
      %p169 = por %p167, %p168
      %p170 = scmp.ne.s32.totalorder %s162, %s164
      %p171 = scmp.eq.s32.totalorder %s28, 3
      %p172 = por %p170, %p171
      %p173 = scmp.ne.s32.totalorder %s164, %s165
      %p174 = scmp.eq.s32.totalorder %s28, 0
      %p175 = por %p173, %p174
      %p176 = scmp.ne.s32.totalorder %s164, %s165
      %p177 = scmp.eq.s32.totalorder %s29, 3
      %p178 = por %p176, %p177
      %p180 = scmp.ne.s32.totalorder %s165, %s179
      %p181 = scmp.eq.s32.totalorder %s29, 0
      %p182 = por %p180, %p181
      %s184 = sadd.s32 %s183, 1
      %p187 = scmp.eq.s32.totalorder %s23, 3
      %p188 = scmp.ne.s32.totalorder %s183, %s185
      %p189 = scmp.eq.s32.totalorder %s23, 0
      %p190 = por %p188, %p189
      %p191 = scmp.ne.s32.totalorder %s183, %s185
      %p192 = scmp.eq.s32.totalorder %s28, 3
      %p193 = por %p191, %p192
      %p194 = scmp.ne.s32.totalorder %s185, %s186
      %p195 = scmp.eq.s32.totalorder %s28, 0
      %p196 = por %p194, %p195
      %p197 = scmp.ne.s32.totalorder %s185, %s186
      %p198 = scmp.eq.s32.totalorder %s29, 3
      %p199 = por %p197, %p198
      %p201 = scmp.ne.s32.totalorder %s186, %s200
      %p202 = scmp.eq.s32.totalorder %s29, 0
      %p203 = por %p201, %p202
      %s205 = sadd.s32 %s204, 1
      %p208 = scmp.eq.s32.totalorder %s23, 3
      %p209 = scmp.ne.s32.totalorder %s204, %s206
      %p210 = scmp.eq.s32.totalorder %s23, 0
      %p211 = por %p209, %p210
      %p212 = scmp.ne.s32.totalorder %s204, %s206
      %p213 = scmp.eq.s32.totalorder %s28, 3
      %p214 = por %p212, %p213
      %p215 = scmp.ne.s32.totalorder %s206, %s207
      %p216 = scmp.eq.s32.totalorder %s28, 0
      %p217 = por %p215, %p216
      %p218 = scmp.ne.s32.totalorder %s206, %s207
      %p219 = scmp.eq.s32.totalorder %s29, 3
      %p220 = por %p218, %p219
      %p222 = scmp.ne.s32.totalorder %s207, %s221
      %p223 = scmp.eq.s32.totalorder %s29, 0
      %p224 = por %p222, %p223
      %s225 = ssub.s32 %s23, %s30
      %p226 = scmp.eq.s32.totalorder %s225, 0
      %s228 = sadd.s32 %s227, 1
      %s229 = scalar_select %p226, %s227, %s228
      %p232 = pneg %p226
      %p233 = scmp.eq.s32.totalorder %s23, 3
      %p234 = por %p232, %p233
      %p235 = scmp.ne.s32.totalorder %s227, %s230
      %p236 = scmp.eq.s32.totalorder %s23, 0
      %p237 = por %p235, %p236
      %p238 = scmp.ne.s32.totalorder %s227, %s230
      %p239 = scmp.eq.s32.totalorder %s28, 3
      %p240 = por %p238, %p239
      %p241 = scmp.ne.s32.totalorder %s230, %s231
      %p242 = scmp.eq.s32.totalorder %s28, 0
      %p243 = por %p241, %p242
      %p244 = scmp.ne.s32.totalorder %s230, %s231
      %p245 = scmp.eq.s32.totalorder %s29, 3
      %p246 = por %p244, %p245
      %p248 = scmp.ne.s32.totalorder %s231, %s247
      %p249 = scmp.eq.s32.totalorder %s29, 0
      %p250 = por %p248, %p249
      %p251 = scmp.le.s32.totalorder 1, %s23
      %p252 = scmp.lt.s32.totalorder %s23, 5
      %p253 = pnand %p251, %p252
      %p254 = pneg %p253
      // Predicated region
      $region9: #{tpu_custom_call.1} parent=5 // pred_check
        _
      $region10: #{tpu_custom_call.1} parent=5 // pred_check_branch
        %256 = sbr.rel (%p253) target = $region12
      $region11: #{tpu_custom_call.1} parent=5 // pred_region
        %s257 = ssub.s32 %s23, 1
        // Predicated region
        $region13: #{tpu_custom_call.1} parent=11 // pred_check
          %p258 = pneg %p70
        $region14: #{tpu_custom_call.1} parent=11 // pred_check_branch
          %260 = sbr.rel (%p258) target = $region16
        $region15: #{tpu_custom_call.1} parent=11 // pred_region
          %262 = vsyncadd [#allocation8], 0
          %s263 = sshll.u32 %s1, 4
          %s264 = int_to_ptr.hbm [resolvable:$true] %s263
          %s265 = sshll.u32 [#allocation7], 4
          %s266 = int_to_ptr.vmem [resolvable:$true] %s265
          %271 = dma.hbm_to_vmem [thread:$0]  %s264, 256, %s266, [#allocation8], 64, 64, 4
        $region16: #{tpu_custom_call.1} parent=11 // pred_fallthru
          _
        // Predicated region
        $region17: #{tpu_custom_call.1} parent=11 // pred_check
          %p272 = pneg %p91
        $region18: #{tpu_custom_call.1} parent=11 // pred_check_branch
          %274 = sbr.rel (%p272) target = $region20
        $region19: #{tpu_custom_call.1} parent=11 // pred_region
          _
        $region20: #{tpu_custom_call.1} parent=11 // pred_fallthru
          _
        // Predicated region
        $region21: #{tpu_custom_call.1} parent=11 // pred_check
          %p275 = pneg %p112
        $region22: #{tpu_custom_call.1} parent=11 // pred_check_branch
          %277 = sbr.rel (%p275) target = $region24
        $region23: #{tpu_custom_call.1} parent=11 // pred_region
          %279 = vsyncadd [#allocation8], 0
          %s280 = sshll.u32 %s3, 4
          %s281 = int_to_ptr.hbm [resolvable:$true] %s280
          %s282 = sshll.u32 [#allocation9], 4
          %s283 = int_to_ptr.vmem [resolvable:$true] %s282
          %288 = dma.hbm_to_vmem [thread:$0]  %s281, 256, %s283, [#allocation8], 64, 64, 4
        $region24: #{tpu_custom_call.1} parent=11 // pred_fallthru
          _
        // Predicated region
        $region25: #{tpu_custom_call.1} parent=11 // pred_check
          %p289 = pneg %p133
        $region26: #{tpu_custom_call.1} parent=11 // pred_check_branch
          %291 = sbr.rel (%p289) target = $region28
        $region27: #{tpu_custom_call.1} parent=11 // pred_region
          _
        $region28: #{tpu_custom_call.1} parent=11 // pred_fallthru
          _
        // Predicated region
        $region29: #{tpu_custom_call.1} parent=11 // pred_check
          %p292 = pneg %p154
        $region30: #{tpu_custom_call.1} parent=11 // pred_check_branch
          %294 = sbr.rel (%p292) target = $region32
        $region31: #{tpu_custom_call.1} parent=11 // pred_region
          %296 = vsyncadd [#allocation11], 0
          %s297 = sshll.u32 %s5, 4
          %s298 = int_to_ptr.hbm [resolvable:$true] %s297
          %s299 = sshll.u32 [#allocation10], 4
          %s300 = int_to_ptr.vmem [resolvable:$true] %s299
          %305 = dma.hbm_to_vmem [thread:$0]  %s298, 512, %s300, [#allocation11], 128, 128, 8
        $region32: #{tpu_custom_call.1} parent=11 // pred_fallthru
          _
        // Predicated region
        $region33: #{tpu_custom_call.1} parent=11 // pred_check
          %p306 = pneg %p175
        $region34: #{tpu_custom_call.1} parent=11 // pred_check_branch
          %308 = sbr.rel (%p306) target = $region36
        $region35: #{tpu_custom_call.1} parent=11 // pred_region
          _
        $region36: #{tpu_custom_call.1} parent=11 // pred_fallthru
          _
        // Predicated region
        $region37: #{tpu_custom_call.1} parent=11 // pred_check
          %p309 = pneg %p196
        $region38: #{tpu_custom_call.1} parent=11 // pred_check_branch
          %311 = sbr.rel (%p309) target = $region40
        $region39: #{tpu_custom_call.1} parent=11 // pred_region
          %313 = vsyncadd [#allocation11], 0
          %s314 = sshll.u32 %s7, 4
          %s315 = int_to_ptr.hbm [resolvable:$true] %s314
          %s316 = sshll.u32 [#allocation12], 4
          %s317 = int_to_ptr.vmem [resolvable:$true] %s316
          %322 = dma.hbm_to_vmem [thread:$0]  %s315, 256, %s317, [#allocation11], 64, 64, 4
        $region40: #{tpu_custom_call.1} parent=11 // pred_fallthru
          _
        // Predicated region
        $region41: #{tpu_custom_call.1} parent=11 // pred_check
          %p323 = pneg %p217
        $region42: #{tpu_custom_call.1} parent=11 // pred_check_branch
          %325 = sbr.rel (%p323) target = $region44
        $region43: #{tpu_custom_call.1} parent=11 // pred_region
          _
        $region44: #{tpu_custom_call.1} parent=11 // pred_fallthru
          _
      $region12: #{tpu_custom_call.1} parent=5 // pred_fallthru
        _
      %p326 = scmp.lt.s32.totalorder %s23, 4
      // Predicated region
      $region45: #{tpu_custom_call.1} parent=5 // pred_check
        %p327 = pneg %p326
      $region46: #{tpu_custom_call.1} parent=5 // pred_check_branch
        %329 = sbr.rel (%p327) target = $region48
      $region47: #{tpu_custom_call.1} parent=5 // pred_region
        // Predicated region
        $region49: #{tpu_custom_call.1} parent=47 // pred_check
          %p330 = pneg %p43
        $region50: #{tpu_custom_call.1} parent=47 // pred_check_branch
          %332 = sbr.rel (%p330) target = $region52
        $region51: #{tpu_custom_call.1} parent=47 // pred_region
          %s333 = sand.u32 %s33, 1
          %s334 = scalar_lea.sflag [#allocation5], %s333
          %s335 = sand.u32 %s33, 1
          %s336 = smul.addr %s335, 32
          %s337 = scalar_lea.vmem [#allocation4], %s336
          %339 = vsyncadd %s334, 0
          %s340 = smul.addr %s23, 4
          %s341 = smul.addr %s340, 8
          %s342 = scalar_lea.hbm %s0, %s341
          %s343 = sshll.u32 %s342, 4
          %s344 = int_to_ptr.hbm [resolvable:$true] %s343
          %s345 = sshll.u32 %s337, 4
          %s346 = int_to_ptr.vmem [resolvable:$true] %s345
          %351 = dma.hbm_to_vmem [thread:$0]  %s344, 512, %s346, %s334, 128, 128, 8
        $region52: #{tpu_custom_call.1} parent=47 // pred_fallthru
          _
      $region48: #{tpu_custom_call.1} parent=5 // pred_fallthru
        _
      %p352 = scmp.le.s32.totalorder 1, %s23
      %p353 = scmp.lt.s32.totalorder %s23, 5
      %p354 = pnand %p352, %p353
      %p355 = pneg %p354
      // Predicated region
      $region53: #{tpu_custom_call.1} parent=5 // pred_check
        _
      $region54: #{tpu_custom_call.1} parent=5 // pred_check_branch
        %357 = sbr.rel (%p354) target = $region56
      $region55: #{tpu_custom_call.1} parent=5 // pred_region
        %s358 = ssub.s32 %s23, 1
        %s359 = sand.u32 %s36, 1
        %s360 = scalar_lea.sflag [#allocation5], %s359
        %s361 = sand.u32 %s36, 1
        %s362 = smul.addr %s361, 32
        %s363 = scalar_lea.vmem [#allocation4], %s362
        // Predicated region
        $region57: #{tpu_custom_call.1} parent=55 // pred_check
          %p364 = pneg %p49
        $region58: #{tpu_custom_call.1} parent=55 // pred_check_branch
          %366 = sbr.rel (%p364) target = $region60
        $region59: #{tpu_custom_call.1} parent=55 // pred_region
          %368 = dma.done %s360, 512
        $region60: #{tpu_custom_call.1} parent=55 // pred_fallthru
          _
        // Predicated region
        $region61: #{tpu_custom_call.1} parent=55 // pred_check
          %p369 = pneg %p70
        $region62: #{tpu_custom_call.1} parent=55 // pred_check_branch
          %371 = sbr.rel (%p369) target = $region64
        $region63: #{tpu_custom_call.1} parent=55 // pred_region
          %373 = dma.done [#allocation8], 256
        $region64: #{tpu_custom_call.1} parent=55 // pred_fallthru
          _
        // Predicated region
        $region65: #{tpu_custom_call.1} parent=55 // pred_check
          %p374 = pneg %p112
        $region66: #{tpu_custom_call.1} parent=55 // pred_check_branch
          %376 = sbr.rel (%p374) target = $region68
        $region67: #{tpu_custom_call.1} parent=55 // pred_region
          %378 = dma.done [#allocation8], 256
        $region68: #{tpu_custom_call.1} parent=55 // pred_fallthru
          _
        // Predicated region
        $region69: #{tpu_custom_call.1} parent=55 // pred_check
          %p379 = pneg %p154
        $region70: #{tpu_custom_call.1} parent=55 // pred_check_branch
          %381 = sbr.rel (%p379) target = $region72
        $region71: #{tpu_custom_call.1} parent=55 // pred_region
          %383 = dma.done [#allocation11], 512
        $region72: #{tpu_custom_call.1} parent=55 // pred_fallthru
          _
        // Predicated region
        $region73: #{tpu_custom_call.1} parent=55 // pred_check
          %p384 = pneg %p196
        $region74: #{tpu_custom_call.1} parent=55 // pred_check_branch
          %386 = sbr.rel (%p384) target = $region76
        $region75: #{tpu_custom_call.1} parent=55 // pred_region
          %388 = dma.done [#allocation11], 256
        $region76: #{tpu_custom_call.1} parent=55 // pred_fallthru
          _
        %s389 = sand.u32 %s36, 1
        %s390 = scalar_lea.sflag [#allocation5], %s389
        %s391 = sand.u32 %s36, 1
        %s392 = smul.addr %s391, 32
        %s393 = scalar_lea.vmem [#allocation4], %s392
        %p394 = pneg %p49
        %p395 = pneg %p46
        %p396 = pneg %p70
        %p397 = pneg %p67
        %p398 = pneg %p91
        %p399 = pneg %p88
        %p400 = pneg %p112
        %p401 = pneg %p109
        %p402 = pneg %p133
        %p403 = pneg %p130
        %p404 = pneg %p154
        %p405 = pneg %p151
        %p406 = pneg %p175
        %p407 = pneg %p172
        %p408 = pneg %p196
        %p409 = pneg %p193
        %p410 = pneg %p217
        %p411 = pneg %p214
        %p412 = pneg %p243
        %p413 = pneg %p240
        %s414 = sand.u32 %s230, 1
        %s415 = scalar_lea.sflag [#allocation6], %s414
        %s416 = sand.u32 %s230, 1
        %s417 = smul.addr %s416, 32
        %s418 = scalar_lea.vmem [#allocation13], %s417
        %v420 = vld [vmem:[%s363] sm:$0xff]
        %v421 = vld [vmem:[%s363 + $0x8] sm:$0xff]
        %v422 = vld [vmem:[%s363 + $0x10] sm:$0xff]
        %v423 = vld [vmem:[%s363 + $0x18] sm:$0xff]
        %424 = vxpose.xlu0.b32.start [1/16] %v420, 128
        %425 = vxpose.xlu0.b32.cont [2/16] %v421, 128
        %426 = vxpose.xlu0.b32.cont [3/16] %v422, 128
        %427 = vxpose.xlu0.b32.cont [4/16] %v423, 128
        %428 = vxpose.xlu0.b32.cont [5/16] 0.0, 128
        %429 = vxpose.xlu0.b32.cont [6/16] 0.0, 128
        %430 = vxpose.xlu0.b32.cont [7/16] 0.0, 128
        %431 = vxpose.xlu0.b32.cont [8/16] 0.0, 128
        %432 = vxpose.xlu0.b32.cont [9/16] 0.0, 128
        %433 = vxpose.xlu0.b32.cont [10/16] 0.0, 128
        %434 = vxpose.xlu0.b32.cont [11/16] 0.0, 128
        %435 = vxpose.xlu0.b32.cont [12/16] 0.0, 128
        %436 = vxpose.xlu0.b32.cont [13/16] 0.0, 128
        %437 = vxpose.xlu0.b32.cont [14/16] 0.0, 128
        %438 = vxpose.xlu0.b32.cont [15/16] 0.0, 128
        %439 = vxpose.xlu0.b32.end [16/16] 0.0, 128
        %v440 = vpop.trf.xlu0
        %v441 = vpop.trf.xlu0
        %v442 = vpop.trf.xlu0
        %v443 = vpop.trf.xlu0
        %v444 = vpop.trf.xlu0
        %v445 = vpop.trf.xlu0
        %v446 = vpop.trf.xlu0
        %v447 = vpop.trf.xlu0
        %v448 = vpop.trf.xlu0
        %v449 = vpop.trf.xlu0
        %v450 = vpop.trf.xlu0
        %v451 = vpop.trf.xlu0
        %v452 = vpop.trf.xlu0
        %v453 = vpop.trf.xlu0
        %v454 = vpop.trf.xlu0
        %v455 = vpop.trf.xlu0
        %vm456 = vcmask 261120
        %457 = vst.msk [vmem:[#allocation2] sm:$0xff] %vm456, %v440
        %458 = vst.msk [vmem:[#allocation2 + $0x8] sm:$0xff] %vm456, %v441
        %459 = vst.msk [vmem:[#allocation2 + $0x10] sm:$0xff] %vm456, %v442
        %460 = vst.msk [vmem:[#allocation2 + $0x18] sm:$0xff] %vm456, %v443
        %461 = vst.msk [vmem:[#allocation2 + $0x20] sm:$0xff] %vm456, %v444
        %462 = vst.msk [vmem:[#allocation2 + $0x28] sm:$0xff] %vm456, %v445
        %463 = vst.msk [vmem:[#allocation2 + $0x30] sm:$0xff] %vm456, %v446
        %464 = vst.msk [vmem:[#allocation2 + $0x38] sm:$0xff] %vm456, %v447
        %465 = vst.msk [vmem:[#allocation2 + $0x40] sm:$0xff] %vm456, %v448
        %466 = vst.msk [vmem:[#allocation2 + $0x48] sm:$0xff] %vm456, %v449
        %467 = vst.msk [vmem:[#allocation2 + $0x50] sm:$0xff] %vm456, %v450
        %468 = vst.msk [vmem:[#allocation2 + $0x58] sm:$0xff] %vm456, %v451
        %469 = vst.msk [vmem:[#allocation2 + $0x60] sm:$0xff] %vm456, %v452
        %470 = vst.msk [vmem:[#allocation2 + $0x68] sm:$0xff] %vm456, %v453
        %471 = vst.msk [vmem:[#allocation2 + $0x70] sm:$0xff] %vm456, %v454
        %472 = vst.msk [vmem:[#allocation2 + $0x78] sm:$0xff] %vm456, %v455
        %v473 = vld [vmem:[#allocation2] sm:$0xff]
        %v474 = vld [vmem:[#allocation2 + $0x8] sm:$0xff]
        %v475 = vld [vmem:[#allocation2 + $0x10] sm:$0xff]
        %v476 = vld [vmem:[#allocation2 + $0x18] sm:$0xff]
        %v477 = vld [vmem:[#allocation2 + $0x20] sm:$0xff]
        %v478 = vld [vmem:[#allocation2 + $0x28] sm:$0xff]
        %v479 = vld [vmem:[#allocation2 + $0x30] sm:$0xff]
        %v480 = vld [vmem:[#allocation2 + $0x38] sm:$0xff]
        %v481 = vld [vmem:[#allocation2 + $0x40] sm:$0xff]
        %v482 = vld [vmem:[#allocation2 + $0x48] sm:$0xff]
        %v483 = vld [vmem:[#allocation2 + $0x50] sm:$0xff]
        %v484 = vld [vmem:[#allocation2 + $0x58] sm:$0xff]
        %v485 = vld [vmem:[#allocation2 + $0x60] sm:$0xff]
        %v486 = vld [vmem:[#allocation2 + $0x68] sm:$0xff]
        %v487 = vld [vmem:[#allocation2 + $0x70] sm:$0xff]
        %v488 = vld [vmem:[#allocation2 + $0x78] sm:$0xff]
        %v489 = vsel %vm456, %v473, 0.0
        %490 = vadd.xlane.f32.xlu0 %v489
        %v491 = vpop.xlane.xlu0 %490
        %v492 = vsel %vm456, %v474, 0.0
        %493 = vadd.xlane.f32.xlu0 %v492
        %v494 = vpop.xlane.xlu0 %493
        %v495 = vsel %vm456, %v475, 0.0
        %496 = vadd.xlane.f32.xlu0 %v495
        %v497 = vpop.xlane.xlu0 %496
        %v498 = vsel %vm456, %v476, 0.0
        %499 = vadd.xlane.f32.xlu0 %v498
        %v500 = vpop.xlane.xlu0 %499
        %v501 = vsel %vm456, %v477, 0.0
        %502 = vadd.xlane.f32.xlu0 %v501
        %v503 = vpop.xlane.xlu0 %502
        %v504 = vsel %vm456, %v478, 0.0
        %505 = vadd.xlane.f32.xlu0 %v504
        %v506 = vpop.xlane.xlu0 %505
        %v507 = vsel %vm456, %v479, 0.0
        %508 = vadd.xlane.f32.xlu0 %v507
        %v509 = vpop.xlane.xlu0 %508
        %v510 = vsel %vm456, %v480, 0.0
        %511 = vadd.xlane.f32.xlu0 %v510
        %v512 = vpop.xlane.xlu0 %511
        %v513 = vsel %vm456, %v481, 0.0
        %514 = vadd.xlane.f32.xlu0 %v513
        %v515 = vpop.xlane.xlu0 %514
        %v516 = vsel %vm456, %v482, 0.0
        %517 = vadd.xlane.f32.xlu0 %v516
        %v518 = vpop.xlane.xlu0 %517
        %v519 = vsel %vm456, %v483, 0.0
        %520 = vadd.xlane.f32.xlu0 %v519
        %v521 = vpop.xlane.xlu0 %520
        %v522 = vsel %vm456, %v484, 0.0
        %523 = vadd.xlane.f32.xlu0 %v522
        %v524 = vpop.xlane.xlu0 %523
        %v525 = vsel %vm456, %v485, 0.0
        %526 = vadd.xlane.f32.xlu0 %v525
        %v527 = vpop.xlane.xlu0 %526
        %v528 = vsel %vm456, %v486, 0.0
        %529 = vadd.xlane.f32.xlu0 %v528
        %v530 = vpop.xlane.xlu0 %529
        %v531 = vsel %vm456, %v487, 0.0
        %532 = vadd.xlane.f32.xlu0 %v531
        %v533 = vpop.xlane.xlu0 %532
        %v534 = vsel %vm456, %v488, 0.0
        %535 = vadd.xlane.f32.xlu0 %v534
        %v536 = vpop.xlane.xlu0 %535
        %v537 = vrcp.pop 32.0
        %v538 = vmul.f32 32.0, %v537
        %v539 = vsub.f32 1.0, %v538
        %v540 = vmul.f32 %v537, %v539
        %v541 = vadd.f32 %v537, %v540
        %vm542 = vweird.f32 %v537
        %v543 = vsel %vm542, %v537, %v541
        %v544 = vmul.f32 %v491, %v543
        %v545 = vmul.f32 %v494, %v543
        %v546 = vmul.f32 %v497, %v543
        %v547 = vmul.f32 %v500, %v543
        %v548 = vmul.f32 %v503, %v543
        %v549 = vmul.f32 %v506, %v543
        %v550 = vmul.f32 %v509, %v543
        %v551 = vmul.f32 %v512, %v543
        %v552 = vmul.f32 %v515, %v543
        %v553 = vmul.f32 %v518, %v543
        %v554 = vmul.f32 %v521, %v543
        %v555 = vmul.f32 %v524, %v543
        %v556 = vmul.f32 %v527, %v543
        %v557 = vmul.f32 %v530, %v543
        %v558 = vmul.f32 %v533, %v543
        %v559 = vmul.f32 %v536, %v543
        %v560 = vmul.f32 %v473, %v473
        %v561 = vmul.f32 %v474, %v474
        %v562 = vmul.f32 %v475, %v475
        %v563 = vmul.f32 %v476, %v476
        %v564 = vmul.f32 %v477, %v477
        %v565 = vmul.f32 %v478, %v478
        %v566 = vmul.f32 %v479, %v479
        %v567 = vmul.f32 %v480, %v480
        %v568 = vmul.f32 %v481, %v481
        %v569 = vmul.f32 %v482, %v482
        %v570 = vmul.f32 %v483, %v483
        %v571 = vmul.f32 %v484, %v484
        %v572 = vmul.f32 %v485, %v485
        %v573 = vmul.f32 %v486, %v486
        %v574 = vmul.f32 %v487, %v487
        %v575 = vmul.f32 %v488, %v488
        %v576 = vsel %vm456, %v560, 0.0
        %577 = vadd.xlane.f32.xlu0 %v576
        %v578 = vpop.xlane.xlu0 %577
        %v579 = vsel %vm456, %v561, 0.0
        %580 = vadd.xlane.f32.xlu0 %v579
        %v581 = vpop.xlane.xlu0 %580
        %v582 = vsel %vm456, %v562, 0.0
        %583 = vadd.xlane.f32.xlu0 %v582
        %v584 = vpop.xlane.xlu0 %583
        %v585 = vsel %vm456, %v563, 0.0
        %586 = vadd.xlane.f32.xlu0 %v585
        %v587 = vpop.xlane.xlu0 %586
        %v588 = vsel %vm456, %v564, 0.0
        %589 = vadd.xlane.f32.xlu0 %v588
        %v590 = vpop.xlane.xlu0 %589
        %v591 = vsel %vm456, %v565, 0.0
        %592 = vadd.xlane.f32.xlu0 %v591
        %v593 = vpop.xlane.xlu0 %592
        %v594 = vsel %vm456, %v566, 0.0
        %595 = vadd.xlane.f32.xlu0 %v594
        %v596 = vpop.xlane.xlu0 %595
        %v597 = vsel %vm456, %v567, 0.0
        %598 = vadd.xlane.f32.xlu0 %v597
        %v599 = vpop.xlane.xlu0 %598
        %v600 = vsel %vm456, %v568, 0.0
        %601 = vadd.xlane.f32.xlu0 %v600
        %v602 = vpop.xlane.xlu0 %601
        %v603 = vsel %vm456, %v569, 0.0
        %604 = vadd.xlane.f32.xlu0 %v603
        %v605 = vpop.xlane.xlu0 %604
        %v606 = vsel %vm456, %v570, 0.0
        %607 = vadd.xlane.f32.xlu0 %v606
        %v608 = vpop.xlane.xlu0 %607
        %v609 = vsel %vm456, %v571, 0.0
        %610 = vadd.xlane.f32.xlu0 %v609
        %v611 = vpop.xlane.xlu0 %610
        %v612 = vsel %vm456, %v572, 0.0
        %613 = vadd.xlane.f32.xlu0 %v612
        %v614 = vpop.xlane.xlu0 %613
        %v615 = vsel %vm456, %v573, 0.0
        %616 = vadd.xlane.f32.xlu0 %v615
        %v617 = vpop.xlane.xlu0 %616
        %v618 = vsel %vm456, %v574, 0.0
        %619 = vadd.xlane.f32.xlu0 %v618
        %v620 = vpop.xlane.xlu0 %619
        %v621 = vsel %vm456, %v575, 0.0
        %622 = vadd.xlane.f32.xlu0 %v621
        %v623 = vpop.xlane.xlu0 %622
        %v624 = vmul.f32 %v578, %v543
        %v625 = vmul.f32 %v581, %v543
        %v626 = vmul.f32 %v584, %v543
        %v627 = vmul.f32 %v587, %v543
        %v628 = vmul.f32 %v590, %v543
        %v629 = vmul.f32 %v593, %v543
        %v630 = vmul.f32 %v596, %v543
        %v631 = vmul.f32 %v599, %v543
        %v632 = vmul.f32 %v602, %v543
        %v633 = vmul.f32 %v605, %v543
        %v634 = vmul.f32 %v608, %v543
        %v635 = vmul.f32 %v611, %v543
        %v636 = vmul.f32 %v614, %v543
        %v637 = vmul.f32 %v617, %v543
        %v638 = vmul.f32 %v620, %v543
        %v639 = vmul.f32 %v623, %v543
        %v640 = vsub.f32 %v473, %v544
        %v641 = vsub.f32 %v474, %v545
        %v642 = vsub.f32 %v475, %v546
        %v643 = vsub.f32 %v476, %v547
        %v644 = vsub.f32 %v477, %v548
        %v645 = vsub.f32 %v478, %v549
        %v646 = vsub.f32 %v479, %v550
        %v647 = vsub.f32 %v480, %v551
        %v648 = vsub.f32 %v481, %v552
        %v649 = vsub.f32 %v482, %v553
        %v650 = vsub.f32 %v483, %v554
        %v651 = vsub.f32 %v484, %v555
        %v652 = vsub.f32 %v485, %v556
        %v653 = vsub.f32 %v486, %v557
        %v654 = vsub.f32 %v487, %v558
        %v655 = vsub.f32 %v488, %v559
        %v656 = vmul.f32 %v544, %v544
        %v657 = vmul.f32 %v545, %v545
        %v658 = vmul.f32 %v546, %v546
        %v659 = vmul.f32 %v547, %v547
        %v660 = vmul.f32 %v548, %v548
        %v661 = vmul.f32 %v549, %v549
        %v662 = vmul.f32 %v550, %v550
        %v663 = vmul.f32 %v551, %v551
        %v664 = vmul.f32 %v552, %v552
        %v665 = vmul.f32 %v553, %v553
        %v666 = vmul.f32 %v554, %v554
        %v667 = vmul.f32 %v555, %v555
        %v668 = vmul.f32 %v556, %v556
        %v669 = vmul.f32 %v557, %v557
        %v670 = vmul.f32 %v558, %v558
        %v671 = vmul.f32 %v559, %v559
        %v672 = vsub.f32 %v624, %v656
        %v673 = vsub.f32 %v625, %v657
        %v674 = vsub.f32 %v626, %v658
        %v675 = vsub.f32 %v627, %v659
        %v676 = vsub.f32 %v628, %v660
        %v677 = vsub.f32 %v629, %v661
        %v678 = vsub.f32 %v630, %v662
        %v679 = vsub.f32 %v631, %v663
        %v680 = vsub.f32 %v632, %v664
        %v681 = vsub.f32 %v633, %v665
        %v682 = vsub.f32 %v634, %v666
        %v683 = vsub.f32 %v635, %v667
        %v684 = vsub.f32 %v636, %v668
        %v685 = vsub.f32 %v637, %v669
        %v686 = vsub.f32 %v638, %v670
        %v687 = vsub.f32 %v639, %v671
        %v688 = vadd.f32 %v672, 1e-05
        %v689 = vadd.f32 %v673, 1e-05
        %v690 = vadd.f32 %v674, 1e-05
        %v691 = vadd.f32 %v675, 1e-05
        %v692 = vadd.f32 %v676, 1e-05
        %v693 = vadd.f32 %v677, 1e-05
        %v694 = vadd.f32 %v678, 1e-05
        %v695 = vadd.f32 %v679, 1e-05
        %v696 = vadd.f32 %v680, 1e-05
        %v697 = vadd.f32 %v681, 1e-05
        %v698 = vadd.f32 %v682, 1e-05
        %v699 = vadd.f32 %v683, 1e-05
        %v700 = vadd.f32 %v684, 1e-05
        %v701 = vadd.f32 %v685, 1e-05
        %v702 = vadd.f32 %v686, 1e-05
        %v703 = vadd.f32 %v687, 1e-05
        %v704 = vrsqrt.pop %v688
        %v705 = vmul.f32 %v704, %v688
        %v706 = vmul.f32 %v705, %v704
        %v707 = vmul.f32 0.5, %v706
        %v708 = vsub.f32 1.5, %v707
        %v709 = vmul.f32 %v704, %v708
        %vm710 = vweird.f32 %v688
        %vm711 = vweird.f32 %v704
        %vm712 = vmor %vm710, %vm711
        %v713 = vsel %vm712, %v704, %v709
        %v714 = vrsqrt.pop %v689
        %v715 = vmul.f32 %v714, %v689
        %v716 = vmul.f32 %v715, %v714
        %v717 = vmul.f32 0.5, %v716
        %v718 = vsub.f32 1.5, %v717
        %v719 = vmul.f32 %v714, %v718
        %vm720 = vweird.f32 %v689
        %vm721 = vweird.f32 %v714
        %vm722 = vmor %vm720, %vm721
        %v723 = vsel %vm722, %v714, %v719
        %v724 = vrsqrt.pop %v690
        %v725 = vmul.f32 %v724, %v690
        %v726 = vmul.f32 %v725, %v724
        %v727 = vmul.f32 0.5, %v726
        %v728 = vsub.f32 1.5, %v727
        %v729 = vmul.f32 %v724, %v728
        %vm730 = vweird.f32 %v690
        %vm731 = vweird.f32 %v724
        %vm732 = vmor %vm730, %vm731
        %v733 = vsel %vm732, %v724, %v729
        %v734 = vrsqrt.pop %v691
        %v735 = vmul.f32 %v734, %v691
        %v736 = vmul.f32 %v735, %v734
        %v737 = vmul.f32 0.5, %v736
        %v738 = vsub.f32 1.5, %v737
        %v739 = vmul.f32 %v734, %v738
        %vm740 = vweird.f32 %v691
        %vm741 = vweird.f32 %v734
        %vm742 = vmor %vm740, %vm741
        %v743 = vsel %vm742, %v734, %v739
        %v744 = vrsqrt.pop %v692
        %v745 = vmul.f32 %v744, %v692
        %v746 = vmul.f32 %v745, %v744
        %v747 = vmul.f32 0.5, %v746
        %v748 = vsub.f32 1.5, %v747
        %v749 = vmul.f32 %v744, %v748
        %vm750 = vweird.f32 %v692
        %vm751 = vweird.f32 %v744
        %vm752 = vmor %vm750, %vm751
        %v753 = vsel %vm752, %v744, %v749
        %v754 = vrsqrt.pop %v693
        %v755 = vmul.f32 %v754, %v693
        %v756 = vmul.f32 %v755, %v754
        %v757 = vmul.f32 0.5, %v756
        %v758 = vsub.f32 1.5, %v757
        %v759 = vmul.f32 %v754, %v758
        %vm760 = vweird.f32 %v693
        %vm761 = vweird.f32 %v754
        %vm762 = vmor %vm760, %vm761
        %v763 = vsel %vm762, %v754, %v759
        %v764 = vrsqrt.pop %v694
        %v765 = vmul.f32 %v764, %v694
        %v766 = vmul.f32 %v765, %v764
        %v767 = vmul.f32 0.5, %v766
        %v768 = vsub.f32 1.5, %v767
        %v769 = vmul.f32 %v764, %v768
        %vm770 = vweird.f32 %v694
        %vm771 = vweird.f32 %v764
        %vm772 = vmor %vm770, %vm771
        %v773 = vsel %vm772, %v764, %v769
        %v774 = vrsqrt.pop %v695
        %v775 = vmul.f32 %v774, %v695
        %v776 = vmul.f32 %v775, %v774
        %v777 = vmul.f32 0.5, %v776
        %v778 = vsub.f32 1.5, %v777
        %v779 = vmul.f32 %v774, %v778
        %vm780 = vweird.f32 %v695
        %vm781 = vweird.f32 %v774
        %vm782 = vmor %vm780, %vm781
        %v783 = vsel %vm782, %v774, %v779
        %v784 = vrsqrt.pop %v696
        %v785 = vmul.f32 %v784, %v696
        %v786 = vmul.f32 %v785, %v784
        %v787 = vmul.f32 0.5, %v786
        %v788 = vsub.f32 1.5, %v787
        %v789 = vmul.f32 %v784, %v788
        %vm790 = vweird.f32 %v696
        %vm791 = vweird.f32 %v784
        %vm792 = vmor %vm790, %vm791
        %v793 = vsel %vm792, %v784, %v789
        %v794 = vrsqrt.pop %v697
        %v795 = vmul.f32 %v794, %v697
        %v796 = vmul.f32 %v795, %v794
        %v797 = vmul.f32 0.5, %v796
        %v798 = vsub.f32 1.5, %v797
        %v799 = vmul.f32 %v794, %v798
        %vm800 = vweird.f32 %v697
        %vm801 = vweird.f32 %v794
        %vm802 = vmor %vm800, %vm801
        %v803 = vsel %vm802, %v794, %v799
        %v804 = vrsqrt.pop %v698
        %v805 = vmul.f32 %v804, %v698
        %v806 = vmul.f32 %v805, %v804
        %v807 = vmul.f32 0.5, %v806
        %v808 = vsub.f32 1.5, %v807
        %v809 = vmul.f32 %v804, %v808
        %vm810 = vweird.f32 %v698
        %vm811 = vweird.f32 %v804
        %vm812 = vmor %vm810, %vm811
        %v813 = vsel %vm812, %v804, %v809
        %v814 = vrsqrt.pop %v699
        %v815 = vmul.f32 %v814, %v699
        %v816 = vmul.f32 %v815, %v814
        %v817 = vmul.f32 0.5, %v816
        %v818 = vsub.f32 1.5, %v817
        %v819 = vmul.f32 %v814, %v818
        %vm820 = vweird.f32 %v699
        %vm821 = vweird.f32 %v814
        %vm822 = vmor %vm820, %vm821
        %v823 = vsel %vm822, %v814, %v819
        %v824 = vrsqrt.pop %v700
        %v825 = vmul.f32 %v824, %v700
        %v826 = vmul.f32 %v825, %v824
        %v827 = vmul.f32 0.5, %v826
        %v828 = vsub.f32 1.5, %v827
        %v829 = vmul.f32 %v824, %v828
        %vm830 = vweird.f32 %v700
        %vm831 = vweird.f32 %v824
        %vm832 = vmor %vm830, %vm831
        %v833 = vsel %vm832, %v824, %v829
        %v834 = vrsqrt.pop %v701
        %v835 = vmul.f32 %v834, %v701
        %v836 = vmul.f32 %v835, %v834
        %v837 = vmul.f32 0.5, %v836
        %v838 = vsub.f32 1.5, %v837
        %v839 = vmul.f32 %v834, %v838
        %vm840 = vweird.f32 %v701
        %vm841 = vweird.f32 %v834
        %vm842 = vmor %vm840, %vm841
        %v843 = vsel %vm842, %v834, %v839
        %v844 = vrsqrt.pop %v702
        %v845 = vmul.f32 %v844, %v702
        %v846 = vmul.f32 %v845, %v844
        %v847 = vmul.f32 0.5, %v846
        %v848 = vsub.f32 1.5, %v847
        %v849 = vmul.f32 %v844, %v848
        %vm850 = vweird.f32 %v702
        %vm851 = vweird.f32 %v844
        %vm852 = vmor %vm850, %vm851
        %v853 = vsel %vm852, %v844, %v849
        %v854 = vrsqrt.pop %v703
        %v855 = vmul.f32 %v854, %v703
        %v856 = vmul.f32 %v855, %v854
        %v857 = vmul.f32 0.5, %v856
        %v858 = vsub.f32 1.5, %v857
        %v859 = vmul.f32 %v854, %v858
        %vm860 = vweird.f32 %v703
        %vm861 = vweird.f32 %v854
        %vm862 = vmor %vm860, %vm861
        %v863 = vsel %vm862, %v854, %v859
        %v864 = vmul.f32 %v640, %v713
        %v865 = vmul.f32 %v641, %v723
        %v866 = vmul.f32 %v642, %v733
        %v867 = vmul.f32 %v643, %v743
        %v868 = vmul.f32 %v644, %v753
        %v869 = vmul.f32 %v645, %v763
        %v870 = vmul.f32 %v646, %v773
        %v871 = vmul.f32 %v647, %v783
        %v872 = vmul.f32 %v648, %v793
        %v873 = vmul.f32 %v649, %v803
        %v874 = vmul.f32 %v650, %v813
        %v875 = vmul.f32 %v651, %v823
        %v876 = vmul.f32 %v652, %v833
        %v877 = vmul.f32 %v653, %v843
        %v878 = vmul.f32 %v654, %v853
        %v879 = vmul.f32 %v655, %v863
        %v880 = vpack.c.bf16 %v865, %v864
        %v881 = vpack.c.bf16 %v867, %v866
        %v882 = vpack.c.bf16 %v869, %v868
        %v883 = vpack.c.bf16 %v871, %v870
        %v884 = vpack.c.bf16 %v873, %v872
        %v885 = vpack.c.bf16 %v875, %v874
        %v886 = vpack.c.bf16 %v877, %v876
        %v887 = vpack.c.bf16 %v879, %v878
        %v888 = vld [vmem:[#allocation7] sm:$0xf]
        %v889 = vld [vmem:[#allocation7 + $0x4] sm:$0xf]
        %v890 = vld [vmem:[#allocation7 + $0x8] sm:$0xf]
        %v891 = vld [vmem:[#allocation7 + $0xc] sm:$0xf]
        %v892 = vld [vmem:[%s2] sm:$0x1]
        %v894 = vperm.slane %v892, 0
        %v900 = vunpack.c.l.b16 %v888
        %v901 = vunpack.c.l.b16 %v889
        %v902 = vunpack.c.l.b16 %v890
        %v903 = vunpack.c.l.b16 %v891
        %v904 = vpack.c.b16 %v901, %v900
        %v905 = vpack.c.b16 %v903, %v902
        %v909 = vsel %vm456, %v880, 0
        %v912 = vsel %vm456, %v881, 0
        %v915 = vsel %vm456, %v882, 0
        %v918 = vsel %vm456, %v883, 0
        %v921 = vsel %vm456, %v884, 0
        %v924 = vsel %vm456, %v885, 0
        %v927 = vsel %vm456, %v886, 0
        %v930 = vsel %vm456, %v887, 0
        %932 = vmatpush.bf16.msra.mxu0 0
        %933 = vmatpush.bf16.msra.mxu0 0
        %934 = vmatpush.bf16.msra.mxu0 0
        %935 = vmatpush.bf16.msra.mxu0 0
        %936 = vmatpush.bf16.msra.mxu0 0
        %937 = vmatpush.bf16.msra.mxu0 0
        %938 = vmatpush.bf16.msra.mxu0 %v905
        %939 = vmatpush.bf16.msra.mxu0 %v904
        %940 = vmatmul.bf16.gmra.mxu0 %v909
        %v941 = vpop.f32.mrf.mxu0
        %v942 = vadd.f32 %v894, %v941
        %v943 = vpop.f32.mrf.mxu0
        %v944 = vadd.f32 %v894, %v943
        %945 = vmatmul.bf16.gmra.mxu0 %v912
        %v946 = vpop.f32.mrf.mxu0
        %v947 = vadd.f32 %v894, %v946
        %v948 = vpop.f32.mrf.mxu0
        %v949 = vadd.f32 %v894, %v948
        %950 = vmatmul.bf16.gmra.mxu0 %v915
        %v951 = vpop.f32.mrf.mxu0
        %v952 = vadd.f32 %v894, %v951
        %v953 = vpop.f32.mrf.mxu0
        %v954 = vadd.f32 %v894, %v953
        %955 = vmatmul.bf16.gmra.mxu0 %v918
        %v956 = vpop.f32.mrf.mxu0
        %v957 = vadd.f32 %v894, %v956
        %v958 = vpop.f32.mrf.mxu0
        %v959 = vadd.f32 %v894, %v958
        %960 = vmatmul.bf16.gmra.mxu0 %v921
        %v961 = vpop.f32.mrf.mxu0
        %v962 = vadd.f32 %v894, %v961
        %v963 = vpop.f32.mrf.mxu0
        %v964 = vadd.f32 %v894, %v963
        %965 = vmatmul.bf16.gmra.mxu0 %v924
        %v966 = vpop.f32.mrf.mxu0
        %v967 = vadd.f32 %v894, %v966
        %v968 = vpop.f32.mrf.mxu0
        %v969 = vadd.f32 %v894, %v968
        %970 = vmatmul.bf16.gmra.mxu0 %v927
        %v971 = vpop.f32.mrf.mxu0
        %v972 = vadd.f32 %v894, %v971
        %v973 = vpop.f32.mrf.mxu0
        %v974 = vadd.f32 %v894, %v973
        %975 = vmatmul.bf16.gmra.mxu0 %v930
        %v976 = vpop.f32.mrf.mxu0
        %v977 = vadd.f32 %v894, %v976
        %v978 = vpop.f32.mrf.mxu0
        %v979 = vadd.f32 %v894, %v978
        %980 = vdwg.mxu0
        %v981 = vld [vmem:[#allocation9] sm:$0xf]
        %v982 = vld [vmem:[#allocation9 + $0x4] sm:$0xf]
        %v983 = vld [vmem:[#allocation9 + $0x8] sm:$0xf]
        %v984 = vld [vmem:[#allocation9 + $0xc] sm:$0xf]
        %v985 = vld [vmem:[%s4] sm:$0x1]
        %v987 = vperm.slane %v985, 0
        %v993 = vunpack.c.l.b16 %v981
        %v994 = vunpack.c.l.b16 %v982
        %v995 = vunpack.c.l.b16 %v983
        %v996 = vunpack.c.l.b16 %v984
        %v997 = vpack.c.b16 %v994, %v993
        %v998 = vpack.c.b16 %v996, %v995
        %1001 = vmatpush.bf16.msra.mxu0 0
        %1002 = vmatpush.bf16.msra.mxu0 0
        %1003 = vmatpush.bf16.msra.mxu0 0
        %1004 = vmatpush.bf16.msra.mxu0 0
        %1005 = vmatpush.bf16.msra.mxu0 0
        %1006 = vmatpush.bf16.msra.mxu0 0
        %1007 = vmatpush.bf16.msra.mxu0 %v998
        %1008 = vmatpush.bf16.msra.mxu0 %v997
        %1009 = vmatmul.bf16.gmra.mxu0 %v909
        %v1010 = vpop.f32.mrf.mxu0
        %v1011 = vadd.f32 %v987, %v1010
        %v1012 = vpop.f32.mrf.mxu0
        %v1013 = vadd.f32 %v987, %v1012
        %1014 = vmatmul.bf16.gmra.mxu0 %v912
        %v1015 = vpop.f32.mrf.mxu0
        %v1016 = vadd.f32 %v987, %v1015
        %v1017 = vpop.f32.mrf.mxu0
        %v1018 = vadd.f32 %v987, %v1017
        %1019 = vmatmul.bf16.gmra.mxu0 %v915
        %v1020 = vpop.f32.mrf.mxu0
        %v1021 = vadd.f32 %v987, %v1020
        %v1022 = vpop.f32.mrf.mxu0
        %v1023 = vadd.f32 %v987, %v1022
        %1024 = vmatmul.bf16.gmra.mxu0 %v918
        %v1025 = vpop.f32.mrf.mxu0
        %v1026 = vadd.f32 %v987, %v1025
        %v1027 = vpop.f32.mrf.mxu0
        %v1028 = vadd.f32 %v987, %v1027
        %1029 = vmatmul.bf16.gmra.mxu0 %v921
        %v1030 = vpop.f32.mrf.mxu0
        %v1031 = vadd.f32 %v987, %v1030
        %v1032 = vpop.f32.mrf.mxu0
        %v1033 = vadd.f32 %v987, %v1032
        %1034 = vmatmul.bf16.gmra.mxu0 %v924
        %v1035 = vpop.f32.mrf.mxu0
        %v1036 = vadd.f32 %v987, %v1035
        %v1037 = vpop.f32.mrf.mxu0
        %v1038 = vadd.f32 %v987, %v1037
        %1039 = vmatmul.bf16.gmra.mxu0 %v927
        %v1040 = vpop.f32.mrf.mxu0
        %v1041 = vadd.f32 %v987, %v1040
        %v1042 = vpop.f32.mrf.mxu0
        %v1043 = vadd.f32 %v987, %v1042
        %1044 = vmatmul.bf16.gmra.mxu0 %v930
        %v1045 = vpop.f32.mrf.mxu0
        %v1046 = vadd.f32 %v987, %v1045
        %v1047 = vpop.f32.mrf.mxu0
        %v1048 = vadd.f32 %v987, %v1047
        %1049 = vdwg.mxu0
        %v1050 = vxor.u32 %v1011, 2147483648
        %v1051 = vxor.u32 %v1013, 2147483648
        %v1052 = vxor.u32 %v1016, 2147483648
        %v1053 = vxor.u32 %v1018, 2147483648
        %v1054 = vxor.u32 %v1021, 2147483648
        %v1055 = vxor.u32 %v1023, 2147483648
        %v1056 = vxor.u32 %v1026, 2147483648
        %v1057 = vxor.u32 %v1028, 2147483648
        %v1058 = vxor.u32 %v1031, 2147483648
        %v1059 = vxor.u32 %v1033, 2147483648
        %v1060 = vxor.u32 %v1036, 2147483648
        %v1061 = vxor.u32 %v1038, 2147483648
        %v1062 = vxor.u32 %v1041, 2147483648
        %v1063 = vxor.u32 %v1043, 2147483648
        %v1064 = vxor.u32 %v1046, 2147483648
        %v1065 = vxor.u32 %v1048, 2147483648
        %v1066 = vmul.f32 %v1050, 1.442695
        %v1067 = vpow.pop %v1066
        %v1068 = vmul.f32 %v1051, 1.442695
        %v1069 = vpow.pop %v1068
        %v1070 = vmul.f32 %v1052, 1.442695
        %v1071 = vpow.pop %v1070
        %v1072 = vmul.f32 %v1053, 1.442695
        %v1073 = vpow.pop %v1072
        %v1074 = vmul.f32 %v1054, 1.442695
        %v1075 = vpow.pop %v1074
        %v1076 = vmul.f32 %v1055, 1.442695
        %v1077 = vpow.pop %v1076
        %v1078 = vmul.f32 %v1056, 1.442695
        %v1079 = vpow.pop %v1078
        %v1080 = vmul.f32 %v1057, 1.442695
        %v1081 = vpow.pop %v1080
        %v1082 = vmul.f32 %v1058, 1.442695
        %v1083 = vpow.pop %v1082
        %v1084 = vmul.f32 %v1059, 1.442695
        %v1085 = vpow.pop %v1084
        %v1086 = vmul.f32 %v1060, 1.442695
        %v1087 = vpow.pop %v1086
        %v1088 = vmul.f32 %v1061, 1.442695
        %v1089 = vpow.pop %v1088
        %v1090 = vmul.f32 %v1062, 1.442695
        %v1091 = vpow.pop %v1090
        %v1092 = vmul.f32 %v1063, 1.442695
        %v1093 = vpow.pop %v1092
        %v1094 = vmul.f32 %v1064, 1.442695
        %v1095 = vpow.pop %v1094
        %v1096 = vmul.f32 %v1065, 1.442695
        %v1097 = vpow.pop %v1096
        %v1098 = vadd.f32 %v1067, 1.0
        %v1099 = vadd.f32 %v1069, 1.0
        %v1100 = vadd.f32 %v1071, 1.0
        %v1101 = vadd.f32 %v1073, 1.0
        %v1102 = vadd.f32 %v1075, 1.0
        %v1103 = vadd.f32 %v1077, 1.0
        %v1104 = vadd.f32 %v1079, 1.0
        %v1105 = vadd.f32 %v1081, 1.0
        %v1106 = vadd.f32 %v1083, 1.0
        %v1107 = vadd.f32 %v1085, 1.0
        %v1108 = vadd.f32 %v1087, 1.0
        %v1109 = vadd.f32 %v1089, 1.0
        %v1110 = vadd.f32 %v1091, 1.0
        %v1111 = vadd.f32 %v1093, 1.0
        %v1112 = vadd.f32 %v1095, 1.0
        %v1113 = vadd.f32 %v1097, 1.0
        %v1114 = vrcp.pop %v1098
        %v1115 = vmul.f32 %v1098, %v1114
        %v1116 = vsub.f32 1.0, %v1115
        %v1117 = vmul.f32 %v1114, %v1116
        %v1118 = vadd.f32 %v1114, %v1117
        %vm1119 = vweird.f32 %v1098
        %vm1120 = vweird.f32 %v1114
        %vm1121 = vmor %vm1119, %vm1120
        %v1122 = vsel %vm1121, %v1114, %v1118
        %v1123 = vand.u32 2147483647, %v1098
        %vm1124 = vcmp.eq.f32.partialorder %v1123, 8.507059e+37
        %v1125 = vand.u32 %v1098, 2147483648
        %v1126 = vor.u32 1.1754944e-38, %v1125
        %v1127 = vsel %vm1124, %v1126, %v1122
        %v1128 = vmul.f32 1.0, %v1127
        %v1129 = vrcp.pop %v1099
        %v1130 = vmul.f32 %v1099, %v1129
        %v1131 = vsub.f32 1.0, %v1130
        %v1132 = vmul.f32 %v1129, %v1131
        %v1133 = vadd.f32 %v1129, %v1132
        %vm1134 = vweird.f32 %v1099
        %vm1135 = vweird.f32 %v1129
        %vm1136 = vmor %vm1134, %vm1135
        %v1137 = vsel %vm1136, %v1129, %v1133
        %v1138 = vand.u32 2147483647, %v1099
        %vm1139 = vcmp.eq.f32.partialorder %v1138, 8.507059e+37
        %v1140 = vand.u32 %v1099, 2147483648
        %v1141 = vor.u32 1.1754944e-38, %v1140
        %v1142 = vsel %vm1139, %v1141, %v1137
        %v1143 = vmul.f32 1.0, %v1142
        %v1144 = vrcp.pop %v1100
        %v1145 = vmul.f32 %v1100, %v1144
        %v1146 = vsub.f32 1.0, %v1145
        %v1147 = vmul.f32 %v1144, %v1146
        %v1148 = vadd.f32 %v1144, %v1147
        %vm1149 = vweird.f32 %v1100
        %vm1150 = vweird.f32 %v1144
        %vm1151 = vmor %vm1149, %vm1150
        %v1152 = vsel %vm1151, %v1144, %v1148
        %v1153 = vand.u32 2147483647, %v1100
        %vm1154 = vcmp.eq.f32.partialorder %v1153, 8.507059e+37
        %v1155 = vand.u32 %v1100, 2147483648
        %v1156 = vor.u32 1.1754944e-38, %v1155
        %v1157 = vsel %vm1154, %v1156, %v1152
        %v1158 = vmul.f32 1.0, %v1157
        %v1159 = vrcp.pop %v1101
        %v1160 = vmul.f32 %v1101, %v1159
        %v1161 = vsub.f32 1.0, %v1160
        %v1162 = vmul.f32 %v1159, %v1161
        %v1163 = vadd.f32 %v1159, %v1162
        %vm1164 = vweird.f32 %v1101
        %vm1165 = vweird.f32 %v1159
        %vm1166 = vmor %vm1164, %vm1165
        %v1167 = vsel %vm1166, %v1159, %v1163
        %v1168 = vand.u32 2147483647, %v1101
        %vm1169 = vcmp.eq.f32.partialorder %v1168, 8.507059e+37
        %v1170 = vand.u32 %v1101, 2147483648
        %v1171 = vor.u32 1.1754944e-38, %v1170
        %v1172 = vsel %vm1169, %v1171, %v1167
        %v1173 = vmul.f32 1.0, %v1172
        %v1174 = vrcp.pop %v1102
        %v1175 = vmul.f32 %v1102, %v1174
        %v1176 = vsub.f32 1.0, %v1175
        %v1177 = vmul.f32 %v1174, %v1176
        %v1178 = vadd.f32 %v1174, %v1177
        %vm1179 = vweird.f32 %v1102
        %vm1180 = vweird.f32 %v1174
        %vm1181 = vmor %vm1179, %vm1180
        %v1182 = vsel %vm1181, %v1174, %v1178
        %v1183 = vand.u32 2147483647, %v1102
        %vm1184 = vcmp.eq.f32.partialorder %v1183, 8.507059e+37
        %v1185 = vand.u32 %v1102, 2147483648
        %v1186 = vor.u32 1.1754944e-38, %v1185
        %v1187 = vsel %vm1184, %v1186, %v1182
        %v1188 = vmul.f32 1.0, %v1187
        %v1189 = vrcp.pop %v1103
        %v1190 = vmul.f32 %v1103, %v1189
        %v1191 = vsub.f32 1.0, %v1190
        %v1192 = vmul.f32 %v1189, %v1191
        %v1193 = vadd.f32 %v1189, %v1192
        %vm1194 = vweird.f32 %v1103
        %vm1195 = vweird.f32 %v1189
        %vm1196 = vmor %vm1194, %vm1195
        %v1197 = vsel %vm1196, %v1189, %v1193
        %v1198 = vand.u32 2147483647, %v1103
        %vm1199 = vcmp.eq.f32.partialorder %v1198, 8.507059e+37
        %v1200 = vand.u32 %v1103, 2147483648
        %v1201 = vor.u32 1.1754944e-38, %v1200
        %v1202 = vsel %vm1199, %v1201, %v1197
        %v1203 = vmul.f32 1.0, %v1202
        %v1204 = vrcp.pop %v1104
        %v1205 = vmul.f32 %v1104, %v1204
        %v1206 = vsub.f32 1.0, %v1205
        %v1207 = vmul.f32 %v1204, %v1206
        %v1208 = vadd.f32 %v1204, %v1207
        %vm1209 = vweird.f32 %v1104
        %vm1210 = vweird.f32 %v1204
        %vm1211 = vmor %vm1209, %vm1210
        %v1212 = vsel %vm1211, %v1204, %v1208
        %v1213 = vand.u32 2147483647, %v1104
        %vm1214 = vcmp.eq.f32.partialorder %v1213, 8.507059e+37
        %v1215 = vand.u32 %v1104, 2147483648
        %v1216 = vor.u32 1.1754944e-38, %v1215
        %v1217 = vsel %vm1214, %v1216, %v1212
        %v1218 = vmul.f32 1.0, %v1217
        %v1219 = vrcp.pop %v1105
        %v1220 = vmul.f32 %v1105, %v1219
        %v1221 = vsub.f32 1.0, %v1220
        %v1222 = vmul.f32 %v1219, %v1221
        %v1223 = vadd.f32 %v1219, %v1222
        %vm1224 = vweird.f32 %v1105
        %vm1225 = vweird.f32 %v1219
        %vm1226 = vmor %vm1224, %vm1225
        %v1227 = vsel %vm1226, %v1219, %v1223
        %v1228 = vand.u32 2147483647, %v1105
        %vm1229 = vcmp.eq.f32.partialorder %v1228, 8.507059e+37
        %v1230 = vand.u32 %v1105, 2147483648
        %v1231 = vor.u32 1.1754944e-38, %v1230
        %v1232 = vsel %vm1229, %v1231, %v1227
        %v1233 = vmul.f32 1.0, %v1232
        %v1234 = vrcp.pop %v1106
        %v1235 = vmul.f32 %v1106, %v1234
        %v1236 = vsub.f32 1.0, %v1235
        %v1237 = vmul.f32 %v1234, %v1236
        %v1238 = vadd.f32 %v1234, %v1237
        %vm1239 = vweird.f32 %v1106
        %vm1240 = vweird.f32 %v1234
        %vm1241 = vmor %vm1239, %vm1240
        %v1242 = vsel %vm1241, %v1234, %v1238
        %v1243 = vand.u32 2147483647, %v1106
        %vm1244 = vcmp.eq.f32.partialorder %v1243, 8.507059e+37
        %v1245 = vand.u32 %v1106, 2147483648
        %v1246 = vor.u32 1.1754944e-38, %v1245
        %v1247 = vsel %vm1244, %v1246, %v1242
        %v1248 = vmul.f32 1.0, %v1247
        %v1249 = vrcp.pop %v1107
        %v1250 = vmul.f32 %v1107, %v1249
        %v1251 = vsub.f32 1.0, %v1250
        %v1252 = vmul.f32 %v1249, %v1251
        %v1253 = vadd.f32 %v1249, %v1252
        %vm1254 = vweird.f32 %v1107
        %vm1255 = vweird.f32 %v1249
        %vm1256 = vmor %vm1254, %vm1255
        %v1257 = vsel %vm1256, %v1249, %v1253
        %v1258 = vand.u32 2147483647, %v1107
        %vm1259 = vcmp.eq.f32.partialorder %v1258, 8.507059e+37
        %v1260 = vand.u32 %v1107, 2147483648
        %v1261 = vor.u32 1.1754944e-38, %v1260
        %v1262 = vsel %vm1259, %v1261, %v1257
        %v1263 = vmul.f32 1.0, %v1262
        %v1264 = vrcp.pop %v1108
        %v1265 = vmul.f32 %v1108, %v1264
        %v1266 = vsub.f32 1.0, %v1265
        %v1267 = vmul.f32 %v1264, %v1266
        %v1268 = vadd.f32 %v1264, %v1267
        %vm1269 = vweird.f32 %v1108
        %vm1270 = vweird.f32 %v1264
        %vm1271 = vmor %vm1269, %vm1270
        %v1272 = vsel %vm1271, %v1264, %v1268
        %v1273 = vand.u32 2147483647, %v1108
        %vm1274 = vcmp.eq.f32.partialorder %v1273, 8.507059e+37
        %v1275 = vand.u32 %v1108, 2147483648
        %v1276 = vor.u32 1.1754944e-38, %v1275
        %v1277 = vsel %vm1274, %v1276, %v1272
        %v1278 = vmul.f32 1.0, %v1277
        %v1279 = vrcp.pop %v1109
        %v1280 = vmul.f32 %v1109, %v1279
        %v1281 = vsub.f32 1.0, %v1280
        %v1282 = vmul.f32 %v1279, %v1281
        %v1283 = vadd.f32 %v1279, %v1282
        %vm1284 = vweird.f32 %v1109
        %vm1285 = vweird.f32 %v1279
        %vm1286 = vmor %vm1284, %vm1285
        %v1287 = vsel %vm1286, %v1279, %v1283
        %v1288 = vand.u32 2147483647, %v1109
        %vm1289 = vcmp.eq.f32.partialorder %v1288, 8.507059e+37
        %v1290 = vand.u32 %v1109, 2147483648
        %v1291 = vor.u32 1.1754944e-38, %v1290
        %v1292 = vsel %vm1289, %v1291, %v1287
        %v1293 = vmul.f32 1.0, %v1292
        %v1294 = vrcp.pop %v1110
        %v1295 = vmul.f32 %v1110, %v1294
        %v1296 = vsub.f32 1.0, %v1295
        %v1297 = vmul.f32 %v1294, %v1296
        %v1298 = vadd.f32 %v1294, %v1297
        %vm1299 = vweird.f32 %v1110
        %vm1300 = vweird.f32 %v1294
        %vm1301 = vmor %vm1299, %vm1300
        %v1302 = vsel %vm1301, %v1294, %v1298
        %v1303 = vand.u32 2147483647, %v1110
        %vm1304 = vcmp.eq.f32.partialorder %v1303, 8.507059e+37
        %v1305 = vand.u32 %v1110, 2147483648
        %v1306 = vor.u32 1.1754944e-38, %v1305
        %v1307 = vsel %vm1304, %v1306, %v1302
        %v1308 = vmul.f32 1.0, %v1307
        %v1309 = vrcp.pop %v1111
        %v1310 = vmul.f32 %v1111, %v1309
        %v1311 = vsub.f32 1.0, %v1310
        %v1312 = vmul.f32 %v1309, %v1311
        %v1313 = vadd.f32 %v1309, %v1312
        %vm1314 = vweird.f32 %v1111
        %vm1315 = vweird.f32 %v1309
        %vm1316 = vmor %vm1314, %vm1315
        %v1317 = vsel %vm1316, %v1309, %v1313
        %v1318 = vand.u32 2147483647, %v1111
        %vm1319 = vcmp.eq.f32.partialorder %v1318, 8.507059e+37
        %v1320 = vand.u32 %v1111, 2147483648
        %v1321 = vor.u32 1.1754944e-38, %v1320
        %v1322 = vsel %vm1319, %v1321, %v1317
        %v1323 = vmul.f32 1.0, %v1322
        %v1324 = vrcp.pop %v1112
        %v1325 = vmul.f32 %v1112, %v1324
        %v1326 = vsub.f32 1.0, %v1325
        %v1327 = vmul.f32 %v1324, %v1326
        %v1328 = vadd.f32 %v1324, %v1327
        %vm1329 = vweird.f32 %v1112
        %vm1330 = vweird.f32 %v1324
        %vm1331 = vmor %vm1329, %vm1330
        %v1332 = vsel %vm1331, %v1324, %v1328
        %v1333 = vand.u32 2147483647, %v1112
        %vm1334 = vcmp.eq.f32.partialorder %v1333, 8.507059e+37
        %v1335 = vand.u32 %v1112, 2147483648
        %v1336 = vor.u32 1.1754944e-38, %v1335
        %v1337 = vsel %vm1334, %v1336, %v1332
        %v1338 = vmul.f32 1.0, %v1337
        %v1339 = vrcp.pop %v1113
        %v1340 = vmul.f32 %v1113, %v1339
        %v1341 = vsub.f32 1.0, %v1340
        %v1342 = vmul.f32 %v1339, %v1341
        %v1343 = vadd.f32 %v1339, %v1342
        %vm1344 = vweird.f32 %v1113
        %vm1345 = vweird.f32 %v1339
        %vm1346 = vmor %vm1344, %vm1345
        %v1347 = vsel %vm1346, %v1339, %v1343
        %v1348 = vand.u32 2147483647, %v1113
        %vm1349 = vcmp.eq.f32.partialorder %v1348, 8.507059e+37
        %v1350 = vand.u32 %v1113, 2147483648
        %v1351 = vor.u32 1.1754944e-38, %v1350
        %v1352 = vsel %vm1349, %v1351, %v1347
        %v1353 = vmul.f32 1.0, %v1352
        %v1354 = vmul.f32 %v942, %v1128
        %v1355 = vmul.f32 %v944, %v1143
        %v1356 = vmul.f32 %v947, %v1158
        %v1357 = vmul.f32 %v949, %v1173
        %v1358 = vmul.f32 %v952, %v1188
        %v1359 = vmul.f32 %v954, %v1203
        %v1360 = vmul.f32 %v957, %v1218
        %v1361 = vmul.f32 %v959, %v1233
        %v1362 = vmul.f32 %v962, %v1248
        %v1363 = vmul.f32 %v964, %v1263
        %v1364 = vmul.f32 %v967, %v1278
        %v1365 = vmul.f32 %v969, %v1293
        %v1366 = vmul.f32 %v972, %v1308
        %v1367 = vmul.f32 %v974, %v1323
        %v1368 = vmul.f32 %v977, %v1338
        %v1369 = vmul.f32 %v979, %v1353
        %v1370 = vld [vmem:[#allocation10] sm:$0xff]
        %v1371 = vld [vmem:[#allocation10 + $0x8] sm:$0xff]
        %v1372 = vld [vmem:[#allocation10 + $0x10] sm:$0xff]
        %v1373 = vld [vmem:[#allocation10 + $0x18] sm:$0xff]
        %v1374 = vld [vmem:[%s6] sm:$0x1]
        %v1375 = vld [vmem:[#allocation12] sm:$0xf]
        %v1376 = vld [vmem:[#allocation12 + $0x4] sm:$0xf]
        %v1377 = vld [vmem:[#allocation12 + $0x8] sm:$0xf]
        %v1378 = vld [vmem:[#allocation12 + $0xc] sm:$0xf]
        %v1379 = vld [vmem:[%s8] sm:$0x1]
        %1380 = vst.msk [vmem:[#allocation3] sm:$0xff] %vm456, 0.0
        %1381 = vst.msk [vmem:[#allocation3 + $0x8] sm:$0xff] %vm456, 0.0
        %1382 = vst.msk [vmem:[#allocation3 + $0x90] sm:$0xff] %vm456, 0.0
        %1383 = vst.msk [vmem:[#allocation3 + $0x98] sm:$0xff] %vm456, 0.0
        %1384 = vst.msk [vmem:[#allocation3 + $0x10] sm:$0xff] %vm456, %v1354
        %1385 = vst.msk [vmem:[#allocation3 + $0x18] sm:$0xff] %vm456, %v1355
        %1386 = vst.msk [vmem:[#allocation3 + $0x20] sm:$0xff] %vm456, %v1356
        %1387 = vst.msk [vmem:[#allocation3 + $0x28] sm:$0xff] %vm456, %v1357
        %1388 = vst.msk [vmem:[#allocation3 + $0x30] sm:$0xff] %vm456, %v1358
        %1389 = vst.msk [vmem:[#allocation3 + $0x38] sm:$0xff] %vm456, %v1359
        %1390 = vst.msk [vmem:[#allocation3 + $0x40] sm:$0xff] %vm456, %v1360
        %1391 = vst.msk [vmem:[#allocation3 + $0x48] sm:$0xff] %vm456, %v1361
        %1392 = vst.msk [vmem:[#allocation3 + $0x50] sm:$0xff] %vm456, %v1362
        %1393 = vst.msk [vmem:[#allocation3 + $0x58] sm:$0xff] %vm456, %v1363
        %1394 = vst.msk [vmem:[#allocation3 + $0x60] sm:$0xff] %vm456, %v1364
        %1395 = vst.msk [vmem:[#allocation3 + $0x68] sm:$0xff] %vm456, %v1365
        %1396 = vst.msk [vmem:[#allocation3 + $0x70] sm:$0xff] %vm456, %v1366
        %1397 = vst.msk [vmem:[#allocation3 + $0x78] sm:$0xff] %vm456, %v1367
        %1398 = vst.msk [vmem:[#allocation3 + $0x80] sm:$0xff] %vm456, %v1368
        %1399 = vst.msk [vmem:[#allocation3 + $0x88] sm:$0xff] %vm456, %v1369
        %v1400 = vld [vmem:[#allocation3 + $0x8] sm:$0xff]
        %v1401 = vld [vmem:[#allocation3 + $0x10] sm:$0xff]
        %v1402 = vld [vmem:[#allocation3 + $0x18] sm:$0xff]
        %v1403 = vld [vmem:[#allocation3 + $0x20] sm:$0xff]
        %v1404 = vld [vmem:[#allocation3 + $0x28] sm:$0xff]
        %v1405 = vld [vmem:[#allocation3 + $0x30] sm:$0xff]
        %v1406 = vld [vmem:[#allocation3 + $0x38] sm:$0xff]
        %v1407 = vld [vmem:[#allocation3 + $0x40] sm:$0xff]
        %v1408 = vld [vmem:[#allocation3 + $0x48] sm:$0xff]
        %v1409 = vld [vmem:[#allocation3 + $0x50] sm:$0xff]
        %v1410 = vld [vmem:[#allocation3 + $0x58] sm:$0xff]
        %v1411 = vld [vmem:[#allocation3 + $0x60] sm:$0xff]
        %v1412 = vld [vmem:[#allocation3 + $0x68] sm:$0xff]
        %v1413 = vld [vmem:[#allocation3 + $0x70] sm:$0xff]
        %v1414 = vld [vmem:[#allocation3 + $0x78] sm:$0xff]
        %v1415 = vld [vmem:[#allocation3 + $0x80] sm:$0xff]
        %v1416 = vld [vmem:[#allocation3 + $0x88] sm:$0xff]
        %v1417 = vld [vmem:[#allocation3 + $0x90] sm:$0xff]
        %v1418 = vld [vmem:[#allocation3 + $0x98] sm:$0xff]
        %v1419 = vperm.slane %v1370, 7
        %v1420 = vmul.f32 %v1400, %v1419
        %v1421 = vmul.f32 %v1401, %v1419
        %v1422 = vmul.f32 %v1402, %v1419
        %v1423 = vmul.f32 %v1403, %v1419
        %v1424 = vmul.f32 %v1404, %v1419
        %v1425 = vmul.f32 %v1405, %v1419
        %v1426 = vmul.f32 %v1406, %v1419
        %v1427 = vmul.f32 %v1407, %v1419
        %v1428 = vmul.f32 %v1408, %v1419
        %v1429 = vmul.f32 %v1409, %v1419
        %v1430 = vmul.f32 %v1410, %v1419
        %v1431 = vmul.f32 %v1411, %v1419
        %v1432 = vmul.f32 %v1412, %v1419
        %v1433 = vmul.f32 %v1413, %v1419
        %v1434 = vmul.f32 %v1414, %v1419
        %v1435 = vmul.f32 %v1415, %v1419
        %v1436 = vadd.f32 %v1420, 0.0
        %v1437 = vadd.f32 %v1421, 0.0
        %v1438 = vadd.f32 %v1422, 0.0
        %v1439 = vadd.f32 %v1423, 0.0
        %v1440 = vadd.f32 %v1424, 0.0
        %v1441 = vadd.f32 %v1425, 0.0
        %v1442 = vadd.f32 %v1426, 0.0
        %v1443 = vadd.f32 %v1427, 0.0
        %v1444 = vadd.f32 %v1428, 0.0
        %v1445 = vadd.f32 %v1429, 0.0
        %v1446 = vadd.f32 %v1430, 0.0
        %v1447 = vadd.f32 %v1431, 0.0
        %v1448 = vadd.f32 %v1432, 0.0
        %v1449 = vadd.f32 %v1433, 0.0
        %v1450 = vadd.f32 %v1434, 0.0
        %v1451 = vadd.f32 %v1435, 0.0
        %v1452 = vperm.slane %v1371, 7
        %v1453 = vmul.f32 %v1401, %v1452
        %v1454 = vmul.f32 %v1402, %v1452
        %v1455 = vmul.f32 %v1403, %v1452
        %v1456 = vmul.f32 %v1404, %v1452
        %v1457 = vmul.f32 %v1405, %v1452
        %v1458 = vmul.f32 %v1406, %v1452
        %v1459 = vmul.f32 %v1407, %v1452
        %v1460 = vmul.f32 %v1408, %v1452
        %v1461 = vmul.f32 %v1409, %v1452
        %v1462 = vmul.f32 %v1410, %v1452
        %v1463 = vmul.f32 %v1411, %v1452
        %v1464 = vmul.f32 %v1412, %v1452
        %v1465 = vmul.f32 %v1413, %v1452
        %v1466 = vmul.f32 %v1414, %v1452
        %v1467 = vmul.f32 %v1415, %v1452
        %v1468 = vmul.f32 %v1416, %v1452
        %v1469 = vadd.f32 %v1436, %v1453
        %v1470 = vadd.f32 %v1437, %v1454
        %v1471 = vadd.f32 %v1438, %v1455
        %v1472 = vadd.f32 %v1439, %v1456
        %v1473 = vadd.f32 %v1440, %v1457
        %v1474 = vadd.f32 %v1441, %v1458
        %v1475 = vadd.f32 %v1442, %v1459
        %v1476 = vadd.f32 %v1443, %v1460
        %v1477 = vadd.f32 %v1444, %v1461
        %v1478 = vadd.f32 %v1445, %v1462
        %v1479 = vadd.f32 %v1446, %v1463
        %v1480 = vadd.f32 %v1447, %v1464
        %v1481 = vadd.f32 %v1448, %v1465
        %v1482 = vadd.f32 %v1449, %v1466
        %v1483 = vadd.f32 %v1450, %v1467
        %v1484 = vadd.f32 %v1451, %v1468
        %v1485 = vperm.slane %v1372, 7
        %v1486 = vmul.f32 %v1402, %v1485
        %v1487 = vmul.f32 %v1403, %v1485
        %v1488 = vmul.f32 %v1404, %v1485
        %v1489 = vmul.f32 %v1405, %v1485
        %v1490 = vmul.f32 %v1406, %v1485
        %v1491 = vmul.f32 %v1407, %v1485
        %v1492 = vmul.f32 %v1408, %v1485
        %v1493 = vmul.f32 %v1409, %v1485
        %v1494 = vmul.f32 %v1410, %v1485
        %v1495 = vmul.f32 %v1411, %v1485
        %v1496 = vmul.f32 %v1412, %v1485
        %v1497 = vmul.f32 %v1413, %v1485
        %v1498 = vmul.f32 %v1414, %v1485
        %v1499 = vmul.f32 %v1415, %v1485
        %v1500 = vmul.f32 %v1416, %v1485
        %v1501 = vmul.f32 %v1417, %v1485
        %v1502 = vadd.f32 %v1469, %v1486
        %v1503 = vadd.f32 %v1470, %v1487
        %v1504 = vadd.f32 %v1471, %v1488
        %v1505 = vadd.f32 %v1472, %v1489
        %v1506 = vadd.f32 %v1473, %v1490
        %v1507 = vadd.f32 %v1474, %v1491
        %v1508 = vadd.f32 %v1475, %v1492
        %v1509 = vadd.f32 %v1476, %v1493
        %v1510 = vadd.f32 %v1477, %v1494
        %v1511 = vadd.f32 %v1478, %v1495
        %v1512 = vadd.f32 %v1479, %v1496
        %v1513 = vadd.f32 %v1480, %v1497
        %v1514 = vadd.f32 %v1481, %v1498
        %v1515 = vadd.f32 %v1482, %v1499
        %v1516 = vadd.f32 %v1483, %v1500
        %v1517 = vadd.f32 %v1484, %v1501
        %v1518 = vperm.slane %v1373, 7
        %v1519 = vmul.f32 %v1403, %v1518
        %v1520 = vmul.f32 %v1404, %v1518
        %v1521 = vmul.f32 %v1405, %v1518
        %v1522 = vmul.f32 %v1406, %v1518
        %v1523 = vmul.f32 %v1407, %v1518
        %v1524 = vmul.f32 %v1408, %v1518
        %v1525 = vmul.f32 %v1409, %v1518
        %v1526 = vmul.f32 %v1410, %v1518
        %v1527 = vmul.f32 %v1411, %v1518
        %v1528 = vmul.f32 %v1412, %v1518
        %v1529 = vmul.f32 %v1413, %v1518
        %v1530 = vmul.f32 %v1414, %v1518
        %v1531 = vmul.f32 %v1415, %v1518
        %v1532 = vmul.f32 %v1416, %v1518
        %v1533 = vmul.f32 %v1417, %v1518
        %v1534 = vmul.f32 %v1418, %v1518
        %v1535 = vadd.f32 %v1502, %v1519
        %v1536 = vadd.f32 %v1503, %v1520
        %v1537 = vadd.f32 %v1504, %v1521
        %v1538 = vadd.f32 %v1505, %v1522
        %v1539 = vadd.f32 %v1506, %v1523
        %v1540 = vadd.f32 %v1507, %v1524
        %v1541 = vadd.f32 %v1508, %v1525
        %v1542 = vadd.f32 %v1509, %v1526
        %v1543 = vadd.f32 %v1510, %v1527
        %v1544 = vadd.f32 %v1511, %v1528
        %v1545 = vadd.f32 %v1512, %v1529
        %v1546 = vadd.f32 %v1513, %v1530
        %v1547 = vadd.f32 %v1514, %v1531
        %v1548 = vadd.f32 %v1515, %v1532
        %v1549 = vadd.f32 %v1516, %v1533
        %v1550 = vadd.f32 %v1517, %v1534
        %v1551 = vld [vmem:[#allocation3 + $0x1] sm:$0xff]
        %v1552 = vld [vmem:[#allocation3 + $0x9] sm:$0xff]
        %v1553 = vld [vmem:[#allocation3 + $0x11] sm:$0xff]
        %v1554 = vld [vmem:[#allocation3 + $0x19] sm:$0xff]
        %v1555 = vld [vmem:[#allocation3 + $0x21] sm:$0xff]
        %v1556 = vld [vmem:[#allocation3 + $0x29] sm:$0xff]
        %v1557 = vld [vmem:[#allocation3 + $0x31] sm:$0xff]
        %v1558 = vld [vmem:[#allocation3 + $0x39] sm:$0xff]
        %v1559 = vld [vmem:[#allocation3 + $0x41] sm:$0xff]
        %v1560 = vld [vmem:[#allocation3 + $0x49] sm:$0xff]
        %v1561 = vld [vmem:[#allocation3 + $0x51] sm:$0xff]
        %v1562 = vld [vmem:[#allocation3 + $0x59] sm:$0xff]
        %v1563 = vld [vmem:[#allocation3 + $0x61] sm:$0xff]
        %v1564 = vld [vmem:[#allocation3 + $0x69] sm:$0xff]
        %v1565 = vld [vmem:[#allocation3 + $0x71] sm:$0xff]
        %v1566 = vld [vmem:[#allocation3 + $0x79] sm:$0xff]
        %v1567 = vld [vmem:[#allocation3 + $0x81] sm:$0xff]
        %v1568 = vld [vmem:[#allocation3 + $0x89] sm:$0xff]
        %v1569 = vld [vmem:[#allocation3 + $0x91] sm:$0xff]
        %v1570 = vperm.slane %v1370, 0
        %v1571 = vmul.f32 %v1551, %v1570
        %v1572 = vmul.f32 %v1552, %v1570
        %v1573 = vmul.f32 %v1553, %v1570
        %v1574 = vmul.f32 %v1554, %v1570
        %v1575 = vmul.f32 %v1555, %v1570
        %v1576 = vmul.f32 %v1556, %v1570
        %v1577 = vmul.f32 %v1557, %v1570
        %v1578 = vmul.f32 %v1558, %v1570
        %v1579 = vmul.f32 %v1559, %v1570
        %v1580 = vmul.f32 %v1560, %v1570
        %v1581 = vmul.f32 %v1561, %v1570
        %v1582 = vmul.f32 %v1562, %v1570
        %v1583 = vmul.f32 %v1563, %v1570
        %v1584 = vmul.f32 %v1564, %v1570
        %v1585 = vmul.f32 %v1565, %v1570
        %v1586 = vmul.f32 %v1566, %v1570
        %v1587 = vadd.f32 %v1535, %v1571
        %v1588 = vadd.f32 %v1536, %v1572
        %v1589 = vadd.f32 %v1537, %v1573
        %v1590 = vadd.f32 %v1538, %v1574
        %v1591 = vadd.f32 %v1539, %v1575
        %v1592 = vadd.f32 %v1540, %v1576
        %v1593 = vadd.f32 %v1541, %v1577
        %v1594 = vadd.f32 %v1542, %v1578
        %v1595 = vadd.f32 %v1543, %v1579
        %v1596 = vadd.f32 %v1544, %v1580
        %v1597 = vadd.f32 %v1545, %v1581
        %v1598 = vadd.f32 %v1546, %v1582
        %v1599 = vadd.f32 %v1547, %v1583
        %v1600 = vadd.f32 %v1548, %v1584
        %v1601 = vadd.f32 %v1549, %v1585
        %v1602 = vadd.f32 %v1550, %v1586
        %v1603 = vperm.slane %v1371, 0
        %v1604 = vmul.f32 %v1552, %v1603
        %v1605 = vmul.f32 %v1553, %v1603
        %v1606 = vmul.f32 %v1554, %v1603
        %v1607 = vmul.f32 %v1555, %v1603
        %v1608 = vmul.f32 %v1556, %v1603
        %v1609 = vmul.f32 %v1557, %v1603
        %v1610 = vmul.f32 %v1558, %v1603
        %v1611 = vmul.f32 %v1559, %v1603
        %v1612 = vmul.f32 %v1560, %v1603
        %v1613 = vmul.f32 %v1561, %v1603
        %v1614 = vmul.f32 %v1562, %v1603
        %v1615 = vmul.f32 %v1563, %v1603
        %v1616 = vmul.f32 %v1564, %v1603
        %v1617 = vmul.f32 %v1565, %v1603
        %v1618 = vmul.f32 %v1566, %v1603
        %v1619 = vmul.f32 %v1567, %v1603
        %v1620 = vadd.f32 %v1587, %v1604
        %v1621 = vadd.f32 %v1588, %v1605
        %v1622 = vadd.f32 %v1589, %v1606
        %v1623 = vadd.f32 %v1590, %v1607
        %v1624 = vadd.f32 %v1591, %v1608
        %v1625 = vadd.f32 %v1592, %v1609
        %v1626 = vadd.f32 %v1593, %v1610
        %v1627 = vadd.f32 %v1594, %v1611
        %v1628 = vadd.f32 %v1595, %v1612
        %v1629 = vadd.f32 %v1596, %v1613
        %v1630 = vadd.f32 %v1597, %v1614
        %v1631 = vadd.f32 %v1598, %v1615
        %v1632 = vadd.f32 %v1599, %v1616
        %v1633 = vadd.f32 %v1600, %v1617
        %v1634 = vadd.f32 %v1601, %v1618
        %v1635 = vadd.f32 %v1602, %v1619
        %v1636 = vperm.slane %v1372, 0
        %v1637 = vmul.f32 %v1553, %v1636
        %v1638 = vmul.f32 %v1554, %v1636
        %v1639 = vmul.f32 %v1555, %v1636
        %v1640 = vmul.f32 %v1556, %v1636
        %v1641 = vmul.f32 %v1557, %v1636
        %v1642 = vmul.f32 %v1558, %v1636
        %v1643 = vmul.f32 %v1559, %v1636
        %v1644 = vmul.f32 %v1560, %v1636
        %v1645 = vmul.f32 %v1561, %v1636
        %v1646 = vmul.f32 %v1562, %v1636
        %v1647 = vmul.f32 %v1563, %v1636
        %v1648 = vmul.f32 %v1564, %v1636
        %v1649 = vmul.f32 %v1565, %v1636
        %v1650 = vmul.f32 %v1566, %v1636
        %v1651 = vmul.f32 %v1567, %v1636
        %v1652 = vmul.f32 %v1568, %v1636
        %v1653 = vadd.f32 %v1620, %v1637
        %v1654 = vadd.f32 %v1621, %v1638
        %v1655 = vadd.f32 %v1622, %v1639
        %v1656 = vadd.f32 %v1623, %v1640
        %v1657 = vadd.f32 %v1624, %v1641
        %v1658 = vadd.f32 %v1625, %v1642
        %v1659 = vadd.f32 %v1626, %v1643
        %v1660 = vadd.f32 %v1627, %v1644
        %v1661 = vadd.f32 %v1628, %v1645
        %v1662 = vadd.f32 %v1629, %v1646
        %v1663 = vadd.f32 %v1630, %v1647
        %v1664 = vadd.f32 %v1631, %v1648
        %v1665 = vadd.f32 %v1632, %v1649
        %v1666 = vadd.f32 %v1633, %v1650
        %v1667 = vadd.f32 %v1634, %v1651
        %v1668 = vadd.f32 %v1635, %v1652
        %v1669 = vperm.slane %v1373, 0
        %v1670 = vmul.f32 %v1554, %v1669
        %v1671 = vmul.f32 %v1555, %v1669
        %v1672 = vmul.f32 %v1556, %v1669
        %v1673 = vmul.f32 %v1557, %v1669
        %v1674 = vmul.f32 %v1558, %v1669
        %v1675 = vmul.f32 %v1559, %v1669
        %v1676 = vmul.f32 %v1560, %v1669
        %v1677 = vmul.f32 %v1561, %v1669
        %v1678 = vmul.f32 %v1562, %v1669
        %v1679 = vmul.f32 %v1563, %v1669
        %v1680 = vmul.f32 %v1564, %v1669
        %v1681 = vmul.f32 %v1565, %v1669
        %v1682 = vmul.f32 %v1566, %v1669
        %v1683 = vmul.f32 %v1567, %v1669
        %v1684 = vmul.f32 %v1568, %v1669
        %v1685 = vmul.f32 %v1569, %v1669
        %v1686 = vadd.f32 %v1653, %v1670
        %v1687 = vadd.f32 %v1654, %v1671
        %v1688 = vadd.f32 %v1655, %v1672
        %v1689 = vadd.f32 %v1656, %v1673
        %v1690 = vadd.f32 %v1657, %v1674
        %v1691 = vadd.f32 %v1658, %v1675
        %v1692 = vadd.f32 %v1659, %v1676
        %v1693 = vadd.f32 %v1660, %v1677
        %v1694 = vadd.f32 %v1661, %v1678
        %v1695 = vadd.f32 %v1662, %v1679
        %v1696 = vadd.f32 %v1663, %v1680
        %v1697 = vadd.f32 %v1664, %v1681
        %v1698 = vadd.f32 %v1665, %v1682
        %v1699 = vadd.f32 %v1666, %v1683
        %v1700 = vadd.f32 %v1667, %v1684
        %v1701 = vadd.f32 %v1668, %v1685
        %v1702 = vld [vmem:[#allocation3 + $0x2] sm:$0xff]
        %v1703 = vld [vmem:[#allocation3 + $0xa] sm:$0xff]
        %v1704 = vld [vmem:[#allocation3 + $0x12] sm:$0xff]
        %v1705 = vld [vmem:[#allocation3 + $0x1a] sm:$0xff]
        %v1706 = vld [vmem:[#allocation3 + $0x22] sm:$0xff]
        %v1707 = vld [vmem:[#allocation3 + $0x2a] sm:$0xff]
        %v1708 = vld [vmem:[#allocation3 + $0x32] sm:$0xff]
        %v1709 = vld [vmem:[#allocation3 + $0x3a] sm:$0xff]
        %v1710 = vld [vmem:[#allocation3 + $0x42] sm:$0xff]
        %v1711 = vld [vmem:[#allocation3 + $0x4a] sm:$0xff]
        %v1712 = vld [vmem:[#allocation3 + $0x52] sm:$0xff]
        %v1713 = vld [vmem:[#allocation3 + $0x5a] sm:$0xff]
        %v1714 = vld [vmem:[#allocation3 + $0x62] sm:$0xff]
        %v1715 = vld [vmem:[#allocation3 + $0x6a] sm:$0xff]
        %v1716 = vld [vmem:[#allocation3 + $0x72] sm:$0xff]
        %v1717 = vld [vmem:[#allocation3 + $0x7a] sm:$0xff]
        %v1718 = vld [vmem:[#allocation3 + $0x82] sm:$0xff]
        %v1719 = vld [vmem:[#allocation3 + $0x8a] sm:$0xff]
        %v1720 = vld [vmem:[#allocation3 + $0x92] sm:$0xff]
        %v1721 = vperm.slane %v1370, 1
        %v1722 = vmul.f32 %v1702, %v1721
        %v1723 = vmul.f32 %v1703, %v1721
        %v1724 = vmul.f32 %v1704, %v1721
        %v1725 = vmul.f32 %v1705, %v1721
        %v1726 = vmul.f32 %v1706, %v1721
        %v1727 = vmul.f32 %v1707, %v1721
        %v1728 = vmul.f32 %v1708, %v1721
        %v1729 = vmul.f32 %v1709, %v1721
        %v1730 = vmul.f32 %v1710, %v1721
        %v1731 = vmul.f32 %v1711, %v1721
        %v1732 = vmul.f32 %v1712, %v1721
        %v1733 = vmul.f32 %v1713, %v1721
        %v1734 = vmul.f32 %v1714, %v1721
        %v1735 = vmul.f32 %v1715, %v1721
        %v1736 = vmul.f32 %v1716, %v1721
        %v1737 = vmul.f32 %v1717, %v1721
        %v1738 = vadd.f32 %v1686, %v1722
        %v1739 = vadd.f32 %v1687, %v1723
        %v1740 = vadd.f32 %v1688, %v1724
        %v1741 = vadd.f32 %v1689, %v1725
        %v1742 = vadd.f32 %v1690, %v1726
        %v1743 = vadd.f32 %v1691, %v1727
        %v1744 = vadd.f32 %v1692, %v1728
        %v1745 = vadd.f32 %v1693, %v1729
        %v1746 = vadd.f32 %v1694, %v1730
        %v1747 = vadd.f32 %v1695, %v1731
        %v1748 = vadd.f32 %v1696, %v1732
        %v1749 = vadd.f32 %v1697, %v1733
        %v1750 = vadd.f32 %v1698, %v1734
        %v1751 = vadd.f32 %v1699, %v1735
        %v1752 = vadd.f32 %v1700, %v1736
        %v1753 = vadd.f32 %v1701, %v1737
        %v1754 = vperm.slane %v1371, 1
        %v1755 = vmul.f32 %v1703, %v1754
        %v1756 = vmul.f32 %v1704, %v1754
        %v1757 = vmul.f32 %v1705, %v1754
        %v1758 = vmul.f32 %v1706, %v1754
        %v1759 = vmul.f32 %v1707, %v1754
        %v1760 = vmul.f32 %v1708, %v1754
        %v1761 = vmul.f32 %v1709, %v1754
        %v1762 = vmul.f32 %v1710, %v1754
        %v1763 = vmul.f32 %v1711, %v1754
        %v1764 = vmul.f32 %v1712, %v1754
        %v1765 = vmul.f32 %v1713, %v1754
        %v1766 = vmul.f32 %v1714, %v1754
        %v1767 = vmul.f32 %v1715, %v1754
        %v1768 = vmul.f32 %v1716, %v1754
        %v1769 = vmul.f32 %v1717, %v1754
        %v1770 = vmul.f32 %v1718, %v1754
        %v1771 = vadd.f32 %v1738, %v1755
        %v1772 = vadd.f32 %v1739, %v1756
        %v1773 = vadd.f32 %v1740, %v1757
        %v1774 = vadd.f32 %v1741, %v1758
        %v1775 = vadd.f32 %v1742, %v1759
        %v1776 = vadd.f32 %v1743, %v1760
        %v1777 = vadd.f32 %v1744, %v1761
        %v1778 = vadd.f32 %v1745, %v1762
        %v1779 = vadd.f32 %v1746, %v1763
        %v1780 = vadd.f32 %v1747, %v1764
        %v1781 = vadd.f32 %v1748, %v1765
        %v1782 = vadd.f32 %v1749, %v1766
        %v1783 = vadd.f32 %v1750, %v1767
        %v1784 = vadd.f32 %v1751, %v1768
        %v1785 = vadd.f32 %v1752, %v1769
        %v1786 = vadd.f32 %v1753, %v1770
        %v1787 = vperm.slane %v1372, 1
        %v1788 = vmul.f32 %v1704, %v1787
        %v1789 = vmul.f32 %v1705, %v1787
        %v1790 = vmul.f32 %v1706, %v1787
        %v1791 = vmul.f32 %v1707, %v1787
        %v1792 = vmul.f32 %v1708, %v1787
        %v1793 = vmul.f32 %v1709, %v1787
        %v1794 = vmul.f32 %v1710, %v1787
        %v1795 = vmul.f32 %v1711, %v1787
        %v1796 = vmul.f32 %v1712, %v1787
        %v1797 = vmul.f32 %v1713, %v1787
        %v1798 = vmul.f32 %v1714, %v1787
        %v1799 = vmul.f32 %v1715, %v1787
        %v1800 = vmul.f32 %v1716, %v1787
        %v1801 = vmul.f32 %v1717, %v1787
        %v1802 = vmul.f32 %v1718, %v1787
        %v1803 = vmul.f32 %v1719, %v1787
        %v1804 = vadd.f32 %v1771, %v1788
        %v1805 = vadd.f32 %v1772, %v1789
        %v1806 = vadd.f32 %v1773, %v1790
        %v1807 = vadd.f32 %v1774, %v1791
        %v1808 = vadd.f32 %v1775, %v1792
        %v1809 = vadd.f32 %v1776, %v1793
        %v1810 = vadd.f32 %v1777, %v1794
        %v1811 = vadd.f32 %v1778, %v1795
        %v1812 = vadd.f32 %v1779, %v1796
        %v1813 = vadd.f32 %v1780, %v1797
        %v1814 = vadd.f32 %v1781, %v1798
        %v1815 = vadd.f32 %v1782, %v1799
        %v1816 = vadd.f32 %v1783, %v1800
        %v1817 = vadd.f32 %v1784, %v1801
        %v1818 = vadd.f32 %v1785, %v1802
        %v1819 = vadd.f32 %v1786, %v1803
        %v1820 = vperm.slane %v1373, 1
        %v1821 = vmul.f32 %v1705, %v1820
        %v1822 = vmul.f32 %v1706, %v1820
        %v1823 = vmul.f32 %v1707, %v1820
        %v1824 = vmul.f32 %v1708, %v1820
        %v1825 = vmul.f32 %v1709, %v1820
        %v1826 = vmul.f32 %v1710, %v1820
        %v1827 = vmul.f32 %v1711, %v1820
        %v1828 = vmul.f32 %v1712, %v1820
        %v1829 = vmul.f32 %v1713, %v1820
        %v1830 = vmul.f32 %v1714, %v1820
        %v1831 = vmul.f32 %v1715, %v1820
        %v1832 = vmul.f32 %v1716, %v1820
        %v1833 = vmul.f32 %v1717, %v1820
        %v1834 = vmul.f32 %v1718, %v1820
        %v1835 = vmul.f32 %v1719, %v1820
        %v1836 = vmul.f32 %v1720, %v1820
        %v1837 = vadd.f32 %v1804, %v1821
        %v1838 = vadd.f32 %v1805, %v1822
        %v1839 = vadd.f32 %v1806, %v1823
        %v1840 = vadd.f32 %v1807, %v1824
        %v1841 = vadd.f32 %v1808, %v1825
        %v1842 = vadd.f32 %v1809, %v1826
        %v1843 = vadd.f32 %v1810, %v1827
        %v1844 = vadd.f32 %v1811, %v1828
        %v1845 = vadd.f32 %v1812, %v1829
        %v1846 = vadd.f32 %v1813, %v1830
        %v1847 = vadd.f32 %v1814, %v1831
        %v1848 = vadd.f32 %v1815, %v1832
        %v1849 = vadd.f32 %v1816, %v1833
        %v1850 = vadd.f32 %v1817, %v1834
        %v1851 = vadd.f32 %v1818, %v1835
        %v1852 = vadd.f32 %v1819, %v1836
        %v1853 = vld [vmem:[#allocation3 + $0x3] sm:$0xff]
        %v1854 = vld [vmem:[#allocation3 + $0xb] sm:$0xff]
        %v1855 = vld [vmem:[#allocation3 + $0x13] sm:$0xff]
        %v1856 = vld [vmem:[#allocation3 + $0x1b] sm:$0xff]
        %v1857 = vld [vmem:[#allocation3 + $0x23] sm:$0xff]
        %v1858 = vld [vmem:[#allocation3 + $0x2b] sm:$0xff]
        %v1859 = vld [vmem:[#allocation3 + $0x33] sm:$0xff]
        %v1860 = vld [vmem:[#allocation3 + $0x3b] sm:$0xff]
        %v1861 = vld [vmem:[#allocation3 + $0x43] sm:$0xff]
        %v1862 = vld [vmem:[#allocation3 + $0x4b] sm:$0xff]
        %v1863 = vld [vmem:[#allocation3 + $0x53] sm:$0xff]
        %v1864 = vld [vmem:[#allocation3 + $0x5b] sm:$0xff]
        %v1865 = vld [vmem:[#allocation3 + $0x63] sm:$0xff]
        %v1866 = vld [vmem:[#allocation3 + $0x6b] sm:$0xff]
        %v1867 = vld [vmem:[#allocation3 + $0x73] sm:$0xff]
        %v1868 = vld [vmem:[#allocation3 + $0x7b] sm:$0xff]
        %v1869 = vld [vmem:[#allocation3 + $0x83] sm:$0xff]
        %v1870 = vld [vmem:[#allocation3 + $0x8b] sm:$0xff]
        %v1871 = vld [vmem:[#allocation3 + $0x93] sm:$0xff]
        %v1872 = vperm.slane %v1370, 2
        %v1873 = vmul.f32 %v1853, %v1872
        %v1874 = vmul.f32 %v1854, %v1872
        %v1875 = vmul.f32 %v1855, %v1872
        %v1876 = vmul.f32 %v1856, %v1872
        %v1877 = vmul.f32 %v1857, %v1872
        %v1878 = vmul.f32 %v1858, %v1872
        %v1879 = vmul.f32 %v1859, %v1872
        %v1880 = vmul.f32 %v1860, %v1872
        %v1881 = vmul.f32 %v1861, %v1872
        %v1882 = vmul.f32 %v1862, %v1872
        %v1883 = vmul.f32 %v1863, %v1872
        %v1884 = vmul.f32 %v1864, %v1872
        %v1885 = vmul.f32 %v1865, %v1872
        %v1886 = vmul.f32 %v1866, %v1872
        %v1887 = vmul.f32 %v1867, %v1872
        %v1888 = vmul.f32 %v1868, %v1872
        %v1889 = vadd.f32 %v1837, %v1873
        %v1890 = vadd.f32 %v1838, %v1874
        %v1891 = vadd.f32 %v1839, %v1875
        %v1892 = vadd.f32 %v1840, %v1876
        %v1893 = vadd.f32 %v1841, %v1877
        %v1894 = vadd.f32 %v1842, %v1878
        %v1895 = vadd.f32 %v1843, %v1879
        %v1896 = vadd.f32 %v1844, %v1880
        %v1897 = vadd.f32 %v1845, %v1881
        %v1898 = vadd.f32 %v1846, %v1882
        %v1899 = vadd.f32 %v1847, %v1883
        %v1900 = vadd.f32 %v1848, %v1884
        %v1901 = vadd.f32 %v1849, %v1885
        %v1902 = vadd.f32 %v1850, %v1886
        %v1903 = vadd.f32 %v1851, %v1887
        %v1904 = vadd.f32 %v1852, %v1888
        %v1905 = vperm.slane %v1371, 2
        %v1906 = vmul.f32 %v1854, %v1905
        %v1907 = vmul.f32 %v1855, %v1905
        %v1908 = vmul.f32 %v1856, %v1905
        %v1909 = vmul.f32 %v1857, %v1905
        %v1910 = vmul.f32 %v1858, %v1905
        %v1911 = vmul.f32 %v1859, %v1905
        %v1912 = vmul.f32 %v1860, %v1905
        %v1913 = vmul.f32 %v1861, %v1905
        %v1914 = vmul.f32 %v1862, %v1905
        %v1915 = vmul.f32 %v1863, %v1905
        %v1916 = vmul.f32 %v1864, %v1905
        %v1917 = vmul.f32 %v1865, %v1905
        %v1918 = vmul.f32 %v1866, %v1905
        %v1919 = vmul.f32 %v1867, %v1905
        %v1920 = vmul.f32 %v1868, %v1905
        %v1921 = vmul.f32 %v1869, %v1905
        %v1922 = vadd.f32 %v1889, %v1906
        %v1923 = vadd.f32 %v1890, %v1907
        %v1924 = vadd.f32 %v1891, %v1908
        %v1925 = vadd.f32 %v1892, %v1909
        %v1926 = vadd.f32 %v1893, %v1910
        %v1927 = vadd.f32 %v1894, %v1911
        %v1928 = vadd.f32 %v1895, %v1912
        %v1929 = vadd.f32 %v1896, %v1913
        %v1930 = vadd.f32 %v1897, %v1914
        %v1931 = vadd.f32 %v1898, %v1915
        %v1932 = vadd.f32 %v1899, %v1916
        %v1933 = vadd.f32 %v1900, %v1917
        %v1934 = vadd.f32 %v1901, %v1918
        %v1935 = vadd.f32 %v1902, %v1919
        %v1936 = vadd.f32 %v1903, %v1920
        %v1937 = vadd.f32 %v1904, %v1921
        %v1938 = vperm.slane %v1372, 2
        %v1939 = vmul.f32 %v1855, %v1938
        %v1940 = vmul.f32 %v1856, %v1938
        %v1941 = vmul.f32 %v1857, %v1938
        %v1942 = vmul.f32 %v1858, %v1938
        %v1943 = vmul.f32 %v1859, %v1938
        %v1944 = vmul.f32 %v1860, %v1938
        %v1945 = vmul.f32 %v1861, %v1938
        %v1946 = vmul.f32 %v1862, %v1938
        %v1947 = vmul.f32 %v1863, %v1938
        %v1948 = vmul.f32 %v1864, %v1938
        %v1949 = vmul.f32 %v1865, %v1938
        %v1950 = vmul.f32 %v1866, %v1938
        %v1951 = vmul.f32 %v1867, %v1938
        %v1952 = vmul.f32 %v1868, %v1938
        %v1953 = vmul.f32 %v1869, %v1938
        %v1954 = vmul.f32 %v1870, %v1938
        %v1955 = vadd.f32 %v1922, %v1939
        %v1956 = vadd.f32 %v1923, %v1940
        %v1957 = vadd.f32 %v1924, %v1941
        %v1958 = vadd.f32 %v1925, %v1942
        %v1959 = vadd.f32 %v1926, %v1943
        %v1960 = vadd.f32 %v1927, %v1944
        %v1961 = vadd.f32 %v1928, %v1945
        %v1962 = vadd.f32 %v1929, %v1946
        %v1963 = vadd.f32 %v1930, %v1947
        %v1964 = vadd.f32 %v1931, %v1948
        %v1965 = vadd.f32 %v1932, %v1949
        %v1966 = vadd.f32 %v1933, %v1950
        %v1967 = vadd.f32 %v1934, %v1951
        %v1968 = vadd.f32 %v1935, %v1952
        %v1969 = vadd.f32 %v1936, %v1953
        %v1970 = vadd.f32 %v1937, %v1954
        %v1971 = vperm.slane %v1373, 2
        %v1972 = vmul.f32 %v1856, %v1971
        %v1973 = vmul.f32 %v1857, %v1971
        %v1974 = vmul.f32 %v1858, %v1971
        %v1975 = vmul.f32 %v1859, %v1971
        %v1976 = vmul.f32 %v1860, %v1971
        %v1977 = vmul.f32 %v1861, %v1971
        %v1978 = vmul.f32 %v1862, %v1971
        %v1979 = vmul.f32 %v1863, %v1971
        %v1980 = vmul.f32 %v1864, %v1971
        %v1981 = vmul.f32 %v1865, %v1971
        %v1982 = vmul.f32 %v1866, %v1971
        %v1983 = vmul.f32 %v1867, %v1971
        %v1984 = vmul.f32 %v1868, %v1971
        %v1985 = vmul.f32 %v1869, %v1971
        %v1986 = vmul.f32 %v1870, %v1971
        %v1987 = vmul.f32 %v1871, %v1971
        %v1988 = vadd.f32 %v1955, %v1972
        %v1989 = vadd.f32 %v1956, %v1973
        %v1990 = vadd.f32 %v1957, %v1974
        %v1991 = vadd.f32 %v1958, %v1975
        %v1992 = vadd.f32 %v1959, %v1976
        %v1993 = vadd.f32 %v1960, %v1977
        %v1994 = vadd.f32 %v1961, %v1978
        %v1995 = vadd.f32 %v1962, %v1979
        %v1996 = vadd.f32 %v1963, %v1980
        %v1997 = vadd.f32 %v1964, %v1981
        %v1998 = vadd.f32 %v1965, %v1982
        %v1999 = vadd.f32 %v1966, %v1983
        %v2000 = vadd.f32 %v1967, %v1984
        %v2001 = vadd.f32 %v1968, %v1985
        %v2002 = vadd.f32 %v1969, %v1986
        %v2003 = vadd.f32 %v1970, %v1987
        %v2004 = vld [vmem:[#allocation3 + $0x4] sm:$0xff]
        %v2005 = vld [vmem:[#allocation3 + $0xc] sm:$0xff]
        %v2006 = vld [vmem:[#allocation3 + $0x14] sm:$0xff]
        %v2007 = vld [vmem:[#allocation3 + $0x1c] sm:$0xff]
        %v2008 = vld [vmem:[#allocation3 + $0x24] sm:$0xff]
        %v2009 = vld [vmem:[#allocation3 + $0x2c] sm:$0xff]
        %v2010 = vld [vmem:[#allocation3 + $0x34] sm:$0xff]
        %v2011 = vld [vmem:[#allocation3 + $0x3c] sm:$0xff]
        %v2012 = vld [vmem:[#allocation3 + $0x44] sm:$0xff]
        %v2013 = vld [vmem:[#allocation3 + $0x4c] sm:$0xff]
        %v2014 = vld [vmem:[#allocation3 + $0x54] sm:$0xff]
        %v2015 = vld [vmem:[#allocation3 + $0x5c] sm:$0xff]
        %v2016 = vld [vmem:[#allocation3 + $0x64] sm:$0xff]
        %v2017 = vld [vmem:[#allocation3 + $0x6c] sm:$0xff]
        %v2018 = vld [vmem:[#allocation3 + $0x74] sm:$0xff]
        %v2019 = vld [vmem:[#allocation3 + $0x7c] sm:$0xff]
        %v2020 = vld [vmem:[#allocation3 + $0x84] sm:$0xff]
        %v2021 = vld [vmem:[#allocation3 + $0x8c] sm:$0xff]
        %v2022 = vld [vmem:[#allocation3 + $0x94] sm:$0xff]
        %v2023 = vperm.slane %v1370, 3
        %v2024 = vmul.f32 %v2004, %v2023
        %v2025 = vmul.f32 %v2005, %v2023
        %v2026 = vmul.f32 %v2006, %v2023
        %v2027 = vmul.f32 %v2007, %v2023
        %v2028 = vmul.f32 %v2008, %v2023
        %v2029 = vmul.f32 %v2009, %v2023
        %v2030 = vmul.f32 %v2010, %v2023
        %v2031 = vmul.f32 %v2011, %v2023
        %v2032 = vmul.f32 %v2012, %v2023
        %v2033 = vmul.f32 %v2013, %v2023
        %v2034 = vmul.f32 %v2014, %v2023
        %v2035 = vmul.f32 %v2015, %v2023
        %v2036 = vmul.f32 %v2016, %v2023
        %v2037 = vmul.f32 %v2017, %v2023
        %v2038 = vmul.f32 %v2018, %v2023
        %v2039 = vmul.f32 %v2019, %v2023
        %v2040 = vadd.f32 %v1988, %v2024
        %v2041 = vadd.f32 %v1989, %v2025
        %v2042 = vadd.f32 %v1990, %v2026
        %v2043 = vadd.f32 %v1991, %v2027
        %v2044 = vadd.f32 %v1992, %v2028
        %v2045 = vadd.f32 %v1993, %v2029
        %v2046 = vadd.f32 %v1994, %v2030
        %v2047 = vadd.f32 %v1995, %v2031
        %v2048 = vadd.f32 %v1996, %v2032
        %v2049 = vadd.f32 %v1997, %v2033
        %v2050 = vadd.f32 %v1998, %v2034
        %v2051 = vadd.f32 %v1999, %v2035
        %v2052 = vadd.f32 %v2000, %v2036
        %v2053 = vadd.f32 %v2001, %v2037
        %v2054 = vadd.f32 %v2002, %v2038
        %v2055 = vadd.f32 %v2003, %v2039
        %v2056 = vperm.slane %v1371, 3
        %v2057 = vmul.f32 %v2005, %v2056
        %v2058 = vmul.f32 %v2006, %v2056
        %v2059 = vmul.f32 %v2007, %v2056
        %v2060 = vmul.f32 %v2008, %v2056
        %v2061 = vmul.f32 %v2009, %v2056
        %v2062 = vmul.f32 %v2010, %v2056
        %v2063 = vmul.f32 %v2011, %v2056
        %v2064 = vmul.f32 %v2012, %v2056
        %v2065 = vmul.f32 %v2013, %v2056
        %v2066 = vmul.f32 %v2014, %v2056
        %v2067 = vmul.f32 %v2015, %v2056
        %v2068 = vmul.f32 %v2016, %v2056
        %v2069 = vmul.f32 %v2017, %v2056
        %v2070 = vmul.f32 %v2018, %v2056
        %v2071 = vmul.f32 %v2019, %v2056
        %v2072 = vmul.f32 %v2020, %v2056
        %v2073 = vadd.f32 %v2040, %v2057
        %v2074 = vadd.f32 %v2041, %v2058
        %v2075 = vadd.f32 %v2042, %v2059
        %v2076 = vadd.f32 %v2043, %v2060
        %v2077 = vadd.f32 %v2044, %v2061
        %v2078 = vadd.f32 %v2045, %v2062
        %v2079 = vadd.f32 %v2046, %v2063
        %v2080 = vadd.f32 %v2047, %v2064
        %v2081 = vadd.f32 %v2048, %v2065
        %v2082 = vadd.f32 %v2049, %v2066
        %v2083 = vadd.f32 %v2050, %v2067
        %v2084 = vadd.f32 %v2051, %v2068
        %v2085 = vadd.f32 %v2052, %v2069
        %v2086 = vadd.f32 %v2053, %v2070
        %v2087 = vadd.f32 %v2054, %v2071
        %v2088 = vadd.f32 %v2055, %v2072
        %v2089 = vperm.slane %v1372, 3
        %v2090 = vmul.f32 %v2006, %v2089
        %v2091 = vmul.f32 %v2007, %v2089
        %v2092 = vmul.f32 %v2008, %v2089
        %v2093 = vmul.f32 %v2009, %v2089
        %v2094 = vmul.f32 %v2010, %v2089
        %v2095 = vmul.f32 %v2011, %v2089
        %v2096 = vmul.f32 %v2012, %v2089
        %v2097 = vmul.f32 %v2013, %v2089
        %v2098 = vmul.f32 %v2014, %v2089
        %v2099 = vmul.f32 %v2015, %v2089
        %v2100 = vmul.f32 %v2016, %v2089
        %v2101 = vmul.f32 %v2017, %v2089
        %v2102 = vmul.f32 %v2018, %v2089
        %v2103 = vmul.f32 %v2019, %v2089
        %v2104 = vmul.f32 %v2020, %v2089
        %v2105 = vmul.f32 %v2021, %v2089
        %v2106 = vadd.f32 %v2073, %v2090
        %v2107 = vadd.f32 %v2074, %v2091
        %v2108 = vadd.f32 %v2075, %v2092
        %v2109 = vadd.f32 %v2076, %v2093
        %v2110 = vadd.f32 %v2077, %v2094
        %v2111 = vadd.f32 %v2078, %v2095
        %v2112 = vadd.f32 %v2079, %v2096
        %v2113 = vadd.f32 %v2080, %v2097
        %v2114 = vadd.f32 %v2081, %v2098
        %v2115 = vadd.f32 %v2082, %v2099
        %v2116 = vadd.f32 %v2083, %v2100
        %v2117 = vadd.f32 %v2084, %v2101
        %v2118 = vadd.f32 %v2085, %v2102
        %v2119 = vadd.f32 %v2086, %v2103
        %v2120 = vadd.f32 %v2087, %v2104
        %v2121 = vadd.f32 %v2088, %v2105
        %v2122 = vperm.slane %v1373, 3
        %v2123 = vmul.f32 %v2007, %v2122
        %v2124 = vmul.f32 %v2008, %v2122
        %v2125 = vmul.f32 %v2009, %v2122
        %v2126 = vmul.f32 %v2010, %v2122
        %v2127 = vmul.f32 %v2011, %v2122
        %v2128 = vmul.f32 %v2012, %v2122
        %v2129 = vmul.f32 %v2013, %v2122
        %v2130 = vmul.f32 %v2014, %v2122
        %v2131 = vmul.f32 %v2015, %v2122
        %v2132 = vmul.f32 %v2016, %v2122
        %v2133 = vmul.f32 %v2017, %v2122
        %v2134 = vmul.f32 %v2018, %v2122
        %v2135 = vmul.f32 %v2019, %v2122
        %v2136 = vmul.f32 %v2020, %v2122
        %v2137 = vmul.f32 %v2021, %v2122
        %v2138 = vmul.f32 %v2022, %v2122
        %v2139 = vadd.f32 %v2106, %v2123
        %v2140 = vadd.f32 %v2107, %v2124
        %v2141 = vadd.f32 %v2108, %v2125
        %v2142 = vadd.f32 %v2109, %v2126
        %v2143 = vadd.f32 %v2110, %v2127
        %v2144 = vadd.f32 %v2111, %v2128
        %v2145 = vadd.f32 %v2112, %v2129
        %v2146 = vadd.f32 %v2113, %v2130
        %v2147 = vadd.f32 %v2114, %v2131
        %v2148 = vadd.f32 %v2115, %v2132
        %v2149 = vadd.f32 %v2116, %v2133
        %v2150 = vadd.f32 %v2117, %v2134
        %v2151 = vadd.f32 %v2118, %v2135
        %v2152 = vadd.f32 %v2119, %v2136
        %v2153 = vadd.f32 %v2120, %v2137
        %v2154 = vadd.f32 %v2121, %v2138
        %v2155 = vld [vmem:[#allocation3 + $0x5] sm:$0xff]
        %v2156 = vld [vmem:[#allocation3 + $0xd] sm:$0xff]
        %v2157 = vld [vmem:[#allocation3 + $0x15] sm:$0xff]
        %v2158 = vld [vmem:[#allocation3 + $0x1d] sm:$0xff]
        %v2159 = vld [vmem:[#allocation3 + $0x25] sm:$0xff]
        %v2160 = vld [vmem:[#allocation3 + $0x2d] sm:$0xff]
        %v2161 = vld [vmem:[#allocation3 + $0x35] sm:$0xff]
        %v2162 = vld [vmem:[#allocation3 + $0x3d] sm:$0xff]
        %v2163 = vld [vmem:[#allocation3 + $0x45] sm:$0xff]
        %v2164 = vld [vmem:[#allocation3 + $0x4d] sm:$0xff]
        %v2165 = vld [vmem:[#allocation3 + $0x55] sm:$0xff]
        %v2166 = vld [vmem:[#allocation3 + $0x5d] sm:$0xff]
        %v2167 = vld [vmem:[#allocation3 + $0x65] sm:$0xff]
        %v2168 = vld [vmem:[#allocation3 + $0x6d] sm:$0xff]
        %v2169 = vld [vmem:[#allocation3 + $0x75] sm:$0xff]
        %v2170 = vld [vmem:[#allocation3 + $0x7d] sm:$0xff]
        %v2171 = vld [vmem:[#allocation3 + $0x85] sm:$0xff]
        %v2172 = vld [vmem:[#allocation3 + $0x8d] sm:$0xff]
        %v2173 = vld [vmem:[#allocation3 + $0x95] sm:$0xff]
        %v2174 = vperm.slane %v1370, 4
        %v2175 = vmul.f32 %v2155, %v2174
        %v2176 = vmul.f32 %v2156, %v2174
        %v2177 = vmul.f32 %v2157, %v2174
        %v2178 = vmul.f32 %v2158, %v2174
        %v2179 = vmul.f32 %v2159, %v2174
        %v2180 = vmul.f32 %v2160, %v2174
        %v2181 = vmul.f32 %v2161, %v2174
        %v2182 = vmul.f32 %v2162, %v2174
        %v2183 = vmul.f32 %v2163, %v2174
        %v2184 = vmul.f32 %v2164, %v2174
        %v2185 = vmul.f32 %v2165, %v2174
        %v2186 = vmul.f32 %v2166, %v2174
        %v2187 = vmul.f32 %v2167, %v2174
        %v2188 = vmul.f32 %v2168, %v2174
        %v2189 = vmul.f32 %v2169, %v2174
        %v2190 = vmul.f32 %v2170, %v2174
        %v2191 = vadd.f32 %v2139, %v2175
        %v2192 = vadd.f32 %v2140, %v2176
        %v2193 = vadd.f32 %v2141, %v2177
        %v2194 = vadd.f32 %v2142, %v2178
        %v2195 = vadd.f32 %v2143, %v2179
        %v2196 = vadd.f32 %v2144, %v2180
        %v2197 = vadd.f32 %v2145, %v2181
        %v2198 = vadd.f32 %v2146, %v2182
        %v2199 = vadd.f32 %v2147, %v2183
        %v2200 = vadd.f32 %v2148, %v2184
        %v2201 = vadd.f32 %v2149, %v2185
        %v2202 = vadd.f32 %v2150, %v2186
        %v2203 = vadd.f32 %v2151, %v2187
        %v2204 = vadd.f32 %v2152, %v2188
        %v2205 = vadd.f32 %v2153, %v2189
        %v2206 = vadd.f32 %v2154, %v2190
        %v2207 = vperm.slane %v1371, 4
        %v2208 = vmul.f32 %v2156, %v2207
        %v2209 = vmul.f32 %v2157, %v2207
        %v2210 = vmul.f32 %v2158, %v2207
        %v2211 = vmul.f32 %v2159, %v2207
        %v2212 = vmul.f32 %v2160, %v2207
        %v2213 = vmul.f32 %v2161, %v2207
        %v2214 = vmul.f32 %v2162, %v2207
        %v2215 = vmul.f32 %v2163, %v2207
        %v2216 = vmul.f32 %v2164, %v2207
        %v2217 = vmul.f32 %v2165, %v2207
        %v2218 = vmul.f32 %v2166, %v2207
        %v2219 = vmul.f32 %v2167, %v2207
        %v2220 = vmul.f32 %v2168, %v2207
        %v2221 = vmul.f32 %v2169, %v2207
        %v2222 = vmul.f32 %v2170, %v2207
        %v2223 = vmul.f32 %v2171, %v2207
        %v2224 = vadd.f32 %v2191, %v2208
        %v2225 = vadd.f32 %v2192, %v2209
        %v2226 = vadd.f32 %v2193, %v2210
        %v2227 = vadd.f32 %v2194, %v2211
        %v2228 = vadd.f32 %v2195, %v2212
        %v2229 = vadd.f32 %v2196, %v2213
        %v2230 = vadd.f32 %v2197, %v2214
        %v2231 = vadd.f32 %v2198, %v2215
        %v2232 = vadd.f32 %v2199, %v2216
        %v2233 = vadd.f32 %v2200, %v2217
        %v2234 = vadd.f32 %v2201, %v2218
        %v2235 = vadd.f32 %v2202, %v2219
        %v2236 = vadd.f32 %v2203, %v2220
        %v2237 = vadd.f32 %v2204, %v2221
        %v2238 = vadd.f32 %v2205, %v2222
        %v2239 = vadd.f32 %v2206, %v2223
        %v2240 = vperm.slane %v1372, 4
        %v2241 = vmul.f32 %v2157, %v2240
        %v2242 = vmul.f32 %v2158, %v2240
        %v2243 = vmul.f32 %v2159, %v2240
        %v2244 = vmul.f32 %v2160, %v2240
        %v2245 = vmul.f32 %v2161, %v2240
        %v2246 = vmul.f32 %v2162, %v2240
        %v2247 = vmul.f32 %v2163, %v2240
        %v2248 = vmul.f32 %v2164, %v2240
        %v2249 = vmul.f32 %v2165, %v2240
        %v2250 = vmul.f32 %v2166, %v2240
        %v2251 = vmul.f32 %v2167, %v2240
        %v2252 = vmul.f32 %v2168, %v2240
        %v2253 = vmul.f32 %v2169, %v2240
        %v2254 = vmul.f32 %v2170, %v2240
        %v2255 = vmul.f32 %v2171, %v2240
        %v2256 = vmul.f32 %v2172, %v2240
        %v2257 = vadd.f32 %v2224, %v2241
        %v2258 = vadd.f32 %v2225, %v2242
        %v2259 = vadd.f32 %v2226, %v2243
        %v2260 = vadd.f32 %v2227, %v2244
        %v2261 = vadd.f32 %v2228, %v2245
        %v2262 = vadd.f32 %v2229, %v2246
        %v2263 = vadd.f32 %v2230, %v2247
        %v2264 = vadd.f32 %v2231, %v2248
        %v2265 = vadd.f32 %v2232, %v2249
        %v2266 = vadd.f32 %v2233, %v2250
        %v2267 = vadd.f32 %v2234, %v2251
        %v2268 = vadd.f32 %v2235, %v2252
        %v2269 = vadd.f32 %v2236, %v2253
        %v2270 = vadd.f32 %v2237, %v2254
        %v2271 = vadd.f32 %v2238, %v2255
        %v2272 = vadd.f32 %v2239, %v2256
        %v2273 = vperm.slane %v1373, 4
        %v2274 = vmul.f32 %v2158, %v2273
        %v2275 = vmul.f32 %v2159, %v2273
        %v2276 = vmul.f32 %v2160, %v2273
        %v2277 = vmul.f32 %v2161, %v2273
        %v2278 = vmul.f32 %v2162, %v2273
        %v2279 = vmul.f32 %v2163, %v2273
        %v2280 = vmul.f32 %v2164, %v2273
        %v2281 = vmul.f32 %v2165, %v2273
        %v2282 = vmul.f32 %v2166, %v2273
        %v2283 = vmul.f32 %v2167, %v2273
        %v2284 = vmul.f32 %v2168, %v2273
        %v2285 = vmul.f32 %v2169, %v2273
        %v2286 = vmul.f32 %v2170, %v2273
        %v2287 = vmul.f32 %v2171, %v2273
        %v2288 = vmul.f32 %v2172, %v2273
        %v2289 = vmul.f32 %v2173, %v2273
        %v2290 = vadd.f32 %v2257, %v2274
        %v2291 = vadd.f32 %v2258, %v2275
        %v2292 = vadd.f32 %v2259, %v2276
        %v2293 = vadd.f32 %v2260, %v2277
        %v2294 = vadd.f32 %v2261, %v2278
        %v2295 = vadd.f32 %v2262, %v2279
        %v2296 = vadd.f32 %v2263, %v2280
        %v2297 = vadd.f32 %v2264, %v2281
        %v2298 = vadd.f32 %v2265, %v2282
        %v2299 = vadd.f32 %v2266, %v2283
        %v2300 = vadd.f32 %v2267, %v2284
        %v2301 = vadd.f32 %v2268, %v2285
        %v2302 = vadd.f32 %v2269, %v2286
        %v2303 = vadd.f32 %v2270, %v2287
        %v2304 = vadd.f32 %v2271, %v2288
        %v2305 = vadd.f32 %v2272, %v2289
        %v2306 = vld [vmem:[#allocation3 + $0x6] sm:$0xff]
        %v2307 = vld [vmem:[#allocation3 + $0xe] sm:$0xff]
        %v2308 = vld [vmem:[#allocation3 + $0x16] sm:$0xff]
        %v2309 = vld [vmem:[#allocation3 + $0x1e] sm:$0xff]
        %v2310 = vld [vmem:[#allocation3 + $0x26] sm:$0xff]
        %v2311 = vld [vmem:[#allocation3 + $0x2e] sm:$0xff]
        %v2312 = vld [vmem:[#allocation3 + $0x36] sm:$0xff]
        %v2313 = vld [vmem:[#allocation3 + $0x3e] sm:$0xff]
        %v2314 = vld [vmem:[#allocation3 + $0x46] sm:$0xff]
        %v2315 = vld [vmem:[#allocation3 + $0x4e] sm:$0xff]
        %v2316 = vld [vmem:[#allocation3 + $0x56] sm:$0xff]
        %v2317 = vld [vmem:[#allocation3 + $0x5e] sm:$0xff]
        %v2318 = vld [vmem:[#allocation3 + $0x66] sm:$0xff]
        %v2319 = vld [vmem:[#allocation3 + $0x6e] sm:$0xff]
        %v2320 = vld [vmem:[#allocation3 + $0x76] sm:$0xff]
        %v2321 = vld [vmem:[#allocation3 + $0x7e] sm:$0xff]
        %v2322 = vld [vmem:[#allocation3 + $0x86] sm:$0xff]
        %v2323 = vld [vmem:[#allocation3 + $0x8e] sm:$0xff]
        %v2324 = vld [vmem:[#allocation3 + $0x96] sm:$0xff]
        %v2325 = vperm.slane %v1370, 5
        %v2326 = vmul.f32 %v2306, %v2325
        %v2327 = vmul.f32 %v2307, %v2325
        %v2328 = vmul.f32 %v2308, %v2325
        %v2329 = vmul.f32 %v2309, %v2325
        %v2330 = vmul.f32 %v2310, %v2325
        %v2331 = vmul.f32 %v2311, %v2325
        %v2332 = vmul.f32 %v2312, %v2325
        %v2333 = vmul.f32 %v2313, %v2325
        %v2334 = vmul.f32 %v2314, %v2325
        %v2335 = vmul.f32 %v2315, %v2325
        %v2336 = vmul.f32 %v2316, %v2325
        %v2337 = vmul.f32 %v2317, %v2325
        %v2338 = vmul.f32 %v2318, %v2325
        %v2339 = vmul.f32 %v2319, %v2325
        %v2340 = vmul.f32 %v2320, %v2325
        %v2341 = vmul.f32 %v2321, %v2325
        %v2342 = vadd.f32 %v2290, %v2326
        %v2343 = vadd.f32 %v2291, %v2327
        %v2344 = vadd.f32 %v2292, %v2328
        %v2345 = vadd.f32 %v2293, %v2329
        %v2346 = vadd.f32 %v2294, %v2330
        %v2347 = vadd.f32 %v2295, %v2331
        %v2348 = vadd.f32 %v2296, %v2332
        %v2349 = vadd.f32 %v2297, %v2333
        %v2350 = vadd.f32 %v2298, %v2334
        %v2351 = vadd.f32 %v2299, %v2335
        %v2352 = vadd.f32 %v2300, %v2336
        %v2353 = vadd.f32 %v2301, %v2337
        %v2354 = vadd.f32 %v2302, %v2338
        %v2355 = vadd.f32 %v2303, %v2339
        %v2356 = vadd.f32 %v2304, %v2340
        %v2357 = vadd.f32 %v2305, %v2341
        %v2358 = vperm.slane %v1371, 5
        %v2359 = vmul.f32 %v2307, %v2358
        %v2360 = vmul.f32 %v2308, %v2358
        %v2361 = vmul.f32 %v2309, %v2358
        %v2362 = vmul.f32 %v2310, %v2358
        %v2363 = vmul.f32 %v2311, %v2358
        %v2364 = vmul.f32 %v2312, %v2358
        %v2365 = vmul.f32 %v2313, %v2358
        %v2366 = vmul.f32 %v2314, %v2358
        %v2367 = vmul.f32 %v2315, %v2358
        %v2368 = vmul.f32 %v2316, %v2358
        %v2369 = vmul.f32 %v2317, %v2358
        %v2370 = vmul.f32 %v2318, %v2358
        %v2371 = vmul.f32 %v2319, %v2358
        %v2372 = vmul.f32 %v2320, %v2358
        %v2373 = vmul.f32 %v2321, %v2358
        %v2374 = vmul.f32 %v2322, %v2358
        %v2375 = vadd.f32 %v2342, %v2359
        %v2376 = vadd.f32 %v2343, %v2360
        %v2377 = vadd.f32 %v2344, %v2361
        %v2378 = vadd.f32 %v2345, %v2362
        %v2379 = vadd.f32 %v2346, %v2363
        %v2380 = vadd.f32 %v2347, %v2364
        %v2381 = vadd.f32 %v2348, %v2365
        %v2382 = vadd.f32 %v2349, %v2366
        %v2383 = vadd.f32 %v2350, %v2367
        %v2384 = vadd.f32 %v2351, %v2368
        %v2385 = vadd.f32 %v2352, %v2369
        %v2386 = vadd.f32 %v2353, %v2370
        %v2387 = vadd.f32 %v2354, %v2371
        %v2388 = vadd.f32 %v2355, %v2372
        %v2389 = vadd.f32 %v2356, %v2373
        %v2390 = vadd.f32 %v2357, %v2374
        %v2391 = vperm.slane %v1372, 5
        %v2392 = vmul.f32 %v2308, %v2391
        %v2393 = vmul.f32 %v2309, %v2391
        %v2394 = vmul.f32 %v2310, %v2391
        %v2395 = vmul.f32 %v2311, %v2391
        %v2396 = vmul.f32 %v2312, %v2391
        %v2397 = vmul.f32 %v2313, %v2391
        %v2398 = vmul.f32 %v2314, %v2391
        %v2399 = vmul.f32 %v2315, %v2391
        %v2400 = vmul.f32 %v2316, %v2391
        %v2401 = vmul.f32 %v2317, %v2391
        %v2402 = vmul.f32 %v2318, %v2391
        %v2403 = vmul.f32 %v2319, %v2391
        %v2404 = vmul.f32 %v2320, %v2391
        %v2405 = vmul.f32 %v2321, %v2391
        %v2406 = vmul.f32 %v2322, %v2391
        %v2407 = vmul.f32 %v2323, %v2391
        %v2408 = vadd.f32 %v2375, %v2392
        %v2409 = vadd.f32 %v2376, %v2393
        %v2410 = vadd.f32 %v2377, %v2394
        %v2411 = vadd.f32 %v2378, %v2395
        %v2412 = vadd.f32 %v2379, %v2396
        %v2413 = vadd.f32 %v2380, %v2397
        %v2414 = vadd.f32 %v2381, %v2398
        %v2415 = vadd.f32 %v2382, %v2399
        %v2416 = vadd.f32 %v2383, %v2400
        %v2417 = vadd.f32 %v2384, %v2401
        %v2418 = vadd.f32 %v2385, %v2402
        %v2419 = vadd.f32 %v2386, %v2403
        %v2420 = vadd.f32 %v2387, %v2404
        %v2421 = vadd.f32 %v2388, %v2405
        %v2422 = vadd.f32 %v2389, %v2406
        %v2423 = vadd.f32 %v2390, %v2407
        %v2424 = vperm.slane %v1373, 5
        %v2425 = vmul.f32 %v2309, %v2424
        %v2426 = vmul.f32 %v2310, %v2424
        %v2427 = vmul.f32 %v2311, %v2424
        %v2428 = vmul.f32 %v2312, %v2424
        %v2429 = vmul.f32 %v2313, %v2424
        %v2430 = vmul.f32 %v2314, %v2424
        %v2431 = vmul.f32 %v2315, %v2424
        %v2432 = vmul.f32 %v2316, %v2424
        %v2433 = vmul.f32 %v2317, %v2424
        %v2434 = vmul.f32 %v2318, %v2424
        %v2435 = vmul.f32 %v2319, %v2424
        %v2436 = vmul.f32 %v2320, %v2424
        %v2437 = vmul.f32 %v2321, %v2424
        %v2438 = vmul.f32 %v2322, %v2424
        %v2439 = vmul.f32 %v2323, %v2424
        %v2440 = vmul.f32 %v2324, %v2424
        %v2441 = vadd.f32 %v2408, %v2425
        %v2442 = vadd.f32 %v2409, %v2426
        %v2443 = vadd.f32 %v2410, %v2427
        %v2444 = vadd.f32 %v2411, %v2428
        %v2445 = vadd.f32 %v2412, %v2429
        %v2446 = vadd.f32 %v2413, %v2430
        %v2447 = vadd.f32 %v2414, %v2431
        %v2448 = vadd.f32 %v2415, %v2432
        %v2449 = vadd.f32 %v2416, %v2433
        %v2450 = vadd.f32 %v2417, %v2434
        %v2451 = vadd.f32 %v2418, %v2435
        %v2452 = vadd.f32 %v2419, %v2436
        %v2453 = vadd.f32 %v2420, %v2437
        %v2454 = vadd.f32 %v2421, %v2438
        %v2455 = vadd.f32 %v2422, %v2439
        %v2456 = vadd.f32 %v2423, %v2440
        %v2457 = vld [vmem:[#allocation3 + $0x7] sm:$0xff]
        %v2458 = vld [vmem:[#allocation3 + $0xf] sm:$0xff]
        %v2459 = vld [vmem:[#allocation3 + $0x17] sm:$0xff]
        %v2460 = vld [vmem:[#allocation3 + $0x1f] sm:$0xff]
        %v2461 = vld [vmem:[#allocation3 + $0x27] sm:$0xff]
        %v2462 = vld [vmem:[#allocation3 + $0x2f] sm:$0xff]
        %v2463 = vld [vmem:[#allocation3 + $0x37] sm:$0xff]
        %v2464 = vld [vmem:[#allocation3 + $0x3f] sm:$0xff]
        %v2465 = vld [vmem:[#allocation3 + $0x47] sm:$0xff]
        %v2466 = vld [vmem:[#allocation3 + $0x4f] sm:$0xff]
        %v2467 = vld [vmem:[#allocation3 + $0x57] sm:$0xff]
        %v2468 = vld [vmem:[#allocation3 + $0x5f] sm:$0xff]
        %v2469 = vld [vmem:[#allocation3 + $0x67] sm:$0xff]
        %v2470 = vld [vmem:[#allocation3 + $0x6f] sm:$0xff]
        %v2471 = vld [vmem:[#allocation3 + $0x77] sm:$0xff]
        %v2472 = vld [vmem:[#allocation3 + $0x7f] sm:$0xff]
        %v2473 = vld [vmem:[#allocation3 + $0x87] sm:$0xff]
        %v2474 = vld [vmem:[#allocation3 + $0x8f] sm:$0xff]
        %v2475 = vld [vmem:[#allocation3 + $0x97] sm:$0xff]
        %v2476 = vperm.slane %v1370, 6
        %v2477 = vmul.f32 %v2457, %v2476
        %v2478 = vmul.f32 %v2458, %v2476
        %v2479 = vmul.f32 %v2459, %v2476
        %v2480 = vmul.f32 %v2460, %v2476
        %v2481 = vmul.f32 %v2461, %v2476
        %v2482 = vmul.f32 %v2462, %v2476
        %v2483 = vmul.f32 %v2463, %v2476
        %v2484 = vmul.f32 %v2464, %v2476
        %v2485 = vmul.f32 %v2465, %v2476
        %v2486 = vmul.f32 %v2466, %v2476
        %v2487 = vmul.f32 %v2467, %v2476
        %v2488 = vmul.f32 %v2468, %v2476
        %v2489 = vmul.f32 %v2469, %v2476
        %v2490 = vmul.f32 %v2470, %v2476
        %v2491 = vmul.f32 %v2471, %v2476
        %v2492 = vmul.f32 %v2472, %v2476
        %v2493 = vadd.f32 %v2441, %v2477
        %v2494 = vadd.f32 %v2442, %v2478
        %v2495 = vadd.f32 %v2443, %v2479
        %v2496 = vadd.f32 %v2444, %v2480
        %v2497 = vadd.f32 %v2445, %v2481
        %v2498 = vadd.f32 %v2446, %v2482
        %v2499 = vadd.f32 %v2447, %v2483
        %v2500 = vadd.f32 %v2448, %v2484
        %v2501 = vadd.f32 %v2449, %v2485
        %v2502 = vadd.f32 %v2450, %v2486
        %v2503 = vadd.f32 %v2451, %v2487
        %v2504 = vadd.f32 %v2452, %v2488
        %v2505 = vadd.f32 %v2453, %v2489
        %v2506 = vadd.f32 %v2454, %v2490
        %v2507 = vadd.f32 %v2455, %v2491
        %v2508 = vadd.f32 %v2456, %v2492
        %v2509 = vperm.slane %v1371, 6
        %v2510 = vmul.f32 %v2458, %v2509
        %v2511 = vmul.f32 %v2459, %v2509
        %v2512 = vmul.f32 %v2460, %v2509
        %v2513 = vmul.f32 %v2461, %v2509
        %v2514 = vmul.f32 %v2462, %v2509
        %v2515 = vmul.f32 %v2463, %v2509
        %v2516 = vmul.f32 %v2464, %v2509
        %v2517 = vmul.f32 %v2465, %v2509
        %v2518 = vmul.f32 %v2466, %v2509
        %v2519 = vmul.f32 %v2467, %v2509
        %v2520 = vmul.f32 %v2468, %v2509
        %v2521 = vmul.f32 %v2469, %v2509
        %v2522 = vmul.f32 %v2470, %v2509
        %v2523 = vmul.f32 %v2471, %v2509
        %v2524 = vmul.f32 %v2472, %v2509
        %v2525 = vmul.f32 %v2473, %v2509
        %v2526 = vadd.f32 %v2493, %v2510
        %v2527 = vadd.f32 %v2494, %v2511
        %v2528 = vadd.f32 %v2495, %v2512
        %v2529 = vadd.f32 %v2496, %v2513
        %v2530 = vadd.f32 %v2497, %v2514
        %v2531 = vadd.f32 %v2498, %v2515
        %v2532 = vadd.f32 %v2499, %v2516
        %v2533 = vadd.f32 %v2500, %v2517
        %v2534 = vadd.f32 %v2501, %v2518
        %v2535 = vadd.f32 %v2502, %v2519
        %v2536 = vadd.f32 %v2503, %v2520
        %v2537 = vadd.f32 %v2504, %v2521
        %v2538 = vadd.f32 %v2505, %v2522
        %v2539 = vadd.f32 %v2506, %v2523
        %v2540 = vadd.f32 %v2507, %v2524
        %v2541 = vadd.f32 %v2508, %v2525
        %v2542 = vperm.slane %v1372, 6
        %v2543 = vmul.f32 %v2459, %v2542
        %v2544 = vmul.f32 %v2460, %v2542
        %v2545 = vmul.f32 %v2461, %v2542
        %v2546 = vmul.f32 %v2462, %v2542
        %v2547 = vmul.f32 %v2463, %v2542
        %v2548 = vmul.f32 %v2464, %v2542
        %v2549 = vmul.f32 %v2465, %v2542
        %v2550 = vmul.f32 %v2466, %v2542
        %v2551 = vmul.f32 %v2467, %v2542
        %v2552 = vmul.f32 %v2468, %v2542
        %v2553 = vmul.f32 %v2469, %v2542
        %v2554 = vmul.f32 %v2470, %v2542
        %v2555 = vmul.f32 %v2471, %v2542
        %v2556 = vmul.f32 %v2472, %v2542
        %v2557 = vmul.f32 %v2473, %v2542
        %v2558 = vmul.f32 %v2474, %v2542
        %v2559 = vadd.f32 %v2526, %v2543
        %v2560 = vadd.f32 %v2527, %v2544
        %v2561 = vadd.f32 %v2528, %v2545
        %v2562 = vadd.f32 %v2529, %v2546
        %v2563 = vadd.f32 %v2530, %v2547
        %v2564 = vadd.f32 %v2531, %v2548
        %v2565 = vadd.f32 %v2532, %v2549
        %v2566 = vadd.f32 %v2533, %v2550
        %v2567 = vadd.f32 %v2534, %v2551
        %v2568 = vadd.f32 %v2535, %v2552
        %v2569 = vadd.f32 %v2536, %v2553
        %v2570 = vadd.f32 %v2537, %v2554
        %v2571 = vadd.f32 %v2538, %v2555
        %v2572 = vadd.f32 %v2539, %v2556
        %v2573 = vadd.f32 %v2540, %v2557
        %v2574 = vadd.f32 %v2541, %v2558
        %v2575 = vperm.slane %v1373, 6
        %v2576 = vmul.f32 %v2460, %v2575
        %v2577 = vmul.f32 %v2461, %v2575
        %v2578 = vmul.f32 %v2462, %v2575
        %v2579 = vmul.f32 %v2463, %v2575
        %v2580 = vmul.f32 %v2464, %v2575
        %v2581 = vmul.f32 %v2465, %v2575
        %v2582 = vmul.f32 %v2466, %v2575
        %v2583 = vmul.f32 %v2467, %v2575
        %v2584 = vmul.f32 %v2468, %v2575
        %v2585 = vmul.f32 %v2469, %v2575
        %v2586 = vmul.f32 %v2470, %v2575
        %v2587 = vmul.f32 %v2471, %v2575
        %v2588 = vmul.f32 %v2472, %v2575
        %v2589 = vmul.f32 %v2473, %v2575
        %v2590 = vmul.f32 %v2474, %v2575
        %v2591 = vmul.f32 %v2475, %v2575
        %v2592 = vadd.f32 %v2559, %v2576
        %v2593 = vadd.f32 %v2560, %v2577
        %v2594 = vadd.f32 %v2561, %v2578
        %v2595 = vadd.f32 %v2562, %v2579
        %v2596 = vadd.f32 %v2563, %v2580
        %v2597 = vadd.f32 %v2564, %v2581
        %v2598 = vadd.f32 %v2565, %v2582
        %v2599 = vadd.f32 %v2566, %v2583
        %v2600 = vadd.f32 %v2567, %v2584
        %v2601 = vadd.f32 %v2568, %v2585
        %v2602 = vadd.f32 %v2569, %v2586
        %v2603 = vadd.f32 %v2570, %v2587
        %v2604 = vadd.f32 %v2571, %v2588
        %v2605 = vadd.f32 %v2572, %v2589
        %v2606 = vadd.f32 %v2573, %v2590
        %v2607 = vadd.f32 %v2574, %v2591
        %v2609 = vperm.slane %v1374, 0
        %v2611 = vadd.f32 %v2592, %v2609
        %v2612 = vadd.f32 %v2593, %v2609
        %v2613 = vadd.f32 %v2594, %v2609
        %v2614 = vadd.f32 %v2595, %v2609
        %v2615 = vadd.f32 %v2596, %v2609
        %v2616 = vadd.f32 %v2597, %v2609
        %v2617 = vadd.f32 %v2598, %v2609
        %v2618 = vadd.f32 %v2599, %v2609
        %v2619 = vadd.f32 %v2600, %v2609
        %v2620 = vadd.f32 %v2601, %v2609
        %v2621 = vadd.f32 %v2602, %v2609
        %v2622 = vadd.f32 %v2603, %v2609
        %v2623 = vadd.f32 %v2604, %v2609
        %v2624 = vadd.f32 %v2605, %v2609
        %v2625 = vadd.f32 %v2606, %v2609
        %v2626 = vadd.f32 %v2607, %v2609
        %v2627 = vxor.u32 %v2611, 2147483648
        %v2628 = vxor.u32 %v2612, 2147483648
        %v2629 = vxor.u32 %v2613, 2147483648
        %v2630 = vxor.u32 %v2614, 2147483648
        %v2631 = vxor.u32 %v2615, 2147483648
        %v2632 = vxor.u32 %v2616, 2147483648
        %v2633 = vxor.u32 %v2617, 2147483648
        %v2634 = vxor.u32 %v2618, 2147483648
        %v2635 = vxor.u32 %v2619, 2147483648
        %v2636 = vxor.u32 %v2620, 2147483648
        %v2637 = vxor.u32 %v2621, 2147483648
        %v2638 = vxor.u32 %v2622, 2147483648
        %v2639 = vxor.u32 %v2623, 2147483648
        %v2640 = vxor.u32 %v2624, 2147483648
        %v2641 = vxor.u32 %v2625, 2147483648
        %v2642 = vxor.u32 %v2626, 2147483648
        %v2643 = vmul.f32 %v2627, 1.442695
        %v2644 = vpow.pop %v2643
        %v2645 = vmul.f32 %v2628, 1.442695
        %v2646 = vpow.pop %v2645
        %v2647 = vmul.f32 %v2629, 1.442695
        %v2648 = vpow.pop %v2647
        %v2649 = vmul.f32 %v2630, 1.442695
        %v2650 = vpow.pop %v2649
        %v2651 = vmul.f32 %v2631, 1.442695
        %v2652 = vpow.pop %v2651
        %v2653 = vmul.f32 %v2632, 1.442695
        %v2654 = vpow.pop %v2653
        %v2655 = vmul.f32 %v2633, 1.442695
        %v2656 = vpow.pop %v2655
        %v2657 = vmul.f32 %v2634, 1.442695
        %v2658 = vpow.pop %v2657
        %v2659 = vmul.f32 %v2635, 1.442695
        %v2660 = vpow.pop %v2659
        %v2661 = vmul.f32 %v2636, 1.442695
        %v2662 = vpow.pop %v2661
        %v2663 = vmul.f32 %v2637, 1.442695
        %v2664 = vpow.pop %v2663
        %v2665 = vmul.f32 %v2638, 1.442695
        %v2666 = vpow.pop %v2665
        %v2667 = vmul.f32 %v2639, 1.442695
        %v2668 = vpow.pop %v2667
        %v2669 = vmul.f32 %v2640, 1.442695
        %v2670 = vpow.pop %v2669
        %v2671 = vmul.f32 %v2641, 1.442695
        %v2672 = vpow.pop %v2671
        %v2673 = vmul.f32 %v2642, 1.442695
        %v2674 = vpow.pop %v2673
        %v2675 = vadd.f32 %v2644, 1.0
        %v2676 = vadd.f32 %v2646, 1.0
        %v2677 = vadd.f32 %v2648, 1.0
        %v2678 = vadd.f32 %v2650, 1.0
        %v2679 = vadd.f32 %v2652, 1.0
        %v2680 = vadd.f32 %v2654, 1.0
        %v2681 = vadd.f32 %v2656, 1.0
        %v2682 = vadd.f32 %v2658, 1.0
        %v2683 = vadd.f32 %v2660, 1.0
        %v2684 = vadd.f32 %v2662, 1.0
        %v2685 = vadd.f32 %v2664, 1.0
        %v2686 = vadd.f32 %v2666, 1.0
        %v2687 = vadd.f32 %v2668, 1.0
        %v2688 = vadd.f32 %v2670, 1.0
        %v2689 = vadd.f32 %v2672, 1.0
        %v2690 = vadd.f32 %v2674, 1.0
        %v2691 = vrcp.pop %v2675
        %v2692 = vmul.f32 %v2675, %v2691
        %v2693 = vsub.f32 1.0, %v2692
        %v2694 = vmul.f32 %v2691, %v2693
        %v2695 = vadd.f32 %v2691, %v2694
        %vm2696 = vweird.f32 %v2675
        %vm2697 = vweird.f32 %v2691
        %vm2698 = vmor %vm2696, %vm2697
        %v2699 = vsel %vm2698, %v2691, %v2695
        %v2700 = vand.u32 2147483647, %v2675
        %vm2701 = vcmp.eq.f32.partialorder %v2700, 8.507059e+37
        %v2702 = vand.u32 %v2675, 2147483648
        %v2703 = vor.u32 1.1754944e-38, %v2702
        %v2704 = vsel %vm2701, %v2703, %v2699
        %v2705 = vmul.f32 1.0, %v2704
        %v2706 = vrcp.pop %v2676
        %v2707 = vmul.f32 %v2676, %v2706
        %v2708 = vsub.f32 1.0, %v2707
        %v2709 = vmul.f32 %v2706, %v2708
        %v2710 = vadd.f32 %v2706, %v2709
        %vm2711 = vweird.f32 %v2676
        %vm2712 = vweird.f32 %v2706
        %vm2713 = vmor %vm2711, %vm2712
        %v2714 = vsel %vm2713, %v2706, %v2710
        %v2715 = vand.u32 2147483647, %v2676
        %vm2716 = vcmp.eq.f32.partialorder %v2715, 8.507059e+37
        %v2717 = vand.u32 %v2676, 2147483648
        %v2718 = vor.u32 1.1754944e-38, %v2717
        %v2719 = vsel %vm2716, %v2718, %v2714
        %v2720 = vmul.f32 1.0, %v2719
        %v2721 = vrcp.pop %v2677
        %v2722 = vmul.f32 %v2677, %v2721
        %v2723 = vsub.f32 1.0, %v2722
        %v2724 = vmul.f32 %v2721, %v2723
        %v2725 = vadd.f32 %v2721, %v2724
        %vm2726 = vweird.f32 %v2677
        %vm2727 = vweird.f32 %v2721
        %vm2728 = vmor %vm2726, %vm2727
        %v2729 = vsel %vm2728, %v2721, %v2725
        %v2730 = vand.u32 2147483647, %v2677
        %vm2731 = vcmp.eq.f32.partialorder %v2730, 8.507059e+37
        %v2732 = vand.u32 %v2677, 2147483648
        %v2733 = vor.u32 1.1754944e-38, %v2732
        %v2734 = vsel %vm2731, %v2733, %v2729
        %v2735 = vmul.f32 1.0, %v2734
        %v2736 = vrcp.pop %v2678
        %v2737 = vmul.f32 %v2678, %v2736
        %v2738 = vsub.f32 1.0, %v2737
        %v2739 = vmul.f32 %v2736, %v2738
        %v2740 = vadd.f32 %v2736, %v2739
        %vm2741 = vweird.f32 %v2678
        %vm2742 = vweird.f32 %v2736
        %vm2743 = vmor %vm2741, %vm2742
        %v2744 = vsel %vm2743, %v2736, %v2740
        %v2745 = vand.u32 2147483647, %v2678
        %vm2746 = vcmp.eq.f32.partialorder %v2745, 8.507059e+37
        %v2747 = vand.u32 %v2678, 2147483648
        %v2748 = vor.u32 1.1754944e-38, %v2747
        %v2749 = vsel %vm2746, %v2748, %v2744
        %v2750 = vmul.f32 1.0, %v2749
        %v2751 = vrcp.pop %v2679
        %v2752 = vmul.f32 %v2679, %v2751
        %v2753 = vsub.f32 1.0, %v2752
        %v2754 = vmul.f32 %v2751, %v2753
        %v2755 = vadd.f32 %v2751, %v2754
        %vm2756 = vweird.f32 %v2679
        %vm2757 = vweird.f32 %v2751
        %vm2758 = vmor %vm2756, %vm2757
        %v2759 = vsel %vm2758, %v2751, %v2755
        %v2760 = vand.u32 2147483647, %v2679
        %vm2761 = vcmp.eq.f32.partialorder %v2760, 8.507059e+37
        %v2762 = vand.u32 %v2679, 2147483648
        %v2763 = vor.u32 1.1754944e-38, %v2762
        %v2764 = vsel %vm2761, %v2763, %v2759
        %v2765 = vmul.f32 1.0, %v2764
        %v2766 = vrcp.pop %v2680
        %v2767 = vmul.f32 %v2680, %v2766
        %v2768 = vsub.f32 1.0, %v2767
        %v2769 = vmul.f32 %v2766, %v2768
        %v2770 = vadd.f32 %v2766, %v2769
        %vm2771 = vweird.f32 %v2680
        %vm2772 = vweird.f32 %v2766
        %vm2773 = vmor %vm2771, %vm2772
        %v2774 = vsel %vm2773, %v2766, %v2770
        %v2775 = vand.u32 2147483647, %v2680
        %vm2776 = vcmp.eq.f32.partialorder %v2775, 8.507059e+37
        %v2777 = vand.u32 %v2680, 2147483648
        %v2778 = vor.u32 1.1754944e-38, %v2777
        %v2779 = vsel %vm2776, %v2778, %v2774
        %v2780 = vmul.f32 1.0, %v2779
        %v2781 = vrcp.pop %v2681
        %v2782 = vmul.f32 %v2681, %v2781
        %v2783 = vsub.f32 1.0, %v2782
        %v2784 = vmul.f32 %v2781, %v2783
        %v2785 = vadd.f32 %v2781, %v2784
        %vm2786 = vweird.f32 %v2681
        %vm2787 = vweird.f32 %v2781
        %vm2788 = vmor %vm2786, %vm2787
        %v2789 = vsel %vm2788, %v2781, %v2785
        %v2790 = vand.u32 2147483647, %v2681
        %vm2791 = vcmp.eq.f32.partialorder %v2790, 8.507059e+37
        %v2792 = vand.u32 %v2681, 2147483648
        %v2793 = vor.u32 1.1754944e-38, %v2792
        %v2794 = vsel %vm2791, %v2793, %v2789
        %v2795 = vmul.f32 1.0, %v2794
        %v2796 = vrcp.pop %v2682
        %v2797 = vmul.f32 %v2682, %v2796
        %v2798 = vsub.f32 1.0, %v2797
        %v2799 = vmul.f32 %v2796, %v2798
        %v2800 = vadd.f32 %v2796, %v2799
        %vm2801 = vweird.f32 %v2682
        %vm2802 = vweird.f32 %v2796
        %vm2803 = vmor %vm2801, %vm2802
        %v2804 = vsel %vm2803, %v2796, %v2800
        %v2805 = vand.u32 2147483647, %v2682
        %vm2806 = vcmp.eq.f32.partialorder %v2805, 8.507059e+37
        %v2807 = vand.u32 %v2682, 2147483648
        %v2808 = vor.u32 1.1754944e-38, %v2807
        %v2809 = vsel %vm2806, %v2808, %v2804
        %v2810 = vmul.f32 1.0, %v2809
        %v2811 = vrcp.pop %v2683
        %v2812 = vmul.f32 %v2683, %v2811
        %v2813 = vsub.f32 1.0, %v2812
        %v2814 = vmul.f32 %v2811, %v2813
        %v2815 = vadd.f32 %v2811, %v2814
        %vm2816 = vweird.f32 %v2683
        %vm2817 = vweird.f32 %v2811
        %vm2818 = vmor %vm2816, %vm2817
        %v2819 = vsel %vm2818, %v2811, %v2815
        %v2820 = vand.u32 2147483647, %v2683
        %vm2821 = vcmp.eq.f32.partialorder %v2820, 8.507059e+37
        %v2822 = vand.u32 %v2683, 2147483648
        %v2823 = vor.u32 1.1754944e-38, %v2822
        %v2824 = vsel %vm2821, %v2823, %v2819
        %v2825 = vmul.f32 1.0, %v2824
        %v2826 = vrcp.pop %v2684
        %v2827 = vmul.f32 %v2684, %v2826
        %v2828 = vsub.f32 1.0, %v2827
        %v2829 = vmul.f32 %v2826, %v2828
        %v2830 = vadd.f32 %v2826, %v2829
        %vm2831 = vweird.f32 %v2684
        %vm2832 = vweird.f32 %v2826
        %vm2833 = vmor %vm2831, %vm2832
        %v2834 = vsel %vm2833, %v2826, %v2830
        %v2835 = vand.u32 2147483647, %v2684
        %vm2836 = vcmp.eq.f32.partialorder %v2835, 8.507059e+37
        %v2837 = vand.u32 %v2684, 2147483648
        %v2838 = vor.u32 1.1754944e-38, %v2837
        %v2839 = vsel %vm2836, %v2838, %v2834
        %v2840 = vmul.f32 1.0, %v2839
        %v2841 = vrcp.pop %v2685
        %v2842 = vmul.f32 %v2685, %v2841
        %v2843 = vsub.f32 1.0, %v2842
        %v2844 = vmul.f32 %v2841, %v2843
        %v2845 = vadd.f32 %v2841, %v2844
        %vm2846 = vweird.f32 %v2685
        %vm2847 = vweird.f32 %v2841
        %vm2848 = vmor %vm2846, %vm2847
        %v2849 = vsel %vm2848, %v2841, %v2845
        %v2850 = vand.u32 2147483647, %v2685
        %vm2851 = vcmp.eq.f32.partialorder %v2850, 8.507059e+37
        %v2852 = vand.u32 %v2685, 2147483648
        %v2853 = vor.u32 1.1754944e-38, %v2852
        %v2854 = vsel %vm2851, %v2853, %v2849
        %v2855 = vmul.f32 1.0, %v2854
        %v2856 = vrcp.pop %v2686
        %v2857 = vmul.f32 %v2686, %v2856
        %v2858 = vsub.f32 1.0, %v2857
        %v2859 = vmul.f32 %v2856, %v2858
        %v2860 = vadd.f32 %v2856, %v2859
        %vm2861 = vweird.f32 %v2686
        %vm2862 = vweird.f32 %v2856
        %vm2863 = vmor %vm2861, %vm2862
        %v2864 = vsel %vm2863, %v2856, %v2860
        %v2865 = vand.u32 2147483647, %v2686
        %vm2866 = vcmp.eq.f32.partialorder %v2865, 8.507059e+37
        %v2867 = vand.u32 %v2686, 2147483648
        %v2868 = vor.u32 1.1754944e-38, %v2867
        %v2869 = vsel %vm2866, %v2868, %v2864
        %v2870 = vmul.f32 1.0, %v2869
        %v2871 = vrcp.pop %v2687
        %v2872 = vmul.f32 %v2687, %v2871
        %v2873 = vsub.f32 1.0, %v2872
        %v2874 = vmul.f32 %v2871, %v2873
        %v2875 = vadd.f32 %v2871, %v2874
        %vm2876 = vweird.f32 %v2687
        %vm2877 = vweird.f32 %v2871
        %vm2878 = vmor %vm2876, %vm2877
        %v2879 = vsel %vm2878, %v2871, %v2875
        %v2880 = vand.u32 2147483647, %v2687
        %vm2881 = vcmp.eq.f32.partialorder %v2880, 8.507059e+37
        %v2882 = vand.u32 %v2687, 2147483648
        %v2883 = vor.u32 1.1754944e-38, %v2882
        %v2884 = vsel %vm2881, %v2883, %v2879
        %v2885 = vmul.f32 1.0, %v2884
        %v2886 = vrcp.pop %v2688
        %v2887 = vmul.f32 %v2688, %v2886
        %v2888 = vsub.f32 1.0, %v2887
        %v2889 = vmul.f32 %v2886, %v2888
        %v2890 = vadd.f32 %v2886, %v2889
        %vm2891 = vweird.f32 %v2688
        %vm2892 = vweird.f32 %v2886
        %vm2893 = vmor %vm2891, %vm2892
        %v2894 = vsel %vm2893, %v2886, %v2890
        %v2895 = vand.u32 2147483647, %v2688
        %vm2896 = vcmp.eq.f32.partialorder %v2895, 8.507059e+37
        %v2897 = vand.u32 %v2688, 2147483648
        %v2898 = vor.u32 1.1754944e-38, %v2897
        %v2899 = vsel %vm2896, %v2898, %v2894
        %v2900 = vmul.f32 1.0, %v2899
        %v2901 = vrcp.pop %v2689
        %v2902 = vmul.f32 %v2689, %v2901
        %v2903 = vsub.f32 1.0, %v2902
        %v2904 = vmul.f32 %v2901, %v2903
        %v2905 = vadd.f32 %v2901, %v2904
        %vm2906 = vweird.f32 %v2689
        %vm2907 = vweird.f32 %v2901
        %vm2908 = vmor %vm2906, %vm2907
        %v2909 = vsel %vm2908, %v2901, %v2905
        %v2910 = vand.u32 2147483647, %v2689
        %vm2911 = vcmp.eq.f32.partialorder %v2910, 8.507059e+37
        %v2912 = vand.u32 %v2689, 2147483648
        %v2913 = vor.u32 1.1754944e-38, %v2912
        %v2914 = vsel %vm2911, %v2913, %v2909
        %v2915 = vmul.f32 1.0, %v2914
        %v2916 = vrcp.pop %v2690
        %v2917 = vmul.f32 %v2690, %v2916
        %v2918 = vsub.f32 1.0, %v2917
        %v2919 = vmul.f32 %v2916, %v2918
        %v2920 = vadd.f32 %v2916, %v2919
        %vm2921 = vweird.f32 %v2690
        %vm2922 = vweird.f32 %v2916
        %vm2923 = vmor %vm2921, %vm2922
        %v2924 = vsel %vm2923, %v2916, %v2920
        %v2925 = vand.u32 2147483647, %v2690
        %vm2926 = vcmp.eq.f32.partialorder %v2925, 8.507059e+37
        %v2927 = vand.u32 %v2690, 2147483648
        %v2928 = vor.u32 1.1754944e-38, %v2927
        %v2929 = vsel %vm2926, %v2928, %v2924
        %v2930 = vmul.f32 1.0, %v2929
        %v2931 = vmul.f32 %v2611, %v2705
        %v2932 = vmul.f32 %v2612, %v2720
        %v2933 = vmul.f32 %v2613, %v2735
        %v2934 = vmul.f32 %v2614, %v2750
        %v2935 = vmul.f32 %v2615, %v2765
        %v2936 = vmul.f32 %v2616, %v2780
        %v2937 = vmul.f32 %v2617, %v2795
        %v2938 = vmul.f32 %v2618, %v2810
        %v2939 = vmul.f32 %v2619, %v2825
        %v2940 = vmul.f32 %v2620, %v2840
        %v2941 = vmul.f32 %v2621, %v2855
        %v2942 = vmul.f32 %v2622, %v2870
        %v2943 = vmul.f32 %v2623, %v2885
        %v2944 = vmul.f32 %v2624, %v2900
        %v2945 = vmul.f32 %v2625, %v2915
        %v2946 = vmul.f32 %v2626, %v2930
        %v2947 = vpack.c.bf16 %v2932, %v2931
        %v2948 = vpack.c.bf16 %v2934, %v2933
        %v2949 = vpack.c.bf16 %v2936, %v2935
        %v2950 = vpack.c.bf16 %v2938, %v2937
        %v2951 = vpack.c.bf16 %v2940, %v2939
        %v2952 = vpack.c.bf16 %v2942, %v2941
        %v2953 = vpack.c.bf16 %v2944, %v2943
        %v2954 = vpack.c.bf16 %v2946, %v2945
        %v2956 = vperm.slane %v1379, 0
        %v2962 = vunpack.c.l.b16 %v1375
        %v2963 = vunpack.c.l.b16 %v1376
        %v2964 = vunpack.c.l.b16 %v1377
        %v2965 = vunpack.c.l.b16 %v1378
        %v2966 = vpack.c.b16 %v2963, %v2962
        %v2967 = vpack.c.b16 %v2965, %v2964
        %v2971 = vsel %vm456, %v2947, 0
        %v2974 = vsel %vm456, %v2948, 0
        %v2977 = vsel %vm456, %v2949, 0
        %v2980 = vsel %vm456, %v2950, 0
        %v2983 = vsel %vm456, %v2951, 0
        %v2986 = vsel %vm456, %v2952, 0
        %v2989 = vsel %vm456, %v2953, 0
        %v2992 = vsel %vm456, %v2954, 0
        %2994 = vmatpush.bf16.msra.mxu0 0
        %2995 = vmatpush.bf16.msra.mxu0 0
        %2996 = vmatpush.bf16.msra.mxu0 0
        %2997 = vmatpush.bf16.msra.mxu0 0
        %2998 = vmatpush.bf16.msra.mxu0 0
        %2999 = vmatpush.bf16.msra.mxu0 0
        %3000 = vmatpush.bf16.msra.mxu0 %v2967
        %3001 = vmatpush.bf16.msra.mxu0 %v2966
        %3002 = vmatmul.bf16.gmra.mxu0 %v2971
        %v3003 = vpop.f32.mrf.mxu0
        %v3004 = vadd.f32 %v2956, %v3003
        %v3005 = vpop.f32.mrf.mxu0
        %v3006 = vadd.f32 %v2956, %v3005
        %3007 = vmatmul.bf16.gmra.mxu0 %v2974
        %v3008 = vpop.f32.mrf.mxu0
        %v3009 = vadd.f32 %v2956, %v3008
        %v3010 = vpop.f32.mrf.mxu0
        %v3011 = vadd.f32 %v2956, %v3010
        %3012 = vmatmul.bf16.gmra.mxu0 %v2977
        %v3013 = vpop.f32.mrf.mxu0
        %v3014 = vadd.f32 %v2956, %v3013
        %v3015 = vpop.f32.mrf.mxu0
        %v3016 = vadd.f32 %v2956, %v3015
        %3017 = vmatmul.bf16.gmra.mxu0 %v2980
        %v3018 = vpop.f32.mrf.mxu0
        %v3019 = vadd.f32 %v2956, %v3018
        %v3020 = vpop.f32.mrf.mxu0
        %v3021 = vadd.f32 %v2956, %v3020
        %3022 = vmatmul.bf16.gmra.mxu0 %v2983
        %v3023 = vpop.f32.mrf.mxu0
        %v3024 = vadd.f32 %v2956, %v3023
        %v3025 = vpop.f32.mrf.mxu0
        %v3026 = vadd.f32 %v2956, %v3025
        %3027 = vmatmul.bf16.gmra.mxu0 %v2986
        %v3028 = vpop.f32.mrf.mxu0
        %v3029 = vadd.f32 %v2956, %v3028
        %v3030 = vpop.f32.mrf.mxu0
        %v3031 = vadd.f32 %v2956, %v3030
        %3032 = vmatmul.bf16.gmra.mxu0 %v2989
        %v3033 = vpop.f32.mrf.mxu0
        %v3034 = vadd.f32 %v2956, %v3033
        %v3035 = vpop.f32.mrf.mxu0
        %v3036 = vadd.f32 %v2956, %v3035
        %3037 = vmatmul.bf16.gmra.mxu0 %v2992
        %v3038 = vpop.f32.mrf.mxu0
        %v3039 = vadd.f32 %v2956, %v3038
        %v3040 = vpop.f32.mrf.mxu0
        %v3041 = vadd.f32 %v2956, %v3040
        %3042 = vdwg.mxu0
        %3043 = vxpose.xlu0.b32.start [1/16] %v3004, 128
        %3044 = vxpose.xlu0.b32.cont [2/16] %v3006, 128
        %3045 = vxpose.xlu0.b32.cont [3/16] %v3009, 128
        %3046 = vxpose.xlu0.b32.cont [4/16] %v3011, 128
        %3047 = vxpose.xlu0.b32.cont [5/16] %v3014, 128
        %3048 = vxpose.xlu0.b32.cont [6/16] %v3016, 128
        %3049 = vxpose.xlu0.b32.cont [7/16] %v3019, 128
        %3050 = vxpose.xlu0.b32.cont [8/16] %v3021, 128
        %3051 = vxpose.xlu0.b32.cont [9/16] %v3024, 128
        %3052 = vxpose.xlu0.b32.cont [10/16] %v3026, 128
        %3053 = vxpose.xlu0.b32.cont [11/16] %v3029, 128
        %3054 = vxpose.xlu0.b32.cont [12/16] %v3031, 128
        %3055 = vxpose.xlu0.b32.cont [13/16] %v3034, 128
        %3056 = vxpose.xlu0.b32.cont [14/16] %v3036, 128
        %3057 = vxpose.xlu0.b32.cont [15/16] %v3039, 128
        %3058 = vxpose.xlu0.b32.end [16/16] %v3041, 128
        %v3059 = vpop.trf.xlu0
        %v3060 = vpop.trf.xlu0
        %v3061 = vpop.trf.xlu0
        %v3062 = vpop.trf.xlu0
        %v3063 = vpop.trf.xlu0
        %v3064 = vpop.trf.xlu0
        %v3065 = vpop.trf.xlu0
        %v3066 = vpop.trf.xlu0
        %v3067 = vpop.trf.xlu0
        %v3068 = vpop.trf.xlu0
        %v3069 = vpop.trf.xlu0
        %v3070 = vpop.trf.xlu0
        %v3071 = vpop.trf.xlu0
        %v3072 = vpop.trf.xlu0
        %v3073 = vpop.trf.xlu0
        %v3074 = vpop.trf.xlu0
        %3075 = vst [vmem:[%s418] sm:$0xff] %v3059
        %3076 = vst [vmem:[%s418 + $0x8] sm:$0xff] %v3060
        %3077 = vst [vmem:[%s418 + $0x10] sm:$0xff] %v3061
        %3078 = vst [vmem:[%s418 + $0x18] sm:$0xff] %v3062
        %s3079 = sand.u32 %s230, 1
        %s3080 = scalar_lea.sflag [#allocation6], %s3079
        %s3081 = sand.u32 %s230, 1
        %s3082 = smul.addr %s3081, 32
        %s3083 = scalar_lea.vmem [#allocation13], %s3082
        // Predicated region
        $region77: #{tpu_custom_call.1} parent=55 // pred_check
          %p3084 = pneg %p240
        $region78: #{tpu_custom_call.1} parent=55 // pred_check_branch
          %3086 = sbr.rel (%p3084) target = $region80
        $region79: #{tpu_custom_call.1} parent=55 // pred_region
          %3088 = vsyncadd %s3080, 0
          %s3089 = smul.addr %s28, 4
          %s3090 = smul.addr %s3089, 8
          %s3091 = scalar_lea.hbm %s9, %s3090
          %s3092 = sshll.u32 %s3083, 4
          %s3093 = int_to_ptr.vmem [resolvable:$true] %s3092
          %s3094 = sshll.u32 %s3091, 4
          %s3095 = int_to_ptr.hbm [resolvable:$true] %s3094
          %3100 = dma.vmem_to_hbm [thread:$0]  %s3093, 512, %s3095, %s3080, 128, 128, 8
        $region80: #{tpu_custom_call.1} parent=55 // pred_fallthru
          _
      $region56: #{tpu_custom_call.1} parent=5 // pred_fallthru
        _
      %p3101 = scmp.le.s32.totalorder 2, %s23
      // Predicated region
      $region81: #{tpu_custom_call.1} parent=5 // pred_check
        %p3102 = pneg %p3101
      $region82: #{tpu_custom_call.1} parent=5 // pred_check_branch
        %3104 = sbr.rel (%p3102) target = $region84
      $region83: #{tpu_custom_call.1} parent=5 // pred_region
        %s3105 = ssub.s32 %s23, 2
        // Predicated region
        $region85: #{tpu_custom_call.1} parent=83 // pred_check
          %p3106 = pneg %p246
        $region86: #{tpu_custom_call.1} parent=83 // pred_check_branch
          %3108 = sbr.rel (%p3106) target = $region88
        $region87: #{tpu_custom_call.1} parent=83 // pred_region
          %s3109 = sand.u32 %s231, 1
          %s3110 = scalar_lea.sflag [#allocation6], %s3109
          %s3111 = sand.u32 %s231, 1
          %s3112 = smul.addr %s3111, 32
          %s3113 = scalar_lea.vmem [#allocation13], %s3112
          %3115 = dma.done %s3110, 512
        $region88: #{tpu_custom_call.1} parent=83 // pred_fallthru
          _
      $region84: #{tpu_custom_call.1} parent=5 // pred_fallthru
        _
    $region6: #{tpu_custom_call.1} parent=1 // loop_footer
      %s27 = sadd.s32 1, %s23
    $region7: #{tpu_custom_call.1} parent=1 // loop_footer_branch
      %22 = sbr.rel target = $region3
    $region8: #{tpu_custom_call.1} parent=1 // loop_exit
      _
    %3116 = vsyncpa [#allocation5], 1
    %s3117 = scalar_lea.sflag [#allocation5], 1
    %3118 = vsyncpa %s3117, 1
    %3119 = vsyncpa [#allocation8], 1
    %3120 = vsyncpa [#allocation11], 1
    %3121 = vsyncpa [#allocation6], 1
    %s3122 = scalar_lea.sflag [#allocation6], 1
    %3123 = vsyncpa %s3122, 1

</llo_original>
